<compile_context>
chip_gen: v7x
topology: tpu7x:2x2x1
jax: 0.10.0
libtpu: 0.0.40
codegen_flags: <defaults>
</compile_context>

<pallas_src>
import math

import numpy as np
import jax
import jax.numpy as jnp
from jax.experimental import pallas as pl
from jax.experimental.pallas import tpu as pltpu

# ---- module-consistent (small) hyper-parameters --------------------------------
N_MELS = 16          # conv1 in-channels
MODEL_DIM = 32       # model_dim (D)
NUM_HEADS = 4
NUM_LAYERS = 2
SEQ = 16             # n_frames + 1  (time steps T)
NUM_CLASSES = 10
BATCH = 2
LN_EPS = 1e-5

TB = SEQ * BATCH               # flattened token count (batch-major)
OUT_ROWS, OUT_LANES = 8, 128   # sublane/lane-dense padded output tile

assert BATCH == 2, "kernel uses the exact two-key sigmoid-softmax path"


# ---- packed-parameter slab layout (all row offsets are multiples of 8) ----------
def _round8(n):
    return ((n + 7) // 8) * 8


def _build_layout():
    pieces = [
        ('c1w',    3 * N_MELS, MODEL_DIM),     # conv1 taps [w0; w1; w2]
        ('c2w',    3 * MODEL_DIM, MODEL_DIM),  # conv2 taps
        ('sprev',  TB, TB),                    # shift-to-previous-timestep matrix
        ('snext',  TB, TB),                    # shift-to-next-timestep matrix
        ('cvec',   4, MODEL_DIM),              # conv1_b | conv2_b | lnf_w | lnf_b
        ('pos',    TB, MODEL_DIM),             # positional embedding, batch-tiled
        ('ind_dh', MODEL_DIM, NUM_HEADS),      # head indicator (scale folded in)
        ('ind_hd', NUM_HEADS, MODEL_DIM),      # its (unscaled) transpose
        ('avg',    OUT_ROWS, TB),              # per-batch mean-over-T matrix
        ('fcw',    MODEL_DIM, OUT_LANES),      # classifier weight, lane-padded
        ('fcb',    1, OUT_LANES),              # classifier bias, lane-padded
    ]
    for l in range(NUM_LAYERS):
        pieces += [
            (f'wqkv{l}', MODEL_DIM, 3 * MODEL_DIM),
            (f'wo{l}',   MODEL_DIM, MODEL_DIM),
            (f'w1{l}',   MODEL_DIM, MODEL_DIM),
            (f'w2{l}',   MODEL_DIM, MODEL_DIM),
            (f'lv{l}',   8, OUT_LANES),        # ln1w|ln1b|bqkv|bo|ln2w|ln2b|b1|b2
        ]
    layout, off = {}, 0
    for name, r, c in pieces:
        layout[name] = (off, r, c)
        off += _round8(r)
    return layout, off


_LAYOUT, _SLAB_ROWS = _build_layout()


# ---- shared math helpers --------------------------------------------------------
def _gelu_tanh(x):
    c = math.sqrt(2.0 / math.pi)
    return 0.5 * x * (1.0 + jnp.tanh(c * (x + 0.044715 * x * x * x)))


def _gelu_erf(x):      # reference only (exact, matches torch F.gelu)
    return 0.5 * x * (1.0 + jax.lax.erf(x * (1.0 / math.sqrt(2.0))))


def _layer_norm(x, w, b):
    mu = jnp.mean(x, axis=-1, keepdims=True)
    var = jnp.mean(jnp.square(x - mu), axis=-1, keepdims=True)
    return (x - mu) * jax.lax.rsqrt(var + LN_EPS) * w + b


def _vmem():
    return pl.BlockSpec(memory_space=pltpu.MemorySpace.VMEM)


# ---- the single fused forward kernel --------------------------------------------
def fused_forward_kernel(x_ref,     # (TB, N_MELS) input, flat batch-major
                         w_ref,     # (_SLAB_ROWS, 128) packed parameter slab
                         out_ref):  # (8, 128) lane-dense padded logits
    D, H, T = MODEL_DIM, NUM_HEADS, SEQ

    def get(name):
        off, r, c = _LAYOUT[name]
        return w_ref[off:off + r, 0:c]

    def mm(a, b):
        return jnp.dot(a, b, preferred_element_type=jnp.float32)

    sprev = get('sprev')                 # (TB, TB)
    snext = get('snext')
    cvec = get('cvec')                   # (4, D)

    def conv3_gelu(x, taps, bias):
        # k=3 / pad=1 conv over time on the flat batch-major tensor.  Time
        # shifting (with zeroed batch boundaries) is a matmul against a
        # precomputed 0/1 shift matrix -> runs on the otherwise-idle MXU,
        # no pad/concat relayouts on the VPU/XLU path.
        C = x.shape[-1]
        y = (mm(mm(sprev, x), taps[0:C])
             + mm(x, taps[C:2 * C])
             + mm(mm(snext, x), taps[2 * C:3 * C])
             + bias)
        return _gelu_tanh(y)

    h = conv3_gelu(x_ref[...], get('c1w'), cvec[0:1])        # (TB, D)
    h = conv3_gelu(h, get('c2w'), cvec[1:2])
    h = h + get('pos')                                       # pre-tiled (TB, D)

    ind_dh = get('ind_dh')               # (D, H), 1/sqrt(head_dim) folded in
    ind_hd = get('ind_hd')               # (H, D)

    for l in range(NUM_LAYERS):
        lv = get(f'lv{l}')               # (8, 128) per-layer vectors

        # ---- attention block: x = LN1(x); x = x + MHA(x) (residual from LN'd x,
        #      exactly as the PyTorch EncoderLayer does) --------------------------
        hn = _layer_norm(h, lv[0:1, 0:D], lv[1:2, 0:D])
        qkv = mm(hn, get(f'wqkv{l}')) + lv[2:3, 0:3 * D]     # fused QKV, one bias add
        q = qkv[:, 0:D]
        k = qkv[:, D:2 * D]
        v = qkv[:, 2 * D:3 * D]

        # Attention mixes the batch axis (module called without batch_first):
        # for a given t, the two key/value rows are rows t and T+t of the flat
        # batch-major tensor; broadcasting key c over all queries is a
        # row-block tile (8-aligned, just vreg copies).
        k0 = jnp.concatenate([k[0:T], k[0:T]], axis=0)        # (TB, D)
        k1 = jnp.concatenate([k[T:2 * T], k[T:2 * T]], axis=0)
        v0 = jnp.concatenate([v[0:T], v[0:T]], axis=0)
        v1 = jnp.concatenate([v[T:2 * T], v[T:2 * T]], axis=0)

        # All B*H scores in one row-stacked MXU push (no lane shuffles).
        qk = jnp.concatenate([q * k0, q * k1], axis=0)        # (2*TB, D)
        s = mm(qk, ind_dh)                                    # (2*TB, H)
        s0, s1 = s[0:TB], s[TB:2 * TB]
        # exact 2-key softmax: p0 = sigmoid(s0 - s1), p1 = 1 - p0
        p0 = pl.reciprocal(1.0 + jnp.exp(s1 - s0), approx=True)
        pe = mm(jnp.concatenate([p0, 1.0 - p0], axis=0), ind_hd)   # (2*TB, D)
        o = pe[0:TB] * v0 + pe[TB:2 * TB] * v1                # (TB, D)

        h = hn + mm(o, get(f'wo{l}')) + lv[3:4, 0:D]

        # ---- feed-forward block: x = LN2(x); x = x + FFN(x) ----------------------
        hn2 = _layer_norm(h, lv[4:5, 0:D], lv[5:6, 0:D])
        ff = _gelu_tanh(mm(hn2, get(f'w1{l}')) + lv[6:7, 0:D])
        ff = mm(ff, get(f'w2{l}')) + lv[7:8, 0:D]
        h = hn2 + ff

    # ---- final LayerNorm, mean over T (averaging matmul) and classifier ----------
    hf = _layer_norm(h, cvec[2:3], cvec[3:4])
    hmean = mm(get('avg'), hf)                                # (8, D); rows >= B are 0
    out_ref[...] = mm(hmean, get('fcw')) + get('fcb')         # (8, 128) dense store


# ---- cost hint for the single custom call ----------------------------------------
def _cost_estimate():
    D, Hd = MODEL_DIM, NUM_HEADS
    conv = (2 * 2 * TB * TB * N_MELS + 2 * 3 * TB * N_MELS * D
            + 2 * 2 * TB * TB * D + 2 * 3 * TB * D * D)
    per_layer = (2 * TB * D * 3 * D            # fused QKV
                 + 2 * (2 * TB) * D * Hd       # scores
                 + 2 * (2 * TB) * Hd * D       # probability expansion
                 + 2 * TB * D * D              # out projection
                 + 2 * 2 * TB * D * D)         # FFN
    head = 2 * OUT_ROWS * TB * D + 2 * OUT_ROWS * D * OUT_LANES
    flops = conv + NUM_LAYERS * per_layer + head
    transcend = 2 * TB * D + NUM_LAYERS * (TB * D + TB * Hd)
    bytes_acc = 4 * (TB * N_MELS + _SLAB_ROWS * 128 + OUT_ROWS * OUT_LANES)
    return pl.CostEstimate(flops=int(flops), transcendentals=int(transcend),
                           bytes_accessed=int(bytes_acc))


# ---- wrapper: one pallas_call, two input DMAs, lane-dense output -----------------
def pallas_forward(x, slab):
    # x: (B, 1, n_mels, T) like the PyTorch module input
    B, _, C, T = x.shape
    assert (B, C, T) == (BATCH, N_MELS, SEQ), (
        f'incorrect audio shape, ({BATCH},1,{N_MELS},{SEQ}) expected, got {x.shape}')
    # flat batch-major activations (TB, n_mels)
    xt = jnp.transpose(jnp.squeeze(x, axis=1), (0, 2, 1)).reshape(B * T, C)
    out = pl.pallas_call(
        fused_forward_kernel,
        out_shape=jax.ShapeDtypeStruct((OUT_ROWS, OUT_LANES), jnp.float32),
        in_specs=[_vmem(), _vmem()],
        out_specs=_vmem(),
        cost_estimate=_cost_estimate(),
    )(xt, slab)
    return out[:B, :NUM_CLASSES]


# ---- pure-JAX reference (exact PyTorch forward semantics, erf GELU) --------------
def reference_forward(x, params):
    xb = jnp.transpose(jnp.squeeze(x, axis=1), (0, 2, 1))       # (B, T, C)

    def conv(xin, w, b):
        T = xin.shape[1]
        xp = jnp.pad(xin, ((0, 0), (1, 1), (0, 0)))
        return sum(jnp.einsum('btc,cd->btd', xp[:, k:k + T, :], w[k])
                   for k in range(3)) + b

    h = _gelu_erf(conv(xb, params['conv1_w'], params['conv1_b']))
    h = _gelu_erf(conv(h, params['conv2_w'], params['conv2_b']))
    h = h + params['pos']

    H = NUM_HEADS
    for lp in params['layers']:
        # x = LN1(x); attention over the *batch* axis (no batch_first); x = x + attn
        h = _layer_norm(h, lp['ln1w'], lp['ln1b'])
        q = h @ lp['wq'] + lp['bq']
        k = h @ lp['wk'] + lp['bk']
        v = h @ lp['wv'] + lp['bv']
        B, T, D = q.shape
        hd = D // H
        qh = q.reshape(B, T, H, hd)
        kh = k.reshape(B, T, H, hd)
        vh = v.reshape(B, T, H, hd)
        s = jnp.einsum('bthd,cthd->thbc', qh, kh) / math.sqrt(hd)
        p = jax.nn.softmax(s, axis=-1)
        o = jnp.einsum('thbc,cthd->bthd', p, vh).reshape(B, T, D)
        h = h + (o @ lp['wo'] + lp['bo'])
        # x = LN2(x); x = x + FFN(x)
        h = _layer_norm(h, lp['ln2w'], lp['ln2b'])
        ff = _gelu_erf(h @ lp['w1'] + lp['b1']) @ lp['w2'] + lp['b2']
        h = h + ff

    h = _layer_norm(h, params['lnf_w'], params['lnf_b'])
    m = jnp.mean(h, axis=1)
    return m @ params['fc_w'] + params['fc_b']


# ---- deterministic synthetic parameters ------------------------------------------
def init_params(key):
    def nrm(k, shape, scale=0.1):
        return scale * jax.random.normal(k, shape, jnp.float32)

    keys = iter(jax.random.split(key, 64))
    D = MODEL_DIM
    params = {
        'conv1_w': nrm(next(keys), (3, N_MELS, D)),     # (tap, cin, cout)
        'conv1_b': nrm(next(keys), (1, D)),
        'conv2_w': nrm(next(keys), (3, D, D)),
        'conv2_b': nrm(next(keys), (1, D)),
        'pos':     nrm(next(keys), (1, SEQ, D), 1.0),
        'lnf_w': jnp.ones((1, D), jnp.float32),
        'lnf_b': jnp.zeros((1, D), jnp.float32),
        'fc_w':  nrm(next(keys), (D, NUM_CLASSES)),
        'fc_b':  nrm(next(keys), (1, NUM_CLASSES)),
        'layers': [],
    }
    for _ in range(NUM_LAYERS):
        lp = {
            'ln1w': jnp.ones((1, D), jnp.float32),
            'ln1b': jnp.zeros((1, D), jnp.float32),
            'wq': nrm(next(keys), (D, D)), 'bq': nrm(next(keys), (1, D)),
            'wk': nrm(next(keys), (D, D)), 'bk': nrm(next(keys), (1, D)),
            'wv': nrm(next(keys), (D, D)), 'bv': nrm(next(keys), (1, D)),
            'wo': nrm(next(keys), (D, D)), 'bo': nrm(next(keys), (1, D)),
            'ln2w': jnp.ones((1, D), jnp.float32),
            'ln2b': jnp.zeros((1, D), jnp.float32),
            'w1': nrm(next(keys), (D, D)), 'b1': nrm(next(keys), (1, D)),
            'w2': nrm(next(keys), (D, D)), 'b2': nrm(next(keys), (1, D)),
        }
        params['layers'].append(lp)
    return params


def pack_params(params):
    """Pack all parameters/constants into the single (rows, 128) VMEM slab."""
    D, H, T, B = MODEL_DIM, NUM_HEADS, SEQ, BATCH
    hd = D // H
    slab = np.zeros((_SLAB_ROWS, 128), np.float32)

    def put(name, arr):
        off, r, c = _LAYOUT[name]
        a = np.asarray(arr, np.float32)
        assert a.shape == (r, c), (name, a.shape, (r, c))
        slab[off:off + r, 0:c] = a

    put('c1w', np.asarray(params['conv1_w']).reshape(3 * N_MELS, D))
    put('c2w', np.asarray(params['conv2_w']).reshape(3 * D, D))

    # 0/1 time-shift matrices over the flat batch-major index (n = b*T + t),
    # zeroed at per-batch boundaries (== the conv's zero padding).
    sprev = np.zeros((TB, TB), np.float32)
    snext = np.zeros((TB, TB), np.float32)
    for n in range(TB):
        if n % T != 0:
            sprev[n, n - 1] = 1.0
        if n % T != T - 1:
            snext[n, n + 1] = 1.0
    put('sprev', sprev)
    put('snext', snext)

    put('cvec', np.concatenate([np.asarray(params['conv1_b']),
                                np.asarray(params['conv2_b']),
                                np.asarray(params['lnf_w']),
                                np.asarray(params['lnf_b'])], axis=0))
    put('pos', np.tile(np.asarray(params['pos'])[0], (B, 1)))          # (TB, D)

    head_of = np.arange(D) // hd
    ind = (head_of[:, None] == np.arange(H)[None, :]).astype(np.float32)
    put('ind_dh', ind / math.sqrt(hd))          # attention scale folded in
    put('ind_hd', ind.T)

    avg = np.zeros((OUT_ROWS, TB), np.float32)
    for b in range(B):
        avg[b, b * T:(b + 1) * T] = 1.0 / T
    put('avg', avg)

    fcw = np.zeros((D, OUT_LANES), np.float32)
    fcw[:, :NUM_CLASSES] = np.asarray(params['fc_w'])
    put('fcw', fcw)
    fcb = np.zeros((1, OUT_LANES), np.float32)
    fcb[0, :NUM_CLASSES] = np.asarray(params['fc_b'])[0]
    put('fcb', fcb)

    for l, lp in enumerate(params['layers']):
        put(f'wqkv{l}', np.concatenate([np.asarray(lp['wq']),
                                        np.asarray(lp['wk']),
                                        np.asarray(lp['wv'])], axis=1))
        put(f'wo{l}', np.asarray(lp['wo']))
        put(f'w1{l}', np.asarray(lp['w1']))
        put(f'w2{l}', np.asarray(lp['w2']))
        lv = np.zeros((8, OUT_LANES), np.float32)
        lv[0, :D] = np.asarray(lp['ln1w'])[0]
        lv[1, :D] = np.asarray(lp['ln1b'])[0]
        lv[2, :3 * D] = np.concatenate([np.asarray(lp['bq'])[0],
                                        np.asarray(lp['bk'])[0],
                                        np.asarray(lp['bv'])[0]])
        lv[3, :D] = np.asarray(lp['bo'])[0]
        lv[4, :D] = np.asarray(lp['ln2w'])[0]
        lv[5, :D] = np.asarray(lp['ln2b'])[0]
        lv[6, :D] = np.asarray(lp['b1'])[0]
        lv[7, :D] = np.asarray(lp['b2'])[0]
        put(f'lv{l}', lv)

    return jnp.asarray(slab)


if __name__ == "__main__":
    key = jax.random.PRNGKey(0)
    pkey, xkey = jax.random.split(key)
    params = init_params(pkey)
    slab = pack_params(params)
    x = jax.random.normal(xkey, (BATCH, 1, N_MELS, SEQ), jnp.float32)

    fwd = jax.jit(pallas_forward)
    out = jax.block_until_ready(fwd(x, slab))

    assert out.shape == (BATCH, NUM_CLASSES)
    assert bool(jnp.all(jnp.isfinite(out)))
    ref = reference_forward(x, params)
    err = float(jnp.max(jnp.abs(out - ref)))
    assert bool(jnp.allclose(out, ref, atol=2e-2, rtol=2e-2)), err
    print("KERNEL_OK")
</pallas_src>

<mosaic_0001>
module attributes {stable_mosaic.version = 11 : i64} {
  func.func @fused_forward_kernel(%arg0: memref<32x16xf32, #tpu.memory_space<vmem>>, %arg1: memref<608x128xf32, #tpu.memory_space<vmem>>, %arg2: memref<8x128xf32, #tpu.memory_space<vmem>>) attributes {dimension_semantics = [], scalar_prefetch = 0 : i64, scratch_operands = 0 : i64, tpu.core_type = #tpu.core_type<tc>} {
    %c144 = arith.constant 144 : index
    %c0 = arith.constant 0 : index
    %0 = vector.load %arg1[%c144, %c0] : memref<608x128xf32, #tpu.memory_space<vmem>>, vector<32x32xf32>
    %c176 = arith.constant 176 : index
    %c0_0 = arith.constant 0 : index
    %1 = vector.load %arg1[%c176, %c0_0] : memref<608x128xf32, #tpu.memory_space<vmem>>, vector<32x32xf32>
    %c208 = arith.constant 208 : index
    %c0_1 = arith.constant 0 : index
    %2 = vector.load %arg1[%c208, %c0_1] : memref<608x128xf32, #tpu.memory_space<vmem>>, vector<4x32xf32>
    %c0_2 = arith.constant 0 : index
    %c0_3 = arith.constant 0 : index
    %3 = vector.load %arg0[%c0_2, %c0_3] : memref<32x16xf32, #tpu.memory_space<vmem>>, vector<32x16xf32>
    %c0_4 = arith.constant 0 : index
    %c0_5 = arith.constant 0 : index
    %4 = vector.load %arg1[%c0_4, %c0_5] : memref<608x128xf32, #tpu.memory_space<vmem>>, vector<48x32xf32>
    %5 = vector.extract_strided_slice %2 {offsets = [0, 0], sizes = [1, 32], strides = [1, 1]} : vector<4x32xf32> to vector<1x32xf32>
    %cst = arith.constant dense<0.000000e+00> : vector<32x16xf32>
    %6 = tpu.matmul %0, %3, %cst {dimension_numbers = #tpu.dot_dimension_numbers<[1], [0], [0], [1], [0, 0, 1, 1], [], []>} : vector<32x32xf32>, vector<32x16xf32>, vector<32x16xf32> -> vector<32x16xf32>
    %7 = vector.extract_strided_slice %4 {offsets = [0, 0], sizes = [16, 32], strides = [1, 1]} : vector<48x32xf32> to vector<16x32xf32>
    %cst_6 = arith.constant dense<0.000000e+00> : vector<32x32xf32>
    %8 = tpu.matmul %6, %7, %cst_6 {dimension_numbers = #tpu.dot_dimension_numbers<[1], [0], [0], [1], [0, 0, 1, 1], [], []>} : vector<32x16xf32>, vector<16x32xf32>, vector<32x32xf32> -> vector<32x32xf32>
    %9 = vector.extract_strided_slice %4 {offsets = [16, 0], sizes = [16, 32], strides = [1, 1]} : vector<48x32xf32> to vector<16x32xf32>
    %cst_7 = arith.constant dense<0.000000e+00> : vector<32x32xf32>
    %10 = tpu.matmul %3, %9, %cst_7 {dimension_numbers = #tpu.dot_dimension_numbers<[1], [0], [0], [1], [0, 0, 1, 1], [], []>} : vector<32x16xf32>, vector<16x32xf32>, vector<32x32xf32> -> vector<32x32xf32>
    %11 = arith.addf %8, %10 : vector<32x32xf32>
    %cst_8 = arith.constant dense<0.000000e+00> : vector<32x16xf32>
    %12 = tpu.matmul %1, %3, %cst_8 {dimension_numbers = #tpu.dot_dimension_numbers<[1], [0], [0], [1], [0, 0, 1, 1], [], []>} : vector<32x32xf32>, vector<32x16xf32>, vector<32x16xf32> -> vector<32x16xf32>
    %13 = vector.extract_strided_slice %4 {offsets = [32, 0], sizes = [16, 32], strides = [1, 1]} : vector<48x32xf32> to vector<16x32xf32>
    %cst_9 = arith.constant dense<0.000000e+00> : vector<32x32xf32>
    %14 = tpu.matmul %12, %13, %cst_9 {dimension_numbers = #tpu.dot_dimension_numbers<[1], [0], [0], [1], [0, 0, 1, 1], [], []>} : vector<32x16xf32>, vector<16x32xf32>, vector<32x32xf32> -> vector<32x32xf32>
    %15 = arith.addf %11, %14 : vector<32x32xf32>
    %16 = vector.broadcast %5 : vector<1x32xf32> to vector<32x32xf32>
    %17 = arith.addf %15, %16 : vector<32x32xf32>
    %cst_10 = arith.constant 5.000000e-01 : f32
    %18 = vector.broadcast %cst_10 : f32 to vector<32x32xf32>
    %19 = arith.mulf %18, %17 : vector<32x32xf32>
    %cst_11 = arith.constant 4.471500e-02 : f32
    %20 = vector.broadcast %cst_11 : f32 to vector<32x32xf32>
    %21 = arith.mulf %20, %17 : vector<32x32xf32>
    %22 = arith.mulf %21, %17 : vector<32x32xf32>
    %23 = arith.mulf %22, %17 : vector<32x32xf32>
    %24 = arith.addf %17, %23 : vector<32x32xf32>
    %cst_12 = arith.constant 0.797884583 : f32
    %25 = vector.broadcast %cst_12 : f32 to vector<32x32xf32>
    %26 = arith.mulf %25, %24 : vector<32x32xf32>
    %27 = math.tanh %26 : vector<32x32xf32>
    %cst_13 = arith.constant 1.000000e+00 : f32
    %28 = vector.broadcast %cst_13 : f32 to vector<32x32xf32>
    %29 = arith.addf %28, %27 : vector<32x32xf32>
    %30 = arith.mulf %19, %29 : vector<32x32xf32>
    %c48 = arith.constant 48 : index
    %c0_14 = arith.constant 0 : index
    %31 = vector.load %arg1[%c48, %c0_14] : memref<608x128xf32, #tpu.memory_space<vmem>>, vector<96x32xf32>
    %32 = vector.extract_strided_slice %2 {offsets = [1, 0], sizes = [1, 32], strides = [1, 1]} : vector<4x32xf32> to vector<1x32xf32>
    %cst_15 = arith.constant dense<0.000000e+00> : vector<32x32xf32>
    %33 = tpu.matmul %0, %30, %cst_15 {dimension_numbers = #tpu.dot_dimension_numbers<[1], [0], [0], [1], [0, 0, 1, 1], [], []>} : vector<32x32xf32>, vector<32x32xf32>, vector<32x32xf32> -> vector<32x32xf32>
    %34 = vector.extract_strided_slice %31 {offsets = [0, 0], sizes = [32, 32], strides = [1, 1]} : vector<96x32xf32> to vector<32x32xf32>
    %cst_16 = arith.constant dense<0.000000e+00> : vector<32x32xf32>
    %35 = tpu.matmul %33, %34, %cst_16 {dimension_numbers = #tpu.dot_dimension_numbers<[1], [0], [0], [1], [0, 0, 1, 1], [], []>} : vector<32x32xf32>, vector<32x32xf32>, vector<32x32xf32> -> vector<32x32xf32>
    %36 = vector.extract_strided_slice %31 {offsets = [32, 0], sizes = [32, 32], strides = [1, 1]} : vector<96x32xf32> to vector<32x32xf32>
    %cst_17 = arith.constant dense<0.000000e+00> : vector<32x32xf32>
    %37 = tpu.matmul %30, %36, %cst_17 {dimension_numbers = #tpu.dot_dimension_numbers<[1], [0], [0], [1], [0, 0, 1, 1], [], []>} : vector<32x32xf32>, vector<32x32xf32>, vector<32x32xf32> -> vector<32x32xf32>
    %38 = arith.addf %35, %37 : vector<32x32xf32>
    %cst_18 = arith.constant dense<0.000000e+00> : vector<32x32xf32>
    %39 = tpu.matmul %1, %30, %cst_18 {dimension_numbers = #tpu.dot_dimension_numbers<[1], [0], [0], [1], [0, 0, 1, 1], [], []>} : vector<32x32xf32>, vector<32x32xf32>, vector<32x32xf32> -> vector<32x32xf32>
    %40 = vector.extract_strided_slice %31 {offsets = [64, 0], sizes = [32, 32], strides = [1, 1]} : vector<96x32xf32> to vector<32x32xf32>
    %cst_19 = arith.constant dense<0.000000e+00> : vector<32x32xf32>
    %41 = tpu.matmul %39, %40, %cst_19 {dimension_numbers = #tpu.dot_dimension_numbers<[1], [0], [0], [1], [0, 0, 1, 1], [], []>} : vector<32x32xf32>, vector<32x32xf32>, vector<32x32xf32> -> vector<32x32xf32>
    %42 = arith.addf %38, %41 : vector<32x32xf32>
    %43 = vector.broadcast %32 : vector<1x32xf32> to vector<32x32xf32>
    %44 = arith.addf %42, %43 : vector<32x32xf32>
    %cst_20 = arith.constant 5.000000e-01 : f32
    %45 = vector.broadcast %cst_20 : f32 to vector<32x32xf32>
    %46 = arith.mulf %45, %44 : vector<32x32xf32>
    %cst_21 = arith.constant 4.471500e-02 : f32
    %47 = vector.broadcast %cst_21 : f32 to vector<32x32xf32>
    %48 = arith.mulf %47, %44 : vector<32x32xf32>
    %49 = arith.mulf %48, %44 : vector<32x32xf32>
    %50 = arith.mulf %49, %44 : vector<32x32xf32>
    %51 = arith.addf %44, %50 : vector<32x32xf32>
    %cst_22 = arith.constant 0.797884583 : f32
    %52 = vector.broadcast %cst_22 : f32 to vector<32x32xf32>
    %53 = arith.mulf %52, %51 : vector<32x32xf32>
    %54 = math.tanh %53 : vector<32x32xf32>
    %cst_23 = arith.constant 1.000000e+00 : f32
    %55 = vector.broadcast %cst_23 : f32 to vector<32x32xf32>
    %56 = arith.addf %55, %54 : vector<32x32xf32>
    %57 = arith.mulf %46, %56 : vector<32x32xf32>
    %c216 = arith.constant 216 : index
    %c0_24 = arith.constant 0 : index
    %58 = vector.load %arg1[%c216, %c0_24] : memref<608x128xf32, #tpu.memory_space<vmem>>, vector<32x32xf32>
    %59 = arith.addf %57, %58 : vector<32x32xf32>
    %c248 = arith.constant 248 : index
    %c0_25 = arith.constant 0 : index
    %60 = vector.load %arg1[%c248, %c0_25] : memref<608x128xf32, #tpu.memory_space<vmem>>, vector<32x4xf32>
    %c280 = arith.constant 280 : index
    %c0_26 = arith.constant 0 : index
    %61 = vector.load %arg1[%c280, %c0_26] : memref<608x128xf32, #tpu.memory_space<vmem>>, vector<4x32xf32>
    %c464 = arith.constant 464 : index
    %c0_27 = arith.constant 0 : index
    %62 = vector.load %arg1[%c464, %c0_27] : memref<608x128xf32, #tpu.memory_space<vmem>>, vector<8x128xf32>
    %63 = vector.extract_strided_slice %62 {offsets = [0, 0], sizes = [1, 32], strides = [1, 1]} : vector<8x128xf32> to vector<1x32xf32>
    %64 = vector.extract_strided_slice %62 {offsets = [1, 0], sizes = [1, 32], strides = [1, 1]} : vector<8x128xf32> to vector<1x32xf32>
    %cst_28 = arith.constant dense<0.000000e+00> : vector<32xf32>
    %65 = vector.multi_reduction <add>, %59, %cst_28 [1] : vector<32x32xf32> to vector<32xf32>
    %66 = vector.shape_cast %65 : vector<32xf32> to vector<32x1xf32>
    %cst_29 = arith.constant 3.200000e+01 : f32
    %67 = vector.broadcast %cst_29 : f32 to vector<32x1xf32>
    %68 = arith.divf %66, %67 : vector<32x1xf32>
    %69 = vector.broadcast %68 : vector<32x1xf32> to vector<32x32xf32>
    %70 = arith.subf %59, %69 : vector<32x32xf32>
    %71 = arith.mulf %70, %70 : vector<32x32xf32>
    %cst_30 = arith.constant dense<0.000000e+00> : vector<32xf32>
    %72 = vector.multi_reduction <add>, %71, %cst_30 [1] : vector<32x32xf32> to vector<32xf32>
    %73 = vector.shape_cast %72 : vector<32xf32> to vector<32x1xf32>
    %cst_31 = arith.constant 3.200000e+01 : f32
    %74 = vector.broadcast %cst_31 : f32 to vector<32x1xf32>
    %75 = arith.divf %73, %74 : vector<32x1xf32>
    %76 = vector.broadcast %68 : vector<32x1xf32> to vector<32x32xf32>
    %77 = arith.subf %59, %76 : vector<32x32xf32>
    %cst_32 = arith.constant 9.99999974E-6 : f32
    %78 = vector.broadcast %cst_32 : f32 to vector<32x1xf32>
    %79 = arith.addf %75, %78 : vector<32x1xf32>
    %80 = math.rsqrt %79 : vector<32x1xf32>
    %81 = vector.broadcast %80 : vector<32x1xf32> to vector<32x32xf32>
    %82 = arith.mulf %77, %81 : vector<32x32xf32>
    %83 = vector.broadcast %63 : vector<1x32xf32> to vector<32x32xf32>
    %84 = arith.mulf %82, %83 : vector<32x32xf32>
    %85 = vector.broadcast %64 : vector<1x32xf32> to vector<32x32xf32>
    %86 = arith.addf %84, %85 : vector<32x32xf32>
    %c336 = arith.constant 336 : index
    %c0_33 = arith.constant 0 : index
    %87 = vector.load %arg1[%c336, %c0_33] : memref<608x128xf32, #tpu.memory_space<vmem>>, vector<32x96xf32>
    %cst_34 = arith.constant dense<0.000000e+00> : vector<32x96xf32>
    %88 = tpu.matmul %86, %87, %cst_34 {dimension_numbers = #tpu.dot_dimension_numbers<[1], [0], [0], [1], [0, 0, 1, 1], [], []>} : vector<32x32xf32>, vector<32x96xf32>, vector<32x96xf32> -> vector<32x96xf32>
    %89 = vector.extract_strided_slice %62 {offsets = [2, 0], sizes = [1, 96], strides = [1, 1]} : vector<8x128xf32> to vector<1x96xf32>
    %90 = vector.broadcast %89 : vector<1x96xf32> to vector<32x96xf32>
    %91 = arith.addf %88, %90 : vector<32x96xf32>
    %92 = vector.extract_strided_slice %91 {offsets = [0, 0], sizes = [32, 32], strides = [1, 1]} : vector<32x96xf32> to vector<32x32xf32>
    %93 = vector.extract_strided_slice %91 {offsets = [0, 32], sizes = [32, 32], strides = [1, 1]} : vector<32x96xf32> to vector<32x32xf32>
    %94 = vector.extract_strided_slice %91 {offsets = [0, 64], sizes = [32, 32], strides = [1, 1]} : vector<32x96xf32> to vector<32x32xf32>
    %95 = vector.extract_strided_slice %93 {offsets = [0, 0], sizes = [16, 32], strides = [1, 1]} : vector<32x32xf32> to vector<16x32xf32>
    %96 = vector.extract_strided_slice %93 {offsets = [0, 0], sizes = [16, 32], strides = [1, 1]} : vector<32x32xf32> to vector<16x32xf32>
    %97 = tpu.concatenate %95, %96 in 0 : vector<16x32xf32>, vector<16x32xf32> -> vector<32x32xf32>
    %98 = vector.extract_strided_slice %93 {offsets = [16, 0], sizes = [16, 32], strides = [1, 1]} : vector<32x32xf32> to vector<16x32xf32>
    %99 = vector.extract_strided_slice %93 {offsets = [16, 0], sizes = [16, 32], strides = [1, 1]} : vector<32x32xf32> to vector<16x32xf32>
    %100 = tpu.concatenate %98, %99 in 0 : vector<16x32xf32>, vector<16x32xf32> -> vector<32x32xf32>
    %101 = vector.extract_strided_slice %94 {offsets = [0, 0], sizes = [16, 32], strides = [1, 1]} : vector<32x32xf32> to vector<16x32xf32>
    %102 = vector.extract_strided_slice %94 {offsets = [0, 0], sizes = [16, 32], strides = [1, 1]} : vector<32x32xf32> to vector<16x32xf32>
    %103 = tpu.concatenate %101, %102 in 0 : vector<16x32xf32>, vector<16x32xf32> -> vector<32x32xf32>
    %104 = vector.extract_strided_slice %94 {offsets = [16, 0], sizes = [16, 32], strides = [1, 1]} : vector<32x32xf32> to vector<16x32xf32>
    %105 = vector.extract_strided_slice %94 {offsets = [16, 0], sizes = [16, 32], strides = [1, 1]} : vector<32x32xf32> to vector<16x32xf32>
    %106 = tpu.concatenate %104, %105 in 0 : vector<16x32xf32>, vector<16x32xf32> -> vector<32x32xf32>
    %107 = arith.mulf %92, %97 : vector<32x32xf32>
    %108 = arith.mulf %92, %100 : vector<32x32xf32>
    %109 = tpu.concatenate %107, %108 in 0 : vector<32x32xf32>, vector<32x32xf32> -> vector<64x32xf32>
    %cst_35 = arith.constant dense<0.000000e+00> : vector<64x4xf32>
    %110 = tpu.matmul %109, %60, %cst_35 {dimension_numbers = #tpu.dot_dimension_numbers<[1], [0], [0], [1], [0, 0, 1, 1], [], []>} : vector<64x32xf32>, vector<32x4xf32>, vector<64x4xf32> -> vector<64x4xf32>
    %111 = vector.extract_strided_slice %110 {offsets = [0, 0], sizes = [32, 4], strides = [1, 1]} : vector<64x4xf32> to vector<32x4xf32>
    %112 = vector.extract_strided_slice %110 {offsets = [32, 0], sizes = [32, 4], strides = [1, 1]} : vector<64x4xf32> to vector<32x4xf32>
    %113 = arith.subf %112, %111 : vector<32x4xf32>
    %114 = math.exp %113 : vector<32x4xf32>
    %cst_36 = arith.constant 1.000000e+00 : f32
    %115 = vector.broadcast %cst_36 : f32 to vector<32x4xf32>
    %116 = arith.addf %115, %114 : vector<32x4xf32>
    %117 = tpu.reciprocal %116 {approx = true} : vector<32x4xf32> -> vector<32x4xf32>
    %cst_37 = arith.constant 1.000000e+00 : f32
    %118 = vector.broadcast %cst_37 : f32 to vector<32x4xf32>
    %119 = arith.subf %118, %117 : vector<32x4xf32>
    %120 = tpu.concatenate %117, %119 in 0 : vector<32x4xf32>, vector<32x4xf32> -> vector<64x4xf32>
    %cst_38 = arith.constant dense<0.000000e+00> : vector<64x32xf32>
    %121 = tpu.matmul %120, %61, %cst_38 {dimension_numbers = #tpu.dot_dimension_numbers<[1], [0], [0], [1], [0, 0, 1, 1], [], []>} : vector<64x4xf32>, vector<4x32xf32>, vector<64x32xf32> -> vector<64x32xf32>
    %122 = vector.extract_strided_slice %121 {offsets = [0, 0], sizes = [32, 32], strides = [1, 1]} : vector<64x32xf32> to vector<32x32xf32>
    %123 = arith.mulf %122, %103 : vector<32x32xf32>
    %124 = vector.extract_strided_slice %121 {offsets = [32, 0], sizes = [32, 32], strides = [1, 1]} : vector<64x32xf32> to vector<32x32xf32>
    %125 = arith.mulf %124, %106 : vector<32x32xf32>
    %126 = arith.addf %123, %125 : vector<32x32xf32>
    %c368 = arith.constant 368 : index
    %c0_39 = arith.constant 0 : index
    %127 = vector.load %arg1[%c368, %c0_39] : memref<608x128xf32, #tpu.memory_space<vmem>>, vector<32x32xf32>
    %cst_40 = arith.constant dense<0.000000e+00> : vector<32x32xf32>
    %128 = tpu.matmul %126, %127, %cst_40 {dimension_numbers = #tpu.dot_dimension_numbers<[1], [0], [0], [1], [0, 0, 1, 1], [], []>} : vector<32x32xf32>, vector<32x32xf32>, vector<32x32xf32> -> vector<32x32xf32>
    %129 = arith.addf %86, %128 : vector<32x32xf32>
    %130 = vector.extract_strided_slice %62 {offsets = [3, 0], sizes = [1, 32], strides = [1, 1]} : vector<8x128xf32> to vector<1x32xf32>
    %131 = vector.broadcast %130 : vector<1x32xf32> to vector<32x32xf32>
    %132 = arith.addf %129, %131 : vector<32x32xf32>
    %133 = vector.extract_strided_slice %62 {offsets = [4, 0], sizes = [1, 32], strides = [1, 1]} : vector<8x128xf32> to vector<1x32xf32>
    %134 = vector.extract_strided_slice %62 {offsets = [5, 0], sizes = [1, 32], strides = [1, 1]} : vector<8x128xf32> to vector<1x32xf32>
    %cst_41 = arith.constant dense<0.000000e+00> : vector<32xf32>
    %135 = vector.multi_reduction <add>, %132, %cst_41 [1] : vector<32x32xf32> to vector<32xf32>
    %136 = vector.shape_cast %135 : vector<32xf32> to vector<32x1xf32>
    %cst_42 = arith.constant 3.200000e+01 : f32
    %137 = vector.broadcast %cst_42 : f32 to vector<32x1xf32>
    %138 = arith.divf %136, %137 : vector<32x1xf32>
    %139 = vector.broadcast %138 : vector<32x1xf32> to vector<32x32xf32>
    %140 = arith.subf %132, %139 : vector<32x32xf32>
    %141 = arith.mulf %140, %140 : vector<32x32xf32>
    %cst_43 = arith.constant dense<0.000000e+00> : vector<32xf32>
    %142 = vector.multi_reduction <add>, %141, %cst_43 [1] : vector<32x32xf32> to vector<32xf32>
    %143 = vector.shape_cast %142 : vector<32xf32> to vector<32x1xf32>
    %cst_44 = arith.constant 3.200000e+01 : f32
    %144 = vector.broadcast %cst_44 : f32 to vector<32x1xf32>
    %145 = arith.divf %143, %144 : vector<32x1xf32>
    %146 = vector.broadcast %138 : vector<32x1xf32> to vector<32x32xf32>
    %147 = arith.subf %132, %146 : vector<32x32xf32>
    %cst_45 = arith.constant 9.99999974E-6 : f32
    %148 = vector.broadcast %cst_45 : f32 to vector<32x1xf32>
    %149 = arith.addf %145, %148 : vector<32x1xf32>
    %150 = math.rsqrt %149 : vector<32x1xf32>
    %151 = vector.broadcast %150 : vector<32x1xf32> to vector<32x32xf32>
    %152 = arith.mulf %147, %151 : vector<32x32xf32>
    %153 = vector.broadcast %133 : vector<1x32xf32> to vector<32x32xf32>
    %154 = arith.mulf %152, %153 : vector<32x32xf32>
    %155 = vector.broadcast %134 : vector<1x32xf32> to vector<32x32xf32>
    %156 = arith.addf %154, %155 : vector<32x32xf32>
    %c400 = arith.constant 400 : index
    %c0_46 = arith.constant 0 : index
    %157 = vector.load %arg1[%c400, %c0_46] : memref<608x128xf32, #tpu.memory_space<vmem>>, vector<32x32xf32>
    %cst_47 = arith.constant dense<0.000000e+00> : vector<32x32xf32>
    %158 = tpu.matmul %156, %157, %cst_47 {dimension_numbers = #tpu.dot_dimension_numbers<[1], [0], [0], [1], [0, 0, 1, 1], [], []>} : vector<32x32xf32>, vector<32x32xf32>, vector<32x32xf32> -> vector<32x32xf32>
    %159 = vector.extract_strided_slice %62 {offsets = [6, 0], sizes = [1, 32], strides = [1, 1]} : vector<8x128xf32> to vector<1x32xf32>
    %160 = vector.broadcast %159 : vector<1x32xf32> to vector<32x32xf32>
    %161 = arith.addf %158, %160 : vector<32x32xf32>
    %cst_48 = arith.constant 5.000000e-01 : f32
    %162 = vector.broadcast %cst_48 : f32 to vector<32x32xf32>
    %163 = arith.mulf %162, %161 : vector<32x32xf32>
    %cst_49 = arith.constant 4.471500e-02 : f32
    %164 = vector.broadcast %cst_49 : f32 to vector<32x32xf32>
    %165 = arith.mulf %164, %161 : vector<32x32xf32>
    %166 = arith.mulf %165, %161 : vector<32x32xf32>
    %167 = arith.mulf %166, %161 : vector<32x32xf32>
    %168 = arith.addf %161, %167 : vector<32x32xf32>
    %cst_50 = arith.constant 0.797884583 : f32
    %169 = vector.broadcast %cst_50 : f32 to vector<32x32xf32>
    %170 = arith.mulf %169, %168 : vector<32x32xf32>
    %171 = math.tanh %170 : vector<32x32xf32>
    %cst_51 = arith.constant 1.000000e+00 : f32
    %172 = vector.broadcast %cst_51 : f32 to vector<32x32xf32>
    %173 = arith.addf %172, %171 : vector<32x32xf32>
    %174 = arith.mulf %163, %173 : vector<32x32xf32>
    %c432 = arith.constant 432 : index
    %c0_52 = arith.constant 0 : index
    %175 = vector.load %arg1[%c432, %c0_52] : memref<608x128xf32, #tpu.memory_space<vmem>>, vector<32x32xf32>
    %cst_53 = arith.constant dense<0.000000e+00> : vector<32x32xf32>
    %176 = tpu.matmul %174, %175, %cst_53 {dimension_numbers = #tpu.dot_dimension_numbers<[1], [0], [0], [1], [0, 0, 1, 1], [], []>} : vector<32x32xf32>, vector<32x32xf32>, vector<32x32xf32> -> vector<32x32xf32>
    %177 = vector.extract_strided_slice %62 {offsets = [7, 0], sizes = [1, 32], strides = [1, 1]} : vector<8x128xf32> to vector<1x32xf32>
    %178 = vector.broadcast %177 : vector<1x32xf32> to vector<32x32xf32>
    %179 = arith.addf %176, %178 : vector<32x32xf32>
    %180 = arith.addf %156, %179 : vector<32x32xf32>
    %c600 = arith.constant 600 : index
    %c0_54 = arith.constant 0 : index
    %181 = vector.load %arg1[%c600, %c0_54] : memref<608x128xf32, #tpu.memory_space<vmem>>, vector<8x128xf32>
    %182 = vector.extract_strided_slice %181 {offsets = [0, 0], sizes = [1, 32], strides = [1, 1]} : vector<8x128xf32> to vector<1x32xf32>
    %183 = vector.extract_strided_slice %181 {offsets = [1, 0], sizes = [1, 32], strides = [1, 1]} : vector<8x128xf32> to vector<1x32xf32>
    %cst_55 = arith.constant dense<0.000000e+00> : vector<32xf32>
    %184 = vector.multi_reduction <add>, %180, %cst_55 [1] : vector<32x32xf32> to vector<32xf32>
    %185 = vector.shape_cast %184 : vector<32xf32> to vector<32x1xf32>
    %cst_56 = arith.constant 3.200000e+01 : f32
    %186 = vector.broadcast %cst_56 : f32 to vector<32x1xf32>
    %187 = arith.divf %185, %186 : vector<32x1xf32>
    %188 = vector.broadcast %187 : vector<32x1xf32> to vector<32x32xf32>
    %189 = arith.subf %180, %188 : vector<32x32xf32>
    %190 = arith.mulf %189, %189 : vector<32x32xf32>
    %cst_57 = arith.constant dense<0.000000e+00> : vector<32xf32>
    %191 = vector.multi_reduction <add>, %190, %cst_57 [1] : vector<32x32xf32> to vector<32xf32>
    %192 = vector.shape_cast %191 : vector<32xf32> to vector<32x1xf32>
    %cst_58 = arith.constant 3.200000e+01 : f32
    %193 = vector.broadcast %cst_58 : f32 to vector<32x1xf32>
    %194 = arith.divf %192, %193 : vector<32x1xf32>
    %195 = vector.broadcast %187 : vector<32x1xf32> to vector<32x32xf32>
    %196 = arith.subf %180, %195 : vector<32x32xf32>
    %cst_59 = arith.constant 9.99999974E-6 : f32
    %197 = vector.broadcast %cst_59 : f32 to vector<32x1xf32>
    %198 = arith.addf %194, %197 : vector<32x1xf32>
    %199 = math.rsqrt %198 : vector<32x1xf32>
    %200 = vector.broadcast %199 : vector<32x1xf32> to vector<32x32xf32>
    %201 = arith.mulf %196, %200 : vector<32x32xf32>
    %202 = vector.broadcast %182 : vector<1x32xf32> to vector<32x32xf32>
    %203 = arith.mulf %201, %202 : vector<32x32xf32>
    %204 = vector.broadcast %183 : vector<1x32xf32> to vector<32x32xf32>
    %205 = arith.addf %203, %204 : vector<32x32xf32>
    %c472 = arith.constant 472 : index
    %c0_60 = arith.constant 0 : index
    %206 = vector.load %arg1[%c472, %c0_60] : memref<608x128xf32, #tpu.memory_space<vmem>>, vector<32x96xf32>
    %cst_61 = arith.constant dense<0.000000e+00> : vector<32x96xf32>
    %207 = tpu.matmul %205, %206, %cst_61 {dimension_numbers = #tpu.dot_dimension_numbers<[1], [0], [0], [1], [0, 0, 1, 1], [], []>} : vector<32x32xf32>, vector<32x96xf32>, vector<32x96xf32> -> vector<32x96xf32>
    %208 = vector.extract_strided_slice %181 {offsets = [2, 0], sizes = [1, 96], strides = [1, 1]} : vector<8x128xf32> to vector<1x96xf32>
    %209 = vector.broadcast %208 : vector<1x96xf32> to vector<32x96xf32>
    %210 = arith.addf %207, %209 : vector<32x96xf32>
    %211 = vector.extract_strided_slice %210 {offsets = [0, 0], sizes = [32, 32], strides = [1, 1]} : vector<32x96xf32> to vector<32x32xf32>
    %212 = vector.extract_strided_slice %210 {offsets = [0, 32], sizes = [32, 32], strides = [1, 1]} : vector<32x96xf32> to vector<32x32xf32>
    %213 = vector.extract_strided_slice %210 {offsets = [0, 64], sizes = [32, 32], strides = [1, 1]} : vector<32x96xf32> to vector<32x32xf32>
    %214 = vector.extract_strided_slice %212 {offsets = [0, 0], sizes = [16, 32], strides = [1, 1]} : vector<32x32xf32> to vector<16x32xf32>
    %215 = vector.extract_strided_slice %212 {offsets = [0, 0], sizes = [16, 32], strides = [1, 1]} : vector<32x32xf32> to vector<16x32xf32>
    %216 = tpu.concatenate %214, %215 in 0 : vector<16x32xf32>, vector<16x32xf32> -> vector<32x32xf32>
    %217 = vector.extract_strided_slice %212 {offsets = [16, 0], sizes = [16, 32], strides = [1, 1]} : vector<32x32xf32> to vector<16x32xf32>
    %218 = vector.extract_strided_slice %212 {offsets = [16, 0], sizes = [16, 32], strides = [1, 1]} : vector<32x32xf32> to vector<16x32xf32>
    %219 = tpu.concatenate %217, %218 in 0 : vector<16x32xf32>, vector<16x32xf32> -> vector<32x32xf32>
    %220 = vector.extract_strided_slice %213 {offsets = [0, 0], sizes = [16, 32], strides = [1, 1]} : vector<32x32xf32> to vector<16x32xf32>
    %221 = vector.extract_strided_slice %213 {offsets = [0, 0], sizes = [16, 32], strides = [1, 1]} : vector<32x32xf32> to vector<16x32xf32>
    %222 = tpu.concatenate %220, %221 in 0 : vector<16x32xf32>, vector<16x32xf32> -> vector<32x32xf32>
    %223 = vector.extract_strided_slice %213 {offsets = [16, 0], sizes = [16, 32], strides = [1, 1]} : vector<32x32xf32> to vector<16x32xf32>
    %224 = vector.extract_strided_slice %213 {offsets = [16, 0], sizes = [16, 32], strides = [1, 1]} : vector<32x32xf32> to vector<16x32xf32>
    %225 = tpu.concatenate %223, %224 in 0 : vector<16x32xf32>, vector<16x32xf32> -> vector<32x32xf32>
    %226 = arith.mulf %211, %216 : vector<32x32xf32>
    %227 = arith.mulf %211, %219 : vector<32x32xf32>
    %228 = tpu.concatenate %226, %227 in 0 : vector<32x32xf32>, vector<32x32xf32> -> vector<64x32xf32>
    %cst_62 = arith.constant dense<0.000000e+00> : vector<64x4xf32>
    %229 = tpu.matmul %228, %60, %cst_62 {dimension_numbers = #tpu.dot_dimension_numbers<[1], [0], [0], [1], [0, 0, 1, 1], [], []>} : vector<64x32xf32>, vector<32x4xf32>, vector<64x4xf32> -> vector<64x4xf32>
    %230 = vector.extract_strided_slice %229 {offsets = [0, 0], sizes = [32, 4], strides = [1, 1]} : vector<64x4xf32> to vector<32x4xf32>
    %231 = vector.extract_strided_slice %229 {offsets = [32, 0], sizes = [32, 4], strides = [1, 1]} : vector<64x4xf32> to vector<32x4xf32>
    %232 = arith.subf %231, %230 : vector<32x4xf32>
    %233 = math.exp %232 : vector<32x4xf32>
    %cst_63 = arith.constant 1.000000e+00 : f32
    %234 = vector.broadcast %cst_63 : f32 to vector<32x4xf32>
    %235 = arith.addf %234, %233 : vector<32x4xf32>
    %236 = tpu.reciprocal %235 {approx = true} : vector<32x4xf32> -> vector<32x4xf32>
    %cst_64 = arith.constant 1.000000e+00 : f32
    %237 = vector.broadcast %cst_64 : f32 to vector<32x4xf32>
    %238 = arith.subf %237, %236 : vector<32x4xf32>
    %239 = tpu.concatenate %236, %238 in 0 : vector<32x4xf32>, vector<32x4xf32> -> vector<64x4xf32>
    %cst_65 = arith.constant dense<0.000000e+00> : vector<64x32xf32>
    %240 = tpu.matmul %239, %61, %cst_65 {dimension_numbers = #tpu.dot_dimension_numbers<[1], [0], [0], [1], [0, 0, 1, 1], [], []>} : vector<64x4xf32>, vector<4x32xf32>, vector<64x32xf32> -> vector<64x32xf32>
    %241 = vector.extract_strided_slice %240 {offsets = [0, 0], sizes = [32, 32], strides = [1, 1]} : vector<64x32xf32> to vector<32x32xf32>
    %242 = arith.mulf %241, %222 : vector<32x32xf32>
    %243 = vector.extract_strided_slice %240 {offsets = [32, 0], sizes = [32, 32], strides = [1, 1]} : vector<64x32xf32> to vector<32x32xf32>
    %244 = arith.mulf %243, %225 : vector<32x32xf32>
    %245 = arith.addf %242, %244 : vector<32x32xf32>
    %c504 = arith.constant 504 : index
    %c0_66 = arith.constant 0 : index
    %246 = vector.load %arg1[%c504, %c0_66] : memref<608x128xf32, #tpu.memory_space<vmem>>, vector<32x32xf32>
    %cst_67 = arith.constant dense<0.000000e+00> : vector<32x32xf32>
    %247 = tpu.matmul %245, %246, %cst_67 {dimension_numbers = #tpu.dot_dimension_numbers<[1], [0], [0], [1], [0, 0, 1, 1], [], []>} : vector<32x32xf32>, vector<32x32xf32>, vector<32x32xf32> -> vector<32x32xf32>
    %248 = arith.addf %205, %247 : vector<32x32xf32>
    %249 = vector.extract_strided_slice %181 {offsets = [3, 0], sizes = [1, 32], strides = [1, 1]} : vector<8x128xf32> to vector<1x32xf32>
    %250 = vector.broadcast %249 : vector<1x32xf32> to vector<32x32xf32>
    %251 = arith.addf %248, %250 : vector<32x32xf32>
    %252 = vector.extract_strided_slice %181 {offsets = [4, 0], sizes = [1, 32], strides = [1, 1]} : vector<8x128xf32> to vector<1x32xf32>
    %253 = vector.extract_strided_slice %181 {offsets = [5, 0], sizes = [1, 32], strides = [1, 1]} : vector<8x128xf32> to vector<1x32xf32>
    %cst_68 = arith.constant dense<0.000000e+00> : vector<32xf32>
    %254 = vector.multi_reduction <add>, %251, %cst_68 [1] : vector<32x32xf32> to vector<32xf32>
    %255 = vector.shape_cast %254 : vector<32xf32> to vector<32x1xf32>
    %cst_69 = arith.constant 3.200000e+01 : f32
    %256 = vector.broadcast %cst_69 : f32 to vector<32x1xf32>
    %257 = arith.divf %255, %256 : vector<32x1xf32>
    %258 = vector.broadcast %257 : vector<32x1xf32> to vector<32x32xf32>
    %259 = arith.subf %251, %258 : vector<32x32xf32>
    %260 = arith.mulf %259, %259 : vector<32x32xf32>
    %cst_70 = arith.constant dense<0.000000e+00> : vector<32xf32>
    %261 = vector.multi_reduction <add>, %260, %cst_70 [1] : vector<32x32xf32> to vector<32xf32>
    %262 = vector.shape_cast %261 : vector<32xf32> to vector<32x1xf32>
    %cst_71 = arith.constant 3.200000e+01 : f32
    %263 = vector.broadcast %cst_71 : f32 to vector<32x1xf32>
    %264 = arith.divf %262, %263 : vector<32x1xf32>
    %265 = vector.broadcast %257 : vector<32x1xf32> to vector<32x32xf32>
    %266 = arith.subf %251, %265 : vector<32x32xf32>
    %cst_72 = arith.constant 9.99999974E-6 : f32
    %267 = vector.broadcast %cst_72 : f32 to vector<32x1xf32>
    %268 = arith.addf %264, %267 : vector<32x1xf32>
    %269 = math.rsqrt %268 : vector<32x1xf32>
    %270 = vector.broadcast %269 : vector<32x1xf32> to vector<32x32xf32>
    %271 = arith.mulf %266, %270 : vector<32x32xf32>
    %272 = vector.broadcast %252 : vector<1x32xf32> to vector<32x32xf32>
    %273 = arith.mulf %271, %272 : vector<32x32xf32>
    %274 = vector.broadcast %253 : vector<1x32xf32> to vector<32x32xf32>
    %275 = arith.addf %273, %274 : vector<32x32xf32>
    %c536 = arith.constant 536 : index
    %c0_73 = arith.constant 0 : index
    %276 = vector.load %arg1[%c536, %c0_73] : memref<608x128xf32, #tpu.memory_space<vmem>>, vector<32x32xf32>
    %cst_74 = arith.constant dense<0.000000e+00> : vector<32x32xf32>
    %277 = tpu.matmul %275, %276, %cst_74 {dimension_numbers = #tpu.dot_dimension_numbers<[1], [0], [0], [1], [0, 0, 1, 1], [], []>} : vector<32x32xf32>, vector<32x32xf32>, vector<32x32xf32> -> vector<32x32xf32>
    %278 = vector.extract_strided_slice %181 {offsets = [6, 0], sizes = [1, 32], strides = [1, 1]} : vector<8x128xf32> to vector<1x32xf32>
    %279 = vector.broadcast %278 : vector<1x32xf32> to vector<32x32xf32>
    %280 = arith.addf %277, %279 : vector<32x32xf32>
    %cst_75 = arith.constant 5.000000e-01 : f32
    %281 = vector.broadcast %cst_75 : f32 to vector<32x32xf32>
    %282 = arith.mulf %281, %280 : vector<32x32xf32>
    %cst_76 = arith.constant 4.471500e-02 : f32
    %283 = vector.broadcast %cst_76 : f32 to vector<32x32xf32>
    %284 = arith.mulf %283, %280 : vector<32x32xf32>
    %285 = arith.mulf %284, %280 : vector<32x32xf32>
    %286 = arith.mulf %285, %280 : vector<32x32xf32>
    %287 = arith.addf %280, %286 : vector<32x32xf32>
    %cst_77 = arith.constant 0.797884583 : f32
    %288 = vector.broadcast %cst_77 : f32 to vector<32x32xf32>
    %289 = arith.mulf %288, %287 : vector<32x32xf32>
    %290 = math.tanh %289 : vector<32x32xf32>
    %cst_78 = arith.constant 1.000000e+00 : f32
    %291 = vector.broadcast %cst_78 : f32 to vector<32x32xf32>
    %292 = arith.addf %291, %290 : vector<32x32xf32>
    %293 = arith.mulf %282, %292 : vector<32x32xf32>
    %c568 = arith.constant 568 : index
    %c0_79 = arith.constant 0 : index
    %294 = vector.load %arg1[%c568, %c0_79] : memref<608x128xf32, #tpu.memory_space<vmem>>, vector<32x32xf32>
    %cst_80 = arith.constant dense<0.000000e+00> : vector<32x32xf32>
    %295 = tpu.matmul %293, %294, %cst_80 {dimension_numbers = #tpu.dot_dimension_numbers<[1], [0], [0], [1], [0, 0, 1, 1], [], []>} : vector<32x32xf32>, vector<32x32xf32>, vector<32x32xf32> -> vector<32x32xf32>
    %296 = vector.extract_strided_slice %181 {offsets = [7, 0], sizes = [1, 32], strides = [1, 1]} : vector<8x128xf32> to vector<1x32xf32>
    %297 = vector.broadcast %296 : vector<1x32xf32> to vector<32x32xf32>
    %298 = arith.addf %295, %297 : vector<32x32xf32>
    %299 = arith.addf %275, %298 : vector<32x32xf32>
    %300 = vector.extract_strided_slice %2 {offsets = [2, 0], sizes = [1, 32], strides = [1, 1]} : vector<4x32xf32> to vector<1x32xf32>
    %301 = vector.extract_strided_slice %2 {offsets = [3, 0], sizes = [1, 32], strides = [1, 1]} : vector<4x32xf32> to vector<1x32xf32>
    %cst_81 = arith.constant dense<0.000000e+00> : vector<32xf32>
    %302 = vector.multi_reduction <add>, %299, %cst_81 [1] : vector<32x32xf32> to vector<32xf32>
    %303 = vector.shape_cast %302 : vector<32xf32> to vector<32x1xf32>
    %cst_82 = arith.constant 3.200000e+01 : f32
    %304 = vector.broadcast %cst_82 : f32 to vector<32x1xf32>
    %305 = arith.divf %303, %304 : vector<32x1xf32>
    %306 = vector.broadcast %305 : vector<32x1xf32> to vector<32x32xf32>
    %307 = arith.subf %299, %306 : vector<32x32xf32>
    %308 = arith.mulf %307, %307 : vector<32x32xf32>
    %cst_83 = arith.constant dense<0.000000e+00> : vector<32xf32>
    %309 = vector.multi_reduction <add>, %308, %cst_83 [1] : vector<32x32xf32> to vector<32xf32>
    %310 = vector.shape_cast %309 : vector<32xf32> to vector<32x1xf32>
    %cst_84 = arith.constant 3.200000e+01 : f32
    %311 = vector.broadcast %cst_84 : f32 to vector<32x1xf32>
    %312 = arith.divf %310, %311 : vector<32x1xf32>
    %313 = vector.broadcast %305 : vector<32x1xf32> to vector<32x32xf32>
    %314 = arith.subf %299, %313 : vector<32x32xf32>
    %cst_85 = arith.constant 9.99999974E-6 : f32
    %315 = vector.broadcast %cst_85 : f32 to vector<32x1xf32>
    %316 = arith.addf %312, %315 : vector<32x1xf32>
    %317 = math.rsqrt %316 : vector<32x1xf32>
    %318 = vector.broadcast %317 : vector<32x1xf32> to vector<32x32xf32>
    %319 = arith.mulf %314, %318 : vector<32x32xf32>
    %320 = vector.broadcast %300 : vector<1x32xf32> to vector<32x32xf32>
    %321 = arith.mulf %319, %320 : vector<32x32xf32>
    %322 = vector.broadcast %301 : vector<1x32xf32> to vector<32x32xf32>
    %323 = arith.addf %321, %322 : vector<32x32xf32>
    %c288 = arith.constant 288 : index
    %c0_86 = arith.constant 0 : index
    %324 = vector.load %arg1[%c288, %c0_86] : memref<608x128xf32, #tpu.memory_space<vmem>>, vector<8x32xf32>
    %cst_87 = arith.constant dense<0.000000e+00> : vector<8x32xf32>
    %325 = tpu.matmul %324, %323, %cst_87 {dimension_numbers = #tpu.dot_dimension_numbers<[1], [0], [0], [1], [0, 0, 1, 1], [], []>} : vector<8x32xf32>, vector<32x32xf32>, vector<8x32xf32> -> vector<8x32xf32>
    %c296 = arith.constant 296 : index
    %c0_88 = arith.constant 0 : index
    %326 = vector.load %arg1[%c296, %c0_88] : memref<608x128xf32, #tpu.memory_space<vmem>>, vector<32x128xf32>
    %cst_89 = arith.constant dense<0.000000e+00> : vector<8x128xf32>
    %327 = tpu.matmul %325, %326, %cst_89 {dimension_numbers = #tpu.dot_dimension_numbers<[1], [0], [0], [1], [0, 0, 1, 1], [], []>} : vector<8x32xf32>, vector<32x128xf32>, vector<8x128xf32> -> vector<8x128xf32>
    %c328 = arith.constant 328 : index
    %c0_90 = arith.constant 0 : index
    %328 = vector.load %arg1[%c328, %c0_90] : memref<608x128xf32, #tpu.memory_space<vmem>>, vector<1x128xf32>
    %329 = vector.broadcast %328 : vector<1x128xf32> to vector<8x128xf32>
    %330 = arith.addf %327, %329 : vector<8x128xf32>
    %c0_91 = arith.constant 0 : index
    %c0_92 = arith.constant 0 : index
    %331 = vector.load %arg2[%c0_91, %c0_92] : memref<8x128xf32, #tpu.memory_space<vmem>>, vector<8x128xf32>
    tpu.vector_store %arg2[%c0_91, %c0_92], %330 {strides = array<i32>} : memref<8x128xf32, #tpu.memory_space<vmem>>, vector<8x128xf32>,
    return
  }
}

</mosaic_0001>

<llo_original>
// kernel: pallas_forward.1
$region0: #{pallas_forward.1}
  #allocation0 [shape = 'u32[]', space=smem, size = 0x4, offset = 0x4, fixed_abs, tag = 'smem constant byte address 0x4 - core index']
  #allocation1 [shape = 'u32[144,128]{1,0:T(1,128)}', space=vmem, size = 0x12000, scoped, tag = 'internal scratch']
  %s0 = inlined_call_operand.vmem [shape: f32[32,16], index: 0, kind: input, shape index: {}]
  %s1 = inlined_call_operand.hbm [shape: f32[608,128], index: 1, kind: input, shape index: {}]
  %s2 = inlined_call_operand.vmem [shape: f32[8,128], index: 2, kind: output, shape index: {}]
  %s3 = sld [smem:[#allocation0]]
  $region22: #{pallas_forward.1} parent=0
    _
  %s5 = ssub.s32 1, %s3
  %s6 = scalar_select 0, %s5, %s3
  $region1: #{pallas_forward.1} parent=0
    #allocation2 [shape = 'u8[311296]{0}', space=vmem, size = 0x4c000, scoped, tag = 'input window, operand 1, single buffered']
    #allocation3 [shape = 's32[1]{0}', space=sflag, size = 0x4, scoped, tag = 'scoped memory for pallas_forward.1']
    %7 = vsyncpa [#allocation3], 0
    // Predicated region
    $region2: #{pallas_forward.1} parent=1 // pred_check
      _
    $region3: #{pallas_forward.1} parent=1 // pred_check_branch
      %9 = sbr.rel (0) target = $region5
    $region4: #{pallas_forward.1} parent=1 // pred_region
      _
    $region5: #{pallas_forward.1} parent=1 // pred_fallthru
      _
    // Predicated region
    $region6: #{pallas_forward.1} parent=1 // pred_check
      _
    $region7: #{pallas_forward.1} parent=1 // pred_check_branch
      %11 = sbr.rel (0) target = $region9
    $region8: #{pallas_forward.1} parent=1 // pred_region
      %s13 = ssub.s32 9728, 9728
      %14 = vsyncadd [#allocation3], %s13
      %s15 = sshll.u32 [#allocation2], 4
      %s16 = int_to_ptr.vmem [resolvable:$true] %s15
      %21 = dma.hbm_to_vmem [thread:$0]  %s1, 9728, %s16, [#allocation3], 128, 128, 8
    $region9: #{pallas_forward.1} parent=1 // pred_fallthru
      _
    // Predicated region
    $region10: #{pallas_forward.1} parent=1 // pred_check
      _
    $region11: #{pallas_forward.1} parent=1 // pred_check_branch
      %23 = sbr.rel (0) target = $region13
    $region12: #{pallas_forward.1} parent=1 // pred_region
      %24 = dma.done [#allocation3], 9728
    $region13: #{pallas_forward.1} parent=1 // pred_fallthru
      _
    %v25 = vld [vmem:[#allocation2 + $0x90] sm:$0xff]
    %v26 = vld [vmem:[#allocation2 + $0x98] sm:$0xff]
    %v27 = vld [vmem:[#allocation2 + $0xa0] sm:$0xff]
    %v28 = vld [vmem:[#allocation2 + $0xa8] sm:$0xff]
    %v29 = vld [vmem:[#allocation2 + $0xb0] sm:$0xff]
    %v30 = vld [vmem:[#allocation2 + $0xb8] sm:$0xff]
    %v31 = vld [vmem:[#allocation2 + $0xc0] sm:$0xff]
    %v32 = vld [vmem:[#allocation2 + $0xc8] sm:$0xff]
    %v33 = vld [vmem:[#allocation2 + $0xd0] sm:$0xf]
    %v34 = vld [vmem:[%s0] sm:$0xff]
    %v35 = vld [vmem:[%s0 + $0x8] sm:$0xff]
    %v36 = vld [vmem:[%s0 + $0x10] sm:$0xff]
    %v37 = vld [vmem:[%s0 + $0x18] sm:$0xff]
    %v38 = vld [vmem:[#allocation2] sm:$0xff]
    %v39 = vld [vmem:[#allocation2 + $0x8] sm:$0xff]
    %v40 = vld [vmem:[#allocation2 + $0x10] sm:$0xff]
    %v41 = vld [vmem:[#allocation2 + $0x18] sm:$0xff]
    %v42 = vld [vmem:[#allocation2 + $0x20] sm:$0xff]
    %v43 = vld [vmem:[#allocation2 + $0x28] sm:$0xff]
    %vm44 = vcmask 261120
    %v46 = vsel %vm44, %v25, 0
    %v49 = vsel %vm44, %v26, 0
    %v52 = vsel %vm44, %v27, 0
    %v55 = vsel %vm44, %v28, 0
    %57 = vmatprep.subr.mxu0 0.0
    %58 = vmatpush1.msra.mxu0 %v34
    %59 = vmatprep.subr.mxu0 0.0
    %60 = vmatpush1.msra.mxu0 %v35
    %61 = vmatprep.subr.mxu0 0.0
    %62 = vmatpush1.msra.mxu0 %v36
    %63 = vmatprep.subr.mxu0 0.0
    %64 = vmatpush1.msra.mxu0 %v37
    %65 = vmatprep.subr.mxu0 0.0
    %66 = vmatpush1.msra.mxu0 0.0
    %67 = vmatprep.subr.mxu0 0.0
    %68 = vmatpush1.msra.mxu0 0.0
    %69 = vmatprep.subr.mxu0 0.0
    %70 = vmatpush1.msra.mxu0 0.0
    %71 = vmatprep.subr.mxu0 0.0
    %72 = vmatpush1.msra.mxu0 0.0
    %73 = vmatprep.subr.mxu0 0.0
    %74 = vmatpush1.msra.mxu0 0.0
    %75 = vmatprep.subr.mxu0 0.0
    %76 = vmatpush1.msra.mxu0 0.0
    %77 = vmatprep.subr.mxu0 0.0
    %78 = vmatpush1.msra.mxu0 0.0
    %79 = vmatprep.subr.mxu0 0.0
    %80 = vmatpush1.msra.mxu0 0.0
    %81 = vmatprep.subr.mxu0 0.0
    %82 = vmatpush1.msra.mxu0 0.0
    %83 = vmatprep.subr.mxu0 0.0
    %84 = vmatpush1.msra.mxu0 0.0
    %85 = vmatprep.subr.mxu0 0.0
    %86 = vmatpush1.msra.mxu0 0.0
    %87 = vmatprep.subr.mxu0 0.0
    %88 = vmatpush1.msra.mxu0 0.0
    %89 = vmatprep.subr.mxu0 0.0
    %90 = vmatpush1.msra.mxu0 0.0
    %91 = vmatprep.subr.mxu0 0.0
    %92 = vmatpush1.msra.mxu0 0.0
    %93 = vmatprep.subr.mxu0 0.0
    %94 = vmatpush1.msra.mxu0 0.0
    %95 = vmatprep.subr.mxu0 0.0
    %96 = vmatpush1.msra.mxu0 0.0
    %97 = vmatprep.subr.mxu0 0.0
    %98 = vmatpush1.msra.mxu0 0.0
    %99 = vmatprep.subr.mxu0 0.0
    %100 = vmatpush1.msra.mxu0 0.0
    %101 = vmatprep.subr.mxu0 0.0
    %102 = vmatpush1.msra.mxu0 0.0
    %103 = vmatprep.subr.mxu0 0.0
    %104 = vmatpush1.msra.mxu0 0.0
    %105 = vmatprep.subr.mxu0 0.0
    %106 = vmatpush1.msra.mxu0 0.0
    %107 = vmatprep.subr.mxu0 0.0
    %108 = vmatpush1.msra.mxu0 0.0
    %109 = vmatprep.subr.mxu0 0.0
    %110 = vmatpush1.msra.mxu0 0.0
    %111 = vmatprep.subr.mxu0 0.0
    %112 = vmatpush1.msra.mxu0 0.0
    %113 = vmatprep.subr.mxu0 0.0
    %114 = vmatpush1.msra.mxu0 0.0
    %115 = vmatprep.subr.mxu0 0.0
    %116 = vmatpush1.msra.mxu0 0.0
    %117 = vmatprep.subr.mxu0 0.0
    %118 = vmatpush1.msra.mxu0 0.0
    %119 = vmatprep.subr.mxu0 0.0
    %120 = vmatpush1.msra.mxu0 0.0
    %121 = vmatprep.mubr.f32.mxu0 0.0
    %122 = vmatmul.mubr.f32.gmra.mrb[0].mxu0 %v46
    %v123 = vpop.f32.mrb[0].mxu0
    %v124 = vadd.f32 0.0, %v123
    %v125 = vpop.f32.mrb[0].mxu0
    %126 = vmatprep.mubr.f32.mxu0 0.0
    %127 = vmatmul.mubr.f32.gmra.mrb[0].mxu0 %v49
    %v128 = vpop.f32.mrb[0].mxu0
    %v129 = vadd.f32 0.0, %v128
    %v130 = vpop.f32.mrb[0].mxu0
    %131 = vmatprep.mubr.f32.mxu0 0.0
    %132 = vmatmul.mubr.f32.gmra.mrb[0].mxu0 %v52
    %v133 = vpop.f32.mrb[0].mxu0
    %v134 = vadd.f32 0.0, %v133
    %v135 = vpop.f32.mrb[0].mxu0
    %136 = vmatprep.mubr.f32.mxu0 0.0
    %137 = vmatmul.mubr.f32.gmra.mrb[0].mxu0 %v55
    %v138 = vpop.f32.mrb[0].mxu0
    %v139 = vadd.f32 0.0, %v138
    %v140 = vpop.f32.mrb[0].mxu0
    %141 = vdwg.mxu0
    %vm142 = vcmask 130048
    %v144 = vsel %vm142, %v34, 0
    %v147 = vsel %vm142, %v35, 0
    %v150 = vsel %vm142, %v36, 0
    %v153 = vsel %vm142, %v37, 0
    %155 = vmatprep.subr.mxu0 0.0
    %156 = vmatpush1.msra.mxu0 %v40
    %157 = vmatprep.subr.mxu0 0.0
    %158 = vmatpush1.msra.mxu0 %v41
    %159 = vmatprep.subr.mxu0 0.0
    %160 = vmatpush1.msra.mxu0 0.0
    %161 = vmatprep.subr.mxu0 0.0
    %162 = vmatpush1.msra.mxu0 0.0
    %163 = vmatprep.subr.mxu0 0.0
    %164 = vmatpush1.msra.mxu0 0.0
    %165 = vmatprep.subr.mxu0 0.0
    %166 = vmatpush1.msra.mxu0 0.0
    %167 = vmatprep.subr.mxu0 0.0
    %168 = vmatpush1.msra.mxu0 0.0
    %169 = vmatprep.subr.mxu0 0.0
    %170 = vmatpush1.msra.mxu0 0.0
    %171 = vmatprep.subr.mxu0 0.0
    %172 = vmatpush1.msra.mxu0 0.0
    %173 = vmatprep.subr.mxu0 0.0
    %174 = vmatpush1.msra.mxu0 0.0
    %175 = vmatprep.subr.mxu0 0.0
    %176 = vmatpush1.msra.mxu0 0.0
    %177 = vmatprep.subr.mxu0 0.0
    %178 = vmatpush1.msra.mxu0 0.0
    %179 = vmatprep.subr.mxu0 0.0
    %180 = vmatpush1.msra.mxu0 0.0
    %181 = vmatprep.subr.mxu0 0.0
    %182 = vmatpush1.msra.mxu0 0.0
    %183 = vmatprep.subr.mxu0 0.0
    %184 = vmatpush1.msra.mxu0 0.0
    %185 = vmatprep.subr.mxu0 0.0
    %186 = vmatpush1.msra.mxu0 0.0
    %187 = vmatprep.subr.mxu0 0.0
    %188 = vmatpush1.msra.mxu0 0.0
    %189 = vmatprep.subr.mxu0 0.0
    %190 = vmatpush1.msra.mxu0 0.0
    %191 = vmatprep.subr.mxu0 0.0
    %192 = vmatpush1.msra.mxu0 0.0
    %193 = vmatprep.subr.mxu0 0.0
    %194 = vmatpush1.msra.mxu0 0.0
    %195 = vmatprep.subr.mxu0 0.0
    %196 = vmatpush1.msra.mxu0 0.0
    %197 = vmatprep.subr.mxu0 0.0
    %198 = vmatpush1.msra.mxu0 0.0
    %199 = vmatprep.subr.mxu0 0.0
    %200 = vmatpush1.msra.mxu0 0.0
    %201 = vmatprep.subr.mxu0 0.0
    %202 = vmatpush1.msra.mxu0 0.0
    %203 = vmatprep.subr.mxu0 0.0
    %204 = vmatpush1.msra.mxu0 0.0
    %205 = vmatprep.subr.mxu0 0.0
    %206 = vmatpush1.msra.mxu0 0.0
    %207 = vmatprep.subr.mxu0 0.0
    %208 = vmatpush1.msra.mxu0 0.0
    %209 = vmatprep.subr.mxu0 0.0
    %210 = vmatpush1.msra.mxu0 0.0
    %211 = vmatprep.subr.mxu0 0.0
    %212 = vmatpush1.msra.mxu0 0.0
    %213 = vmatprep.subr.mxu0 0.0
    %214 = vmatpush1.msra.mxu0 0.0
    %215 = vmatprep.subr.mxu0 0.0
    %216 = vmatpush1.msra.mxu0 0.0
    %217 = vmatprep.subr.mxu0 0.0
    %218 = vmatpush1.msra.mxu0 0.0
    %219 = vmatprep.mubr.f32.mxu0 0.0
    %220 = vmatmul.mubr.f32.gmra.mrb[0].mxu0 %v144
    %v221 = vpop.f32.mrb[0].mxu0
    %v222 = vadd.f32 0.0, %v221
    %v223 = vpop.f32.mrb[0].mxu0
    %224 = vmatprep.mubr.f32.mxu0 0.0
    %225 = vmatmul.mubr.f32.gmra.mrb[0].mxu0 %v147
    %v226 = vpop.f32.mrb[0].mxu0
    %v227 = vadd.f32 0.0, %v226
    %v228 = vpop.f32.mrb[0].mxu0
    %229 = vmatprep.mubr.f32.mxu0 0.0
    %230 = vmatmul.mubr.f32.gmra.mrb[0].mxu0 %v150
    %v231 = vpop.f32.mrb[0].mxu0
    %v232 = vadd.f32 0.0, %v231
    %v233 = vpop.f32.mrb[0].mxu0
    %234 = vmatprep.mubr.f32.mxu0 0.0
    %235 = vmatmul.mubr.f32.gmra.mrb[0].mxu0 %v153
    %v236 = vpop.f32.mrb[0].mxu0
    %v237 = vadd.f32 0.0, %v236
    %v238 = vpop.f32.mrb[0].mxu0
    %239 = vdwg.mxu0
    %v241 = vsel %vm142, %v124, 0
    %v244 = vsel %vm142, %v129, 0
    %v247 = vsel %vm142, %v134, 0
    %v250 = vsel %vm142, %v139, 0
    %252 = vmatprep.subr.mxu0 0.0
    %253 = vmatpush1.msra.mxu0 %v38
    %254 = vmatprep.subr.mxu0 0.0
    %255 = vmatpush1.msra.mxu0 %v39
    %256 = vmatprep.subr.mxu0 0.0
    %257 = vmatpush1.msra.mxu0 0.0
    %258 = vmatprep.subr.mxu0 0.0
    %259 = vmatpush1.msra.mxu0 0.0
    %260 = vmatprep.subr.mxu0 0.0
    %261 = vmatpush1.msra.mxu0 0.0
    %262 = vmatprep.subr.mxu0 0.0
    %263 = vmatpush1.msra.mxu0 0.0
    %264 = vmatprep.subr.mxu0 0.0
    %265 = vmatpush1.msra.mxu0 0.0
    %266 = vmatprep.subr.mxu0 0.0
    %267 = vmatpush1.msra.mxu0 0.0
    %268 = vmatprep.subr.mxu0 0.0
    %269 = vmatpush1.msra.mxu0 0.0
    %270 = vmatprep.subr.mxu0 0.0
    %271 = vmatpush1.msra.mxu0 0.0
    %272 = vmatprep.subr.mxu0 0.0
    %273 = vmatpush1.msra.mxu0 0.0
    %274 = vmatprep.subr.mxu0 0.0
    %275 = vmatpush1.msra.mxu0 0.0
    %276 = vmatprep.subr.mxu0 0.0
    %277 = vmatpush1.msra.mxu0 0.0
    %278 = vmatprep.subr.mxu0 0.0
    %279 = vmatpush1.msra.mxu0 0.0
    %280 = vmatprep.subr.mxu0 0.0
    %281 = vmatpush1.msra.mxu0 0.0
    %282 = vmatprep.subr.mxu0 0.0
    %283 = vmatpush1.msra.mxu0 0.0
    %284 = vmatprep.subr.mxu0 0.0
    %285 = vmatpush1.msra.mxu0 0.0
    %286 = vmatprep.subr.mxu0 0.0
    %287 = vmatpush1.msra.mxu0 0.0
    %288 = vmatprep.subr.mxu0 0.0
    %289 = vmatpush1.msra.mxu0 0.0
    %290 = vmatprep.subr.mxu0 0.0
    %291 = vmatpush1.msra.mxu0 0.0
    %292 = vmatprep.subr.mxu0 0.0
    %293 = vmatpush1.msra.mxu0 0.0
    %294 = vmatprep.subr.mxu0 0.0
    %295 = vmatpush1.msra.mxu0 0.0
    %296 = vmatprep.subr.mxu0 0.0
    %297 = vmatpush1.msra.mxu0 0.0
    %298 = vmatprep.subr.mxu0 0.0
    %299 = vmatpush1.msra.mxu0 0.0
    %300 = vmatprep.subr.mxu0 0.0
    %301 = vmatpush1.msra.mxu0 0.0
    %302 = vmatprep.subr.mxu0 0.0
    %303 = vmatpush1.msra.mxu0 0.0
    %304 = vmatprep.subr.mxu0 0.0
    %305 = vmatpush1.msra.mxu0 0.0
    %306 = vmatprep.subr.mxu0 0.0
    %307 = vmatpush1.msra.mxu0 0.0
    %308 = vmatprep.subr.mxu0 0.0
    %309 = vmatpush1.msra.mxu0 0.0
    %310 = vmatprep.subr.mxu0 0.0
    %311 = vmatpush1.msra.mxu0 0.0
    %312 = vmatprep.subr.mxu0 0.0
    %313 = vmatpush1.msra.mxu0 0.0
    %314 = vmatprep.subr.mxu0 0.0
    %315 = vmatpush1.msra.mxu0 0.0
    %316 = vmatprep.mubr.f32.mxu0 0.0
    %317 = vmatmul.mubr.f32.gmra.mrb[0].mxu0 %v241
    %v318 = vpop.f32.mrb[0].mxu0
    %v319 = vadd.f32 %v222, %v318
    %v320 = vpop.f32.mrb[0].mxu0
    %321 = vmatprep.mubr.f32.mxu0 0.0
    %322 = vmatmul.mubr.f32.gmra.mrb[0].mxu0 %v244
    %v323 = vpop.f32.mrb[0].mxu0
    %v324 = vadd.f32 %v227, %v323
    %v325 = vpop.f32.mrb[0].mxu0
    %326 = vmatprep.mubr.f32.mxu0 0.0
    %327 = vmatmul.mubr.f32.gmra.mrb[0].mxu0 %v247
    %v328 = vpop.f32.mrb[0].mxu0
    %v329 = vadd.f32 %v232, %v328
    %v330 = vpop.f32.mrb[0].mxu0
    %331 = vmatprep.mubr.f32.mxu0 0.0
    %332 = vmatmul.mubr.f32.gmra.mrb[0].mxu0 %v250
    %v333 = vpop.f32.mrb[0].mxu0
    %v334 = vadd.f32 %v237, %v333
    %v335 = vpop.f32.mrb[0].mxu0
    %336 = vdwg.mxu0
    %v338 = vsel %vm44, %v29, 0
    %v341 = vsel %vm44, %v30, 0
    %v344 = vsel %vm44, %v31, 0
    %v347 = vsel %vm44, %v32, 0
    %349 = vmatprep.subr.mxu0 0.0
    %350 = vmatpush1.msra.mxu0 %v34
    %351 = vmatprep.subr.mxu0 0.0
    %352 = vmatpush1.msra.mxu0 %v35
    %353 = vmatprep.subr.mxu0 0.0
    %354 = vmatpush1.msra.mxu0 %v36
    %355 = vmatprep.subr.mxu0 0.0
    %356 = vmatpush1.msra.mxu0 %v37
    %357 = vmatprep.subr.mxu0 0.0
    %358 = vmatpush1.msra.mxu0 0.0
    %359 = vmatprep.subr.mxu0 0.0
    %360 = vmatpush1.msra.mxu0 0.0
    %361 = vmatprep.subr.mxu0 0.0
    %362 = vmatpush1.msra.mxu0 0.0
    %363 = vmatprep.subr.mxu0 0.0
    %364 = vmatpush1.msra.mxu0 0.0
    %365 = vmatprep.subr.mxu0 0.0
    %366 = vmatpush1.msra.mxu0 0.0
    %367 = vmatprep.subr.mxu0 0.0
    %368 = vmatpush1.msra.mxu0 0.0
    %369 = vmatprep.subr.mxu0 0.0
    %370 = vmatpush1.msra.mxu0 0.0
    %371 = vmatprep.subr.mxu0 0.0
    %372 = vmatpush1.msra.mxu0 0.0
    %373 = vmatprep.subr.mxu0 0.0
    %374 = vmatpush1.msra.mxu0 0.0
    %375 = vmatprep.subr.mxu0 0.0
    %376 = vmatpush1.msra.mxu0 0.0
    %377 = vmatprep.subr.mxu0 0.0
    %378 = vmatpush1.msra.mxu0 0.0
    %379 = vmatprep.subr.mxu0 0.0
    %380 = vmatpush1.msra.mxu0 0.0
    %381 = vmatprep.subr.mxu0 0.0
    %382 = vmatpush1.msra.mxu0 0.0
    %383 = vmatprep.subr.mxu0 0.0
    %384 = vmatpush1.msra.mxu0 0.0
    %385 = vmatprep.subr.mxu0 0.0
    %386 = vmatpush1.msra.mxu0 0.0
    %387 = vmatprep.subr.mxu0 0.0
    %388 = vmatpush1.msra.mxu0 0.0
    %389 = vmatprep.subr.mxu0 0.0
    %390 = vmatpush1.msra.mxu0 0.0
    %391 = vmatprep.subr.mxu0 0.0
    %392 = vmatpush1.msra.mxu0 0.0
    %393 = vmatprep.subr.mxu0 0.0
    %394 = vmatpush1.msra.mxu0 0.0
    %395 = vmatprep.subr.mxu0 0.0
    %396 = vmatpush1.msra.mxu0 0.0
    %397 = vmatprep.subr.mxu0 0.0
    %398 = vmatpush1.msra.mxu0 0.0
    %399 = vmatprep.subr.mxu0 0.0
    %400 = vmatpush1.msra.mxu0 0.0
    %401 = vmatprep.subr.mxu0 0.0
    %402 = vmatpush1.msra.mxu0 0.0
    %403 = vmatprep.subr.mxu0 0.0
    %404 = vmatpush1.msra.mxu0 0.0
    %405 = vmatprep.subr.mxu0 0.0
    %406 = vmatpush1.msra.mxu0 0.0
    %407 = vmatprep.subr.mxu0 0.0
    %408 = vmatpush1.msra.mxu0 0.0
    %409 = vmatprep.subr.mxu0 0.0
    %410 = vmatpush1.msra.mxu0 0.0
    %411 = vmatprep.subr.mxu0 0.0
    %412 = vmatpush1.msra.mxu0 0.0
    %413 = vmatprep.mubr.f32.mxu0 0.0
    %414 = vmatmul.mubr.f32.gmra.mrb[0].mxu0 %v338
    %v415 = vpop.f32.mrb[0].mxu0
    %v416 = vadd.f32 0.0, %v415
    %v417 = vpop.f32.mrb[0].mxu0
    %418 = vmatprep.mubr.f32.mxu0 0.0
    %419 = vmatmul.mubr.f32.gmra.mrb[0].mxu0 %v341
    %v420 = vpop.f32.mrb[0].mxu0
    %v421 = vadd.f32 0.0, %v420
    %v422 = vpop.f32.mrb[0].mxu0
    %423 = vmatprep.mubr.f32.mxu0 0.0
    %424 = vmatmul.mubr.f32.gmra.mrb[0].mxu0 %v344
    %v425 = vpop.f32.mrb[0].mxu0
    %v426 = vadd.f32 0.0, %v425
    %v427 = vpop.f32.mrb[0].mxu0
    %428 = vmatprep.mubr.f32.mxu0 0.0
    %429 = vmatmul.mubr.f32.gmra.mrb[0].mxu0 %v347
    %v430 = vpop.f32.mrb[0].mxu0
    %v431 = vadd.f32 0.0, %v430
    %v432 = vpop.f32.mrb[0].mxu0
    %433 = vdwg.mxu0
    %v435 = vsel %vm142, %v416, 0
    %v438 = vsel %vm142, %v421, 0
    %v441 = vsel %vm142, %v426, 0
    %v444 = vsel %vm142, %v431, 0
    %446 = vmatprep.subr.mxu0 0.0
    %447 = vmatpush1.msra.mxu0 %v42
    %448 = vmatprep.subr.mxu0 0.0
    %449 = vmatpush1.msra.mxu0 %v43
    %450 = vmatprep.subr.mxu0 0.0
    %451 = vmatpush1.msra.mxu0 0.0
    %452 = vmatprep.subr.mxu0 0.0
    %453 = vmatpush1.msra.mxu0 0.0
    %454 = vmatprep.subr.mxu0 0.0
    %455 = vmatpush1.msra.mxu0 0.0
    %456 = vmatprep.subr.mxu0 0.0
    %457 = vmatpush1.msra.mxu0 0.0
    %458 = vmatprep.subr.mxu0 0.0
    %459 = vmatpush1.msra.mxu0 0.0
    %460 = vmatprep.subr.mxu0 0.0
    %461 = vmatpush1.msra.mxu0 0.0
    %462 = vmatprep.subr.mxu0 0.0
    %463 = vmatpush1.msra.mxu0 0.0
    %464 = vmatprep.subr.mxu0 0.0
    %465 = vmatpush1.msra.mxu0 0.0
    %466 = vmatprep.subr.mxu0 0.0
    %467 = vmatpush1.msra.mxu0 0.0
    %468 = vmatprep.subr.mxu0 0.0
    %469 = vmatpush1.msra.mxu0 0.0
    %470 = vmatprep.subr.mxu0 0.0
    %471 = vmatpush1.msra.mxu0 0.0
    %472 = vmatprep.subr.mxu0 0.0
    %473 = vmatpush1.msra.mxu0 0.0
    %474 = vmatprep.subr.mxu0 0.0
    %475 = vmatpush1.msra.mxu0 0.0
    %476 = vmatprep.subr.mxu0 0.0
    %477 = vmatpush1.msra.mxu0 0.0
    %478 = vmatprep.subr.mxu0 0.0
    %479 = vmatpush1.msra.mxu0 0.0
    %480 = vmatprep.subr.mxu0 0.0
    %481 = vmatpush1.msra.mxu0 0.0
    %482 = vmatprep.subr.mxu0 0.0
    %483 = vmatpush1.msra.mxu0 0.0
    %484 = vmatprep.subr.mxu0 0.0
    %485 = vmatpush1.msra.mxu0 0.0
    %486 = vmatprep.subr.mxu0 0.0
    %487 = vmatpush1.msra.mxu0 0.0
    %488 = vmatprep.subr.mxu0 0.0
    %489 = vmatpush1.msra.mxu0 0.0
    %490 = vmatprep.subr.mxu0 0.0
    %491 = vmatpush1.msra.mxu0 0.0
    %492 = vmatprep.subr.mxu0 0.0
    %493 = vmatpush1.msra.mxu0 0.0
    %494 = vmatprep.subr.mxu0 0.0
    %495 = vmatpush1.msra.mxu0 0.0
    %496 = vmatprep.subr.mxu0 0.0
    %497 = vmatpush1.msra.mxu0 0.0
    %498 = vmatprep.subr.mxu0 0.0
    %499 = vmatpush1.msra.mxu0 0.0
    %500 = vmatprep.subr.mxu0 0.0
    %501 = vmatpush1.msra.mxu0 0.0
    %502 = vmatprep.subr.mxu0 0.0
    %503 = vmatpush1.msra.mxu0 0.0
    %504 = vmatprep.subr.mxu0 0.0
    %505 = vmatpush1.msra.mxu0 0.0
    %506 = vmatprep.subr.mxu0 0.0
    %507 = vmatpush1.msra.mxu0 0.0
    %508 = vmatprep.subr.mxu0 0.0
    %509 = vmatpush1.msra.mxu0 0.0
    %510 = vmatprep.mubr.f32.mxu0 0.0
    %511 = vmatmul.mubr.f32.gmra.mrb[0].mxu0 %v435
    %v512 = vpop.f32.mrb[0].mxu0
    %v513 = vadd.f32 0.0, %v512
    %v514 = vpop.f32.mrb[0].mxu0
    %515 = vmatprep.mubr.f32.mxu0 0.0
    %516 = vmatmul.mubr.f32.gmra.mrb[0].mxu0 %v438
    %v517 = vpop.f32.mrb[0].mxu0
    %v518 = vadd.f32 0.0, %v517
    %v519 = vpop.f32.mrb[0].mxu0
    %520 = vmatprep.mubr.f32.mxu0 0.0
    %521 = vmatmul.mubr.f32.gmra.mrb[0].mxu0 %v441
    %v522 = vpop.f32.mrb[0].mxu0
    %v523 = vadd.f32 0.0, %v522
    %v524 = vpop.f32.mrb[0].mxu0
    %525 = vmatprep.mubr.f32.mxu0 0.0
    %526 = vmatmul.mubr.f32.gmra.mrb[0].mxu0 %v444
    %v527 = vpop.f32.mrb[0].mxu0
    %v528 = vadd.f32 0.0, %v527
    %v529 = vpop.f32.mrb[0].mxu0
    %530 = vdwg.mxu0
    %v531 = vadd.f32 %v319, %v513
    %v532 = vadd.f32 %v324, %v518
    %v533 = vadd.f32 %v329, %v523
    %v534 = vadd.f32 %v334, %v528
    %v535 = vlaneseq
    %v536 = vshrl.u32 %v535, 7
    %v537 = vsub.s32 0, %v536
    %v538 = vrot.slane %v33, %v537
    %v539 = vadd.f32 %v531, %v538
    %v540 = vadd.f32 %v532, %v538
    %v541 = vadd.f32 %v533, %v538
    %v542 = vadd.f32 %v534, %v538
    %v543 = vmul.f32 %v539, 0.5
    %v544 = vmul.f32 %v540, 0.5
    %v545 = vmul.f32 %v541, 0.5
    %v546 = vmul.f32 %v542, 0.5
    %v547 = vmul.f32 %v539, 0.044715
    %v548 = vmul.f32 %v540, 0.044715
    %v549 = vmul.f32 %v541, 0.044715
    %v550 = vmul.f32 %v542, 0.044715
    %v551 = vmul.f32 %v547, %v539
    %v552 = vmul.f32 %v548, %v540
    %v553 = vmul.f32 %v549, %v541
    %v554 = vmul.f32 %v550, %v542
    %v555 = vmul.f32 %v551, %v539
    %v556 = vmul.f32 %v552, %v540
    %v557 = vmul.f32 %v553, %v541
    %v558 = vmul.f32 %v554, %v542
    %v559 = vadd.f32 %v539, %v555
    %v560 = vadd.f32 %v540, %v556
    %v561 = vadd.f32 %v541, %v557
    %v562 = vadd.f32 %v542, %v558
    %v563 = vmul.f32 %v559, 0.7978846
    %v564 = vmul.f32 %v560, 0.7978846
    %v565 = vmul.f32 %v561, 0.7978846
    %v566 = vmul.f32 %v562, 0.7978846
    %v567 = vtanh.pop %v563
    %v568 = vtanh.pop %v564
    %v569 = vtanh.pop %v565
    %v570 = vtanh.pop %v566
    %v571 = vadd.f32 %v567, 1.0
    %v572 = vadd.f32 %v568, 1.0
    %v573 = vadd.f32 %v569, 1.0
    %v574 = vadd.f32 %v570, 1.0
    %v575 = vmul.f32 %v543, %v571
    %v576 = vmul.f32 %v544, %v572
    %v577 = vmul.f32 %v545, %v573
    %v578 = vmul.f32 %v546, %v574
    %v579 = vld [vmem:[#allocation2 + $0x30] sm:$0xff]
    %v580 = vld [vmem:[#allocation2 + $0x38] sm:$0xff]
    %v581 = vld [vmem:[#allocation2 + $0x40] sm:$0xff]
    %v582 = vld [vmem:[#allocation2 + $0x48] sm:$0xff]
    %v583 = vld [vmem:[#allocation2 + $0x50] sm:$0xff]
    %v584 = vld [vmem:[#allocation2 + $0x58] sm:$0xff]
    %v585 = vld [vmem:[#allocation2 + $0x60] sm:$0xff]
    %v586 = vld [vmem:[#allocation2 + $0x68] sm:$0xff]
    %v587 = vld [vmem:[#allocation2 + $0x70] sm:$0xff]
    %v588 = vld [vmem:[#allocation2 + $0x78] sm:$0xff]
    %v589 = vld [vmem:[#allocation2 + $0x80] sm:$0xff]
    %v590 = vld [vmem:[#allocation2 + $0x88] sm:$0xff]
    %591 = vmatprep.subr.mxu0 0.0
    %592 = vmatpush1.msra.mxu0 %v575
    %593 = vmatprep.subr.mxu0 0.0
    %594 = vmatpush1.msra.mxu0 %v576
    %595 = vmatprep.subr.mxu0 0.0
    %596 = vmatpush1.msra.mxu0 %v577
    %597 = vmatprep.subr.mxu0 0.0
    %598 = vmatpush1.msra.mxu0 %v578
    %599 = vmatprep.subr.mxu0 0.0
    %600 = vmatpush1.msra.mxu0 0.0
    %601 = vmatprep.subr.mxu0 0.0
    %602 = vmatpush1.msra.mxu0 0.0
    %603 = vmatprep.subr.mxu0 0.0
    %604 = vmatpush1.msra.mxu0 0.0
    %605 = vmatprep.subr.mxu0 0.0
    %606 = vmatpush1.msra.mxu0 0.0
    %607 = vmatprep.subr.mxu0 0.0
    %608 = vmatpush1.msra.mxu0 0.0
    %609 = vmatprep.subr.mxu0 0.0
    %610 = vmatpush1.msra.mxu0 0.0
    %611 = vmatprep.subr.mxu0 0.0
    %612 = vmatpush1.msra.mxu0 0.0
    %613 = vmatprep.subr.mxu0 0.0
    %614 = vmatpush1.msra.mxu0 0.0
    %615 = vmatprep.subr.mxu0 0.0
    %616 = vmatpush1.msra.mxu0 0.0
    %617 = vmatprep.subr.mxu0 0.0
    %618 = vmatpush1.msra.mxu0 0.0
    %619 = vmatprep.subr.mxu0 0.0
    %620 = vmatpush1.msra.mxu0 0.0
    %621 = vmatprep.subr.mxu0 0.0
    %622 = vmatpush1.msra.mxu0 0.0
    %623 = vmatprep.subr.mxu0 0.0
    %624 = vmatpush1.msra.mxu0 0.0
    %625 = vmatprep.subr.mxu0 0.0
    %626 = vmatpush1.msra.mxu0 0.0
    %627 = vmatprep.subr.mxu0 0.0
    %628 = vmatpush1.msra.mxu0 0.0
    %629 = vmatprep.subr.mxu0 0.0
    %630 = vmatpush1.msra.mxu0 0.0
    %631 = vmatprep.subr.mxu0 0.0
    %632 = vmatpush1.msra.mxu0 0.0
    %633 = vmatprep.subr.mxu0 0.0
    %634 = vmatpush1.msra.mxu0 0.0
    %635 = vmatprep.subr.mxu0 0.0
    %636 = vmatpush1.msra.mxu0 0.0
    %637 = vmatprep.subr.mxu0 0.0
    %638 = vmatpush1.msra.mxu0 0.0
    %639 = vmatprep.subr.mxu0 0.0
    %640 = vmatpush1.msra.mxu0 0.0
    %641 = vmatprep.subr.mxu0 0.0
    %642 = vmatpush1.msra.mxu0 0.0
    %643 = vmatprep.subr.mxu0 0.0
    %644 = vmatpush1.msra.mxu0 0.0
    %645 = vmatprep.subr.mxu0 0.0
    %646 = vmatpush1.msra.mxu0 0.0
    %647 = vmatprep.subr.mxu0 0.0
    %648 = vmatpush1.msra.mxu0 0.0
    %649 = vmatprep.subr.mxu0 0.0
    %650 = vmatpush1.msra.mxu0 0.0
    %651 = vmatprep.subr.mxu0 0.0
    %652 = vmatpush1.msra.mxu0 0.0
    %653 = vmatprep.subr.mxu0 0.0
    %654 = vmatpush1.msra.mxu0 0.0
    %655 = vmatprep.mubr.f32.mxu0 0.0
    %656 = vmatmul.mubr.f32.gmra.mrb[0].mxu0 %v46
    %v657 = vpop.f32.mrb[0].mxu0
    %v658 = vadd.f32 0.0, %v657
    %v659 = vpop.f32.mrb[0].mxu0
    %660 = vmatprep.mubr.f32.mxu0 0.0
    %661 = vmatmul.mubr.f32.gmra.mrb[0].mxu0 %v49
    %v662 = vpop.f32.mrb[0].mxu0
    %v663 = vadd.f32 0.0, %v662
    %v664 = vpop.f32.mrb[0].mxu0
    %665 = vmatprep.mubr.f32.mxu0 0.0
    %666 = vmatmul.mubr.f32.gmra.mrb[0].mxu0 %v52
    %v667 = vpop.f32.mrb[0].mxu0
    %v668 = vadd.f32 0.0, %v667
    %v669 = vpop.f32.mrb[0].mxu0
    %670 = vmatprep.mubr.f32.mxu0 0.0
    %671 = vmatmul.mubr.f32.gmra.mrb[0].mxu0 %v55
    %v672 = vpop.f32.mrb[0].mxu0
    %v673 = vadd.f32 0.0, %v672
    %v674 = vpop.f32.mrb[0].mxu0
    %675 = vdwg.mxu0
    %v677 = vsel %vm44, %v575, 0
    %v680 = vsel %vm44, %v576, 0
    %v683 = vsel %vm44, %v577, 0
    %v686 = vsel %vm44, %v578, 0
    %688 = vmatprep.subr.mxu0 0.0
    %689 = vmatpush1.msra.mxu0 %v583
    %690 = vmatprep.subr.mxu0 0.0
    %691 = vmatpush1.msra.mxu0 %v584
    %692 = vmatprep.subr.mxu0 0.0
    %693 = vmatpush1.msra.mxu0 %v585
    %694 = vmatprep.subr.mxu0 0.0
    %695 = vmatpush1.msra.mxu0 %v586
    %696 = vmatprep.subr.mxu0 0.0
    %697 = vmatpush1.msra.mxu0 0.0
    %698 = vmatprep.subr.mxu0 0.0
    %699 = vmatpush1.msra.mxu0 0.0
    %700 = vmatprep.subr.mxu0 0.0
    %701 = vmatpush1.msra.mxu0 0.0
    %702 = vmatprep.subr.mxu0 0.0
    %703 = vmatpush1.msra.mxu0 0.0
    %704 = vmatprep.subr.mxu0 0.0
    %705 = vmatpush1.msra.mxu0 0.0
    %706 = vmatprep.subr.mxu0 0.0
    %707 = vmatpush1.msra.mxu0 0.0
    %708 = vmatprep.subr.mxu0 0.0
    %709 = vmatpush1.msra.mxu0 0.0
    %710 = vmatprep.subr.mxu0 0.0
    %711 = vmatpush1.msra.mxu0 0.0
    %712 = vmatprep.subr.mxu0 0.0
    %713 = vmatpush1.msra.mxu0 0.0
    %714 = vmatprep.subr.mxu0 0.0
    %715 = vmatpush1.msra.mxu0 0.0
    %716 = vmatprep.subr.mxu0 0.0
    %717 = vmatpush1.msra.mxu0 0.0
    %718 = vmatprep.subr.mxu0 0.0
    %719 = vmatpush1.msra.mxu0 0.0
    %720 = vmatprep.subr.mxu0 0.0
    %721 = vmatpush1.msra.mxu0 0.0
    %722 = vmatprep.subr.mxu0 0.0
    %723 = vmatpush1.msra.mxu0 0.0
    %724 = vmatprep.subr.mxu0 0.0
    %725 = vmatpush1.msra.mxu0 0.0
    %726 = vmatprep.subr.mxu0 0.0
    %727 = vmatpush1.msra.mxu0 0.0
    %728 = vmatprep.subr.mxu0 0.0
    %729 = vmatpush1.msra.mxu0 0.0
    %730 = vmatprep.subr.mxu0 0.0
    %731 = vmatpush1.msra.mxu0 0.0
    %732 = vmatprep.subr.mxu0 0.0
    %733 = vmatpush1.msra.mxu0 0.0
    %734 = vmatprep.subr.mxu0 0.0
    %735 = vmatpush1.msra.mxu0 0.0
    %736 = vmatprep.subr.mxu0 0.0
    %737 = vmatpush1.msra.mxu0 0.0
    %738 = vmatprep.subr.mxu0 0.0
    %739 = vmatpush1.msra.mxu0 0.0
    %740 = vmatprep.subr.mxu0 0.0
    %741 = vmatpush1.msra.mxu0 0.0
    %742 = vmatprep.subr.mxu0 0.0
    %743 = vmatpush1.msra.mxu0 0.0
    %744 = vmatprep.subr.mxu0 0.0
    %745 = vmatpush1.msra.mxu0 0.0
    %746 = vmatprep.subr.mxu0 0.0
    %747 = vmatpush1.msra.mxu0 0.0
    %748 = vmatprep.subr.mxu0 0.0
    %749 = vmatpush1.msra.mxu0 0.0
    %750 = vmatprep.subr.mxu0 0.0
    %751 = vmatpush1.msra.mxu0 0.0
    %752 = vmatprep.mubr.f32.mxu0 0.0
    %753 = vmatmul.mubr.f32.gmra.mrb[0].mxu0 %v677
    %v754 = vpop.f32.mrb[0].mxu0
    %v755 = vadd.f32 0.0, %v754
    %v756 = vpop.f32.mrb[0].mxu0
    %757 = vmatprep.mubr.f32.mxu0 0.0
    %758 = vmatmul.mubr.f32.gmra.mrb[0].mxu0 %v680
    %v759 = vpop.f32.mrb[0].mxu0
    %v760 = vadd.f32 0.0, %v759
    %v761 = vpop.f32.mrb[0].mxu0
    %762 = vmatprep.mubr.f32.mxu0 0.0
    %763 = vmatmul.mubr.f32.gmra.mrb[0].mxu0 %v683
    %v764 = vpop.f32.mrb[0].mxu0
    %v765 = vadd.f32 0.0, %v764
    %v766 = vpop.f32.mrb[0].mxu0
    %767 = vmatprep.mubr.f32.mxu0 0.0
    %768 = vmatmul.mubr.f32.gmra.mrb[0].mxu0 %v686
    %v769 = vpop.f32.mrb[0].mxu0
    %v770 = vadd.f32 0.0, %v769
    %v771 = vpop.f32.mrb[0].mxu0
    %772 = vdwg.mxu0
    %v774 = vsel %vm44, %v658, 0
    %v777 = vsel %vm44, %v663, 0
    %v780 = vsel %vm44, %v668, 0
    %v783 = vsel %vm44, %v673, 0
    %785 = vmatprep.subr.mxu0 0.0
    %786 = vmatpush1.msra.mxu0 %v579
    %787 = vmatprep.subr.mxu0 0.0
    %788 = vmatpush1.msra.mxu0 %v580
    %789 = vmatprep.subr.mxu0 0.0
    %790 = vmatpush1.msra.mxu0 %v581
    %791 = vmatprep.subr.mxu0 0.0
    %792 = vmatpush1.msra.mxu0 %v582
    %793 = vmatprep.subr.mxu0 0.0
    %794 = vmatpush1.msra.mxu0 0.0
    %795 = vmatprep.subr.mxu0 0.0
    %796 = vmatpush1.msra.mxu0 0.0
    %797 = vmatprep.subr.mxu0 0.0
    %798 = vmatpush1.msra.mxu0 0.0
    %799 = vmatprep.subr.mxu0 0.0
    %800 = vmatpush1.msra.mxu0 0.0
    %801 = vmatprep.subr.mxu0 0.0
    %802 = vmatpush1.msra.mxu0 0.0
    %803 = vmatprep.subr.mxu0 0.0
    %804 = vmatpush1.msra.mxu0 0.0
    %805 = vmatprep.subr.mxu0 0.0
    %806 = vmatpush1.msra.mxu0 0.0
    %807 = vmatprep.subr.mxu0 0.0
    %808 = vmatpush1.msra.mxu0 0.0
    %809 = vmatprep.subr.mxu0 0.0
    %810 = vmatpush1.msra.mxu0 0.0
    %811 = vmatprep.subr.mxu0 0.0
    %812 = vmatpush1.msra.mxu0 0.0
    %813 = vmatprep.subr.mxu0 0.0
    %814 = vmatpush1.msra.mxu0 0.0
    %815 = vmatprep.subr.mxu0 0.0
    %816 = vmatpush1.msra.mxu0 0.0
    %817 = vmatprep.subr.mxu0 0.0
    %818 = vmatpush1.msra.mxu0 0.0
    %819 = vmatprep.subr.mxu0 0.0
    %820 = vmatpush1.msra.mxu0 0.0
    %821 = vmatprep.subr.mxu0 0.0
    %822 = vmatpush1.msra.mxu0 0.0
    %823 = vmatprep.subr.mxu0 0.0
    %824 = vmatpush1.msra.mxu0 0.0
    %825 = vmatprep.subr.mxu0 0.0
    %826 = vmatpush1.msra.mxu0 0.0
    %827 = vmatprep.subr.mxu0 0.0
    %828 = vmatpush1.msra.mxu0 0.0
    %829 = vmatprep.subr.mxu0 0.0
    %830 = vmatpush1.msra.mxu0 0.0
    %831 = vmatprep.subr.mxu0 0.0
    %832 = vmatpush1.msra.mxu0 0.0
    %833 = vmatprep.subr.mxu0 0.0
    %834 = vmatpush1.msra.mxu0 0.0
    %835 = vmatprep.subr.mxu0 0.0
    %836 = vmatpush1.msra.mxu0 0.0
    %837 = vmatprep.subr.mxu0 0.0
    %838 = vmatpush1.msra.mxu0 0.0
    %839 = vmatprep.subr.mxu0 0.0
    %840 = vmatpush1.msra.mxu0 0.0
    %841 = vmatprep.subr.mxu0 0.0
    %842 = vmatpush1.msra.mxu0 0.0
    %843 = vmatprep.subr.mxu0 0.0
    %844 = vmatpush1.msra.mxu0 0.0
    %845 = vmatprep.subr.mxu0 0.0
    %846 = vmatpush1.msra.mxu0 0.0
    %847 = vmatprep.subr.mxu0 0.0
    %848 = vmatpush1.msra.mxu0 0.0
    %849 = vmatprep.mubr.f32.mxu0 0.0
    %850 = vmatmul.mubr.f32.gmra.mrb[0].mxu0 %v774
    %v851 = vpop.f32.mrb[0].mxu0
    %v852 = vadd.f32 %v755, %v851
    %v853 = vpop.f32.mrb[0].mxu0
    %854 = vmatprep.mubr.f32.mxu0 0.0
    %855 = vmatmul.mubr.f32.gmra.mrb[0].mxu0 %v777
    %v856 = vpop.f32.mrb[0].mxu0
    %v857 = vadd.f32 %v760, %v856
    %v858 = vpop.f32.mrb[0].mxu0
    %859 = vmatprep.mubr.f32.mxu0 0.0
    %860 = vmatmul.mubr.f32.gmra.mrb[0].mxu0 %v780
    %v861 = vpop.f32.mrb[0].mxu0
    %v862 = vadd.f32 %v765, %v861
    %v863 = vpop.f32.mrb[0].mxu0
    %864 = vmatprep.mubr.f32.mxu0 0.0
    %865 = vmatmul.mubr.f32.gmra.mrb[0].mxu0 %v783
    %v866 = vpop.f32.mrb[0].mxu0
    %v867 = vadd.f32 %v770, %v866
    %v868 = vpop.f32.mrb[0].mxu0
    %869 = vdwg.mxu0
    %870 = vmatprep.subr.mxu0 0.0
    %871 = vmatpush1.msra.mxu0 %v575
    %872 = vmatprep.subr.mxu0 0.0
    %873 = vmatpush1.msra.mxu0 %v576
    %874 = vmatprep.subr.mxu0 0.0
    %875 = vmatpush1.msra.mxu0 %v577
    %876 = vmatprep.subr.mxu0 0.0
    %877 = vmatpush1.msra.mxu0 %v578
    %878 = vmatprep.subr.mxu0 0.0
    %879 = vmatpush1.msra.mxu0 0.0
    %880 = vmatprep.subr.mxu0 0.0
    %881 = vmatpush1.msra.mxu0 0.0
    %882 = vmatprep.subr.mxu0 0.0
    %883 = vmatpush1.msra.mxu0 0.0
    %884 = vmatprep.subr.mxu0 0.0
    %885 = vmatpush1.msra.mxu0 0.0
    %886 = vmatprep.subr.mxu0 0.0
    %887 = vmatpush1.msra.mxu0 0.0
    %888 = vmatprep.subr.mxu0 0.0
    %889 = vmatpush1.msra.mxu0 0.0
    %890 = vmatprep.subr.mxu0 0.0
    %891 = vmatpush1.msra.mxu0 0.0
    %892 = vmatprep.subr.mxu0 0.0
    %893 = vmatpush1.msra.mxu0 0.0
    %894 = vmatprep.subr.mxu0 0.0
    %895 = vmatpush1.msra.mxu0 0.0
    %896 = vmatprep.subr.mxu0 0.0
    %897 = vmatpush1.msra.mxu0 0.0
    %898 = vmatprep.subr.mxu0 0.0
    %899 = vmatpush1.msra.mxu0 0.0
    %900 = vmatprep.subr.mxu0 0.0
    %901 = vmatpush1.msra.mxu0 0.0
    %902 = vmatprep.subr.mxu0 0.0
    %903 = vmatpush1.msra.mxu0 0.0
    %904 = vmatprep.subr.mxu0 0.0
    %905 = vmatpush1.msra.mxu0 0.0
    %906 = vmatprep.subr.mxu0 0.0
    %907 = vmatpush1.msra.mxu0 0.0
    %908 = vmatprep.subr.mxu0 0.0
    %909 = vmatpush1.msra.mxu0 0.0
    %910 = vmatprep.subr.mxu0 0.0
    %911 = vmatpush1.msra.mxu0 0.0
    %912 = vmatprep.subr.mxu0 0.0
    %913 = vmatpush1.msra.mxu0 0.0
    %914 = vmatprep.subr.mxu0 0.0
    %915 = vmatpush1.msra.mxu0 0.0
    %916 = vmatprep.subr.mxu0 0.0
    %917 = vmatpush1.msra.mxu0 0.0
    %918 = vmatprep.subr.mxu0 0.0
    %919 = vmatpush1.msra.mxu0 0.0
    %920 = vmatprep.subr.mxu0 0.0
    %921 = vmatpush1.msra.mxu0 0.0
    %922 = vmatprep.subr.mxu0 0.0
    %923 = vmatpush1.msra.mxu0 0.0
    %924 = vmatprep.subr.mxu0 0.0
    %925 = vmatpush1.msra.mxu0 0.0
    %926 = vmatprep.subr.mxu0 0.0
    %927 = vmatpush1.msra.mxu0 0.0
    %928 = vmatprep.subr.mxu0 0.0
    %929 = vmatpush1.msra.mxu0 0.0
    %930 = vmatprep.subr.mxu0 0.0
    %931 = vmatpush1.msra.mxu0 0.0
    %932 = vmatprep.subr.mxu0 0.0
    %933 = vmatpush1.msra.mxu0 0.0
    %934 = vmatprep.mubr.f32.mxu0 0.0
    %935 = vmatmul.mubr.f32.gmra.mrb[0].mxu0 %v338
    %v936 = vpop.f32.mrb[0].mxu0
    %v937 = vadd.f32 0.0, %v936
    %v938 = vpop.f32.mrb[0].mxu0
    %939 = vmatprep.mubr.f32.mxu0 0.0
    %940 = vmatmul.mubr.f32.gmra.mrb[0].mxu0 %v341
    %v941 = vpop.f32.mrb[0].mxu0
    %v942 = vadd.f32 0.0, %v941
    %v943 = vpop.f32.mrb[0].mxu0
    %944 = vmatprep.mubr.f32.mxu0 0.0
    %945 = vmatmul.mubr.f32.gmra.mrb[0].mxu0 %v344
    %v946 = vpop.f32.mrb[0].mxu0
    %v947 = vadd.f32 0.0, %v946
    %v948 = vpop.f32.mrb[0].mxu0
    %949 = vmatprep.mubr.f32.mxu0 0.0
    %950 = vmatmul.mubr.f32.gmra.mrb[0].mxu0 %v347
    %v951 = vpop.f32.mrb[0].mxu0
    %v952 = vadd.f32 0.0, %v951
    %v953 = vpop.f32.mrb[0].mxu0
    %954 = vdwg.mxu0
    %v956 = vsel %vm44, %v937, 0
    %v959 = vsel %vm44, %v942, 0
    %v962 = vsel %vm44, %v947, 0
    %v965 = vsel %vm44, %v952, 0
    %967 = vmatprep.subr.mxu0 0.0
    %968 = vmatpush1.msra.mxu0 %v587
    %969 = vmatprep.subr.mxu0 0.0
    %970 = vmatpush1.msra.mxu0 %v588
    %971 = vmatprep.subr.mxu0 0.0
    %972 = vmatpush1.msra.mxu0 %v589
    %973 = vmatprep.subr.mxu0 0.0
    %974 = vmatpush1.msra.mxu0 %v590
    %975 = vmatprep.subr.mxu0 0.0
    %976 = vmatpush1.msra.mxu0 0.0
    %977 = vmatprep.subr.mxu0 0.0
    %978 = vmatpush1.msra.mxu0 0.0
    %979 = vmatprep.subr.mxu0 0.0
    %980 = vmatpush1.msra.mxu0 0.0
    %981 = vmatprep.subr.mxu0 0.0
    %982 = vmatpush1.msra.mxu0 0.0
    %983 = vmatprep.subr.mxu0 0.0
    %984 = vmatpush1.msra.mxu0 0.0
    %985 = vmatprep.subr.mxu0 0.0
    %986 = vmatpush1.msra.mxu0 0.0
    %987 = vmatprep.subr.mxu0 0.0
    %988 = vmatpush1.msra.mxu0 0.0
    %989 = vmatprep.subr.mxu0 0.0
    %990 = vmatpush1.msra.mxu0 0.0
    %991 = vmatprep.subr.mxu0 0.0
    %992 = vmatpush1.msra.mxu0 0.0
    %993 = vmatprep.subr.mxu0 0.0
    %994 = vmatpush1.msra.mxu0 0.0
    %995 = vmatprep.subr.mxu0 0.0
    %996 = vmatpush1.msra.mxu0 0.0
    %997 = vmatprep.subr.mxu0 0.0
    %998 = vmatpush1.msra.mxu0 0.0
    %999 = vmatprep.subr.mxu0 0.0
    %1000 = vmatpush1.msra.mxu0 0.0
    %1001 = vmatprep.subr.mxu0 0.0
    %1002 = vmatpush1.msra.mxu0 0.0
    %1003 = vmatprep.subr.mxu0 0.0
    %1004 = vmatpush1.msra.mxu0 0.0
    %1005 = vmatprep.subr.mxu0 0.0
    %1006 = vmatpush1.msra.mxu0 0.0
    %1007 = vmatprep.subr.mxu0 0.0
    %1008 = vmatpush1.msra.mxu0 0.0
    %1009 = vmatprep.subr.mxu0 0.0
    %1010 = vmatpush1.msra.mxu0 0.0
    %1011 = vmatprep.subr.mxu0 0.0
    %1012 = vmatpush1.msra.mxu0 0.0
    %1013 = vmatprep.subr.mxu0 0.0
    %1014 = vmatpush1.msra.mxu0 0.0
    %1015 = vmatprep.subr.mxu0 0.0
    %1016 = vmatpush1.msra.mxu0 0.0
    %1017 = vmatprep.subr.mxu0 0.0
    %1018 = vmatpush1.msra.mxu0 0.0
    %1019 = vmatprep.subr.mxu0 0.0
    %1020 = vmatpush1.msra.mxu0 0.0
    %1021 = vmatprep.subr.mxu0 0.0
    %1022 = vmatpush1.msra.mxu0 0.0
    %1023 = vmatprep.subr.mxu0 0.0
    %1024 = vmatpush1.msra.mxu0 0.0
    %1025 = vmatprep.subr.mxu0 0.0
    %1026 = vmatpush1.msra.mxu0 0.0
    %1027 = vmatprep.subr.mxu0 0.0
    %1028 = vmatpush1.msra.mxu0 0.0
    %1029 = vmatprep.subr.mxu0 0.0
    %1030 = vmatpush1.msra.mxu0 0.0
    %1031 = vmatprep.mubr.f32.mxu0 0.0
    %1032 = vmatmul.mubr.f32.gmra.mrb[0].mxu0 %v956
    %v1033 = vpop.f32.mrb[0].mxu0
    %v1034 = vadd.f32 0.0, %v1033
    %v1035 = vpop.f32.mrb[0].mxu0
    %1036 = vmatprep.mubr.f32.mxu0 0.0
    %1037 = vmatmul.mubr.f32.gmra.mrb[0].mxu0 %v959
    %v1038 = vpop.f32.mrb[0].mxu0
    %v1039 = vadd.f32 0.0, %v1038
    %v1040 = vpop.f32.mrb[0].mxu0
    %1041 = vmatprep.mubr.f32.mxu0 0.0
    %1042 = vmatmul.mubr.f32.gmra.mrb[0].mxu0 %v962
    %v1043 = vpop.f32.mrb[0].mxu0
    %v1044 = vadd.f32 0.0, %v1043
    %v1045 = vpop.f32.mrb[0].mxu0
    %1046 = vmatprep.mubr.f32.mxu0 0.0
    %1047 = vmatmul.mubr.f32.gmra.mrb[0].mxu0 %v965
    %v1048 = vpop.f32.mrb[0].mxu0
    %v1049 = vadd.f32 0.0, %v1048
    %v1050 = vpop.f32.mrb[0].mxu0
    %1051 = vdwg.mxu0
    %v1052 = vadd.f32 %v852, %v1034
    %v1053 = vadd.f32 %v857, %v1039
    %v1054 = vadd.f32 %v862, %v1044
    %v1055 = vadd.f32 %v867, %v1049
    %v1056 = vlaneseq
    %v1057 = vshrl.u32 %v1056, 7
    %v1058 = vsub.s32 1, %v1057
    %v1059 = vrot.slane %v33, %v1058
    %v1060 = vadd.f32 %v1052, %v1059
    %v1061 = vadd.f32 %v1053, %v1059
    %v1062 = vadd.f32 %v1054, %v1059
    %v1063 = vadd.f32 %v1055, %v1059
    %v1064 = vmul.f32 %v1060, 0.5
    %v1065 = vmul.f32 %v1061, 0.5
    %v1066 = vmul.f32 %v1062, 0.5
    %v1067 = vmul.f32 %v1063, 0.5
    %v1068 = vmul.f32 %v1060, 0.044715
    %v1069 = vmul.f32 %v1061, 0.044715
    %v1070 = vmul.f32 %v1062, 0.044715
    %v1071 = vmul.f32 %v1063, 0.044715
    %v1072 = vmul.f32 %v1068, %v1060
    %v1073 = vmul.f32 %v1069, %v1061
    %v1074 = vmul.f32 %v1070, %v1062
    %v1075 = vmul.f32 %v1071, %v1063
    %v1076 = vmul.f32 %v1072, %v1060
    %v1077 = vmul.f32 %v1073, %v1061
    %v1078 = vmul.f32 %v1074, %v1062
    %v1079 = vmul.f32 %v1075, %v1063
    %v1080 = vadd.f32 %v1060, %v1076
    %v1081 = vadd.f32 %v1061, %v1077
    %v1082 = vadd.f32 %v1062, %v1078
    %v1083 = vadd.f32 %v1063, %v1079
    %v1084 = vmul.f32 %v1080, 0.7978846
    %v1085 = vmul.f32 %v1081, 0.7978846
    %v1086 = vmul.f32 %v1082, 0.7978846
    %v1087 = vmul.f32 %v1083, 0.7978846
    %v1088 = vtanh.pop %v1084
    %v1089 = vtanh.pop %v1085
    %v1090 = vtanh.pop %v1086
    %v1091 = vtanh.pop %v1087
    %v1092 = vadd.f32 %v1088, 1.0
    %v1093 = vadd.f32 %v1089, 1.0
    %v1094 = vadd.f32 %v1090, 1.0
    %v1095 = vadd.f32 %v1091, 1.0
    %v1096 = vmul.f32 %v1064, %v1092
    %v1097 = vmul.f32 %v1065, %v1093
    %v1098 = vmul.f32 %v1066, %v1094
    %v1099 = vmul.f32 %v1067, %v1095
    %v1100 = vld [vmem:[#allocation2 + $0xd8] sm:$0xff]
    %v1101 = vld [vmem:[#allocation2 + $0xe0] sm:$0xff]
    %v1102 = vld [vmem:[#allocation2 + $0xe8] sm:$0xff]
    %v1103 = vld [vmem:[#allocation2 + $0xf0] sm:$0xff]
    %v1104 = vadd.f32 %v1096, %v1100
    %v1105 = vadd.f32 %v1097, %v1101
    %v1106 = vadd.f32 %v1098, %v1102
    %v1107 = vadd.f32 %v1099, %v1103
    %v1108 = vld [vmem:[#allocation2 + $0xf8] sm:$0xff]
    %v1109 = vld [vmem:[#allocation2 + $0x100] sm:$0xff]
    %v1110 = vld [vmem:[#allocation2 + $0x108] sm:$0xff]
    %v1111 = vld [vmem:[#allocation2 + $0x110] sm:$0xff]
    %v1112 = vld [vmem:[#allocation2 + $0x118] sm:$0xf]
    %v1113 = vld [vmem:[#allocation2 + $0x1d0] sm:$0xff]
    %v1114 = vsel %vm44, %v1104, 0.0
    %1115 = vadd.xlane.f32.xlu0 %v1114
    %v1116 = vpop.xlane.xlu0 %1115
    %v1117 = vsel %vm44, %v1105, 0.0
    %1118 = vadd.xlane.f32.xlu0 %v1117
    %v1119 = vpop.xlane.xlu0 %1118
    %v1120 = vsel %vm44, %v1106, 0.0
    %1121 = vadd.xlane.f32.xlu0 %v1120
    %v1122 = vpop.xlane.xlu0 %1121
    %v1123 = vsel %vm44, %v1107, 0.0
    %1124 = vadd.xlane.f32.xlu0 %v1123
    %v1125 = vpop.xlane.xlu0 %1124
    %v1126 = vrcp.pop 32.0
    %v1127 = vmul.f32 %v1116, %v1126
    %v1128 = vmul.f32 %v1119, %v1126
    %v1129 = vmul.f32 %v1122, %v1126
    %v1130 = vmul.f32 %v1125, %v1126
    %v1131 = vsub.f32 %v1104, %v1127
    %v1132 = vsub.f32 %v1105, %v1128
    %v1133 = vsub.f32 %v1106, %v1129
    %v1134 = vsub.f32 %v1107, %v1130
    %v1135 = vmul.f32 %v1131, %v1131
    %v1136 = vmul.f32 %v1132, %v1132
    %v1137 = vmul.f32 %v1133, %v1133
    %v1138 = vmul.f32 %v1134, %v1134
    %v1139 = vsel %vm44, %v1135, 0.0
    %1140 = vadd.xlane.f32.xlu0 %v1139
    %v1141 = vpop.xlane.xlu0 %1140
    %v1142 = vsel %vm44, %v1136, 0.0
    %1143 = vadd.xlane.f32.xlu0 %v1142
    %v1144 = vpop.xlane.xlu0 %1143
    %v1145 = vsel %vm44, %v1137, 0.0
    %1146 = vadd.xlane.f32.xlu0 %v1145
    %v1147 = vpop.xlane.xlu0 %1146
    %v1148 = vsel %vm44, %v1138, 0.0
    %1149 = vadd.xlane.f32.xlu0 %v1148
    %v1150 = vpop.xlane.xlu0 %1149
    %v1151 = vmul.f32 %v1141, %v1126
    %v1152 = vmul.f32 %v1144, %v1126
    %v1153 = vmul.f32 %v1147, %v1126
    %v1154 = vmul.f32 %v1150, %v1126
    %v1155 = vadd.f32 %v1151, 1e-05
    %v1156 = vadd.f32 %v1152, 1e-05
    %v1157 = vadd.f32 %v1153, 1e-05
    %v1158 = vadd.f32 %v1154, 1e-05
    %v1159 = vrsqrt.pop %v1155
    %v1160 = vrsqrt.pop %v1156
    %v1161 = vrsqrt.pop %v1157
    %v1162 = vrsqrt.pop %v1158
    %v1163 = vmul.f32 %v1131, %v1159
    %v1164 = vmul.f32 %v1132, %v1160
    %v1165 = vmul.f32 %v1133, %v1161
    %v1166 = vmul.f32 %v1134, %v1162
    %v1167 = vlaneseq
    %v1168 = vshrl.u32 %v1167, 7
    %v1169 = vsub.s32 0, %v1168
    %v1170 = vrot.slane %v1113, %v1169
    %v1171 = vmul.f32 %v1163, %v1170
    %v1172 = vmul.f32 %v1164, %v1170
    %v1173 = vmul.f32 %v1165, %v1170
    %v1174 = vmul.f32 %v1166, %v1170
    %v1175 = vlaneseq
    %v1176 = vshrl.u32 %v1175, 7
    %v1177 = vsub.s32 1, %v1176
    %v1178 = vrot.slane %v1113, %v1177
    %v1179 = vadd.f32 %v1171, %v1178
    %v1180 = vadd.f32 %v1172, %v1178
    %v1181 = vadd.f32 %v1173, %v1178
    %v1182 = vadd.f32 %v1174, %v1178
    %v1183 = vld [vmem:[#allocation2 + $0x150] sm:$0xff]
    %v1184 = vld [vmem:[#allocation2 + $0x158] sm:$0xff]
    %v1185 = vld [vmem:[#allocation2 + $0x160] sm:$0xff]
    %v1186 = vld [vmem:[#allocation2 + $0x168] sm:$0xff]
    %v1187 = vlaneseq
    %v1188 = vshrl.u32 %v1187, 7
    %v1189 = vsub.s32 2, %v1188
    %v1190 = vrot.slane %v1113, %v1189
    %v1192 = vsel %vm44, %v1179, 0
    %v1195 = vsel %vm44, %v1180, 0
    %v1198 = vsel %vm44, %v1181, 0
    %v1201 = vsel %vm44, %v1182, 0
    %1203 = vmatprep.subr.mxu0 0.0
    %1204 = vmatpush1.msra.mxu0 %v1183
    %1205 = vmatprep.subr.mxu0 0.0
    %1206 = vmatpush1.msra.mxu0 %v1184
    %1207 = vmatprep.subr.mxu0 0.0
    %1208 = vmatpush1.msra.mxu0 %v1185
    %1209 = vmatprep.subr.mxu0 0.0
    %1210 = vmatpush1.msra.mxu0 %v1186
    %1211 = vmatprep.subr.mxu0 0.0
    %1212 = vmatpush1.msra.mxu0 0.0
    %1213 = vmatprep.subr.mxu0 0.0
    %1214 = vmatpush1.msra.mxu0 0.0
    %1215 = vmatprep.subr.mxu0 0.0
    %1216 = vmatpush1.msra.mxu0 0.0
    %1217 = vmatprep.subr.mxu0 0.0
    %1218 = vmatpush1.msra.mxu0 0.0
    %1219 = vmatprep.subr.mxu0 0.0
    %1220 = vmatpush1.msra.mxu0 0.0
    %1221 = vmatprep.subr.mxu0 0.0
    %1222 = vmatpush1.msra.mxu0 0.0
    %1223 = vmatprep.subr.mxu0 0.0
    %1224 = vmatpush1.msra.mxu0 0.0
    %1225 = vmatprep.subr.mxu0 0.0
    %1226 = vmatpush1.msra.mxu0 0.0
    %1227 = vmatprep.subr.mxu0 0.0
    %1228 = vmatpush1.msra.mxu0 0.0
    %1229 = vmatprep.subr.mxu0 0.0
    %1230 = vmatpush1.msra.mxu0 0.0
    %1231 = vmatprep.subr.mxu0 0.0
    %1232 = vmatpush1.msra.mxu0 0.0
    %1233 = vmatprep.subr.mxu0 0.0
    %1234 = vmatpush1.msra.mxu0 0.0
    %1235 = vmatprep.subr.mxu0 0.0
    %1236 = vmatpush1.msra.mxu0 0.0
    %1237 = vmatprep.subr.mxu0 0.0
    %1238 = vmatpush1.msra.mxu0 0.0
    %1239 = vmatprep.subr.mxu0 0.0
    %1240 = vmatpush1.msra.mxu0 0.0
    %1241 = vmatprep.subr.mxu0 0.0
    %1242 = vmatpush1.msra.mxu0 0.0
    %1243 = vmatprep.subr.mxu0 0.0
    %1244 = vmatpush1.msra.mxu0 0.0
    %1245 = vmatprep.subr.mxu0 0.0
    %1246 = vmatpush1.msra.mxu0 0.0
    %1247 = vmatprep.subr.mxu0 0.0
    %1248 = vmatpush1.msra.mxu0 0.0
    %1249 = vmatprep.subr.mxu0 0.0
    %1250 = vmatpush1.msra.mxu0 0.0
    %1251 = vmatprep.subr.mxu0 0.0
    %1252 = vmatpush1.msra.mxu0 0.0
    %1253 = vmatprep.subr.mxu0 0.0
    %1254 = vmatpush1.msra.mxu0 0.0
    %1255 = vmatprep.subr.mxu0 0.0
    %1256 = vmatpush1.msra.mxu0 0.0
    %1257 = vmatprep.subr.mxu0 0.0
    %1258 = vmatpush1.msra.mxu0 0.0
    %1259 = vmatprep.subr.mxu0 0.0
    %1260 = vmatpush1.msra.mxu0 0.0
    %1261 = vmatprep.subr.mxu0 0.0
    %1262 = vmatpush1.msra.mxu0 0.0
    %1263 = vmatprep.subr.mxu0 0.0
    %1264 = vmatpush1.msra.mxu0 0.0
    %1265 = vmatprep.subr.mxu0 0.0
    %1266 = vmatpush1.msra.mxu0 0.0
    %1267 = vmatprep.mubr.f32.mxu0 0.0
    %1268 = vmatmul.mubr.f32.gmra.mrb[0].mxu0 %v1192
    %v1269 = vpop.f32.mrb[0].mxu0
    %v1270 = vadd.f32 %v1190, %v1269
    %v1271 = vpop.f32.mrb[0].mxu0
    %1272 = vmatprep.mubr.f32.mxu0 0.0
    %1273 = vmatmul.mubr.f32.gmra.mrb[0].mxu0 %v1195
    %v1274 = vpop.f32.mrb[0].mxu0
    %v1275 = vadd.f32 %v1190, %v1274
    %v1276 = vpop.f32.mrb[0].mxu0
    %1277 = vmatprep.mubr.f32.mxu0 0.0
    %1278 = vmatmul.mubr.f32.gmra.mrb[0].mxu0 %v1198
    %v1279 = vpop.f32.mrb[0].mxu0
    %v1280 = vadd.f32 %v1190, %v1279
    %v1281 = vpop.f32.mrb[0].mxu0
    %1282 = vmatprep.mubr.f32.mxu0 0.0
    %1283 = vmatmul.mubr.f32.gmra.mrb[0].mxu0 %v1201
    %v1284 = vpop.f32.mrb[0].mxu0
    %v1285 = vadd.f32 %v1190, %v1284
    %v1286 = vpop.f32.mrb[0].mxu0
    %1287 = vdwg.mxu0
    %1290 = vrot.lane.b32.xlu0 %v1270, 96
    %v1291 = vpop.permute.xlu0 %1290
    %1292 = vrot.lane.b32.xlu0 %v1275, 96
    %v1293 = vpop.permute.xlu0 %1292
    %v1296 = vmul.f32 %v1270, %v1291
    %v1297 = vmul.f32 %v1275, %v1293
    %v1298 = vmul.f32 %v1280, %v1291
    %v1299 = vmul.f32 %v1285, %v1293
    %1302 = vrot.lane.b32.xlu0 %v1280, 96
    %v1303 = vpop.permute.xlu0 %1302
    %1304 = vrot.lane.b32.xlu0 %v1285, 96
    %v1305 = vpop.permute.xlu0 %1304
    %v1308 = vmul.f32 %v1270, %v1303
    %v1309 = vmul.f32 %v1275, %v1305
    %v1310 = vmul.f32 %v1280, %v1303
    %v1311 = vmul.f32 %v1285, %v1305
    %v1313 = vsel %vm44, %v1296, 0
    %v1316 = vsel %vm44, %v1297, 0
    %v1319 = vsel %vm44, %v1298, 0
    %v1322 = vsel %vm44, %v1299, 0
    %v1325 = vsel %vm44, %v1308, 0
    %v1328 = vsel %vm44, %v1309, 0
    %v1331 = vsel %vm44, %v1310, 0
    %v1334 = vsel %vm44, %v1311, 0
    %1336 = vmatprep.subr.mxu0 0.0
    %1337 = vmatpush1.msra.mxu0 %v1108
    %1338 = vmatprep.subr.mxu0 0.0
    %1339 = vmatpush1.msra.mxu0 %v1109
    %1340 = vmatprep.subr.mxu0 0.0
    %1341 = vmatpush1.msra.mxu0 %v1110
    %1342 = vmatprep.subr.mxu0 0.0
    %1343 = vmatpush1.msra.mxu0 %v1111
    %1344 = vmatprep.subr.mxu0 0.0
    %1345 = vmatpush1.msra.mxu0 0.0
    %1346 = vmatprep.subr.mxu0 0.0
    %1347 = vmatpush1.msra.mxu0 0.0
    %1348 = vmatprep.subr.mxu0 0.0
    %1349 = vmatpush1.msra.mxu0 0.0
    %1350 = vmatprep.subr.mxu0 0.0
    %1351 = vmatpush1.msra.mxu0 0.0
    %1352 = vmatprep.subr.mxu0 0.0
    %1353 = vmatpush1.msra.mxu0 0.0
    %1354 = vmatprep.subr.mxu0 0.0
    %1355 = vmatpush1.msra.mxu0 0.0
    %1356 = vmatprep.subr.mxu0 0.0
    %1357 = vmatpush1.msra.mxu0 0.0
    %1358 = vmatprep.subr.mxu0 0.0
    %1359 = vmatpush1.msra.mxu0 0.0
    %1360 = vmatprep.subr.mxu0 0.0
    %1361 = vmatpush1.msra.mxu0 0.0
    %1362 = vmatprep.subr.mxu0 0.0
    %1363 = vmatpush1.msra.mxu0 0.0
    %1364 = vmatprep.subr.mxu0 0.0
    %1365 = vmatpush1.msra.mxu0 0.0
    %1366 = vmatprep.subr.mxu0 0.0
    %1367 = vmatpush1.msra.mxu0 0.0
    %1368 = vmatprep.subr.mxu0 0.0
    %1369 = vmatpush1.msra.mxu0 0.0
    %1370 = vmatprep.subr.mxu0 0.0
    %1371 = vmatpush1.msra.mxu0 0.0
    %1372 = vmatprep.subr.mxu0 0.0
    %1373 = vmatpush1.msra.mxu0 0.0
    %1374 = vmatprep.subr.mxu0 0.0
    %1375 = vmatpush1.msra.mxu0 0.0
    %1376 = vmatprep.subr.mxu0 0.0
    %1377 = vmatpush1.msra.mxu0 0.0
    %1378 = vmatprep.subr.mxu0 0.0
    %1379 = vmatpush1.msra.mxu0 0.0
    %1380 = vmatprep.subr.mxu0 0.0
    %1381 = vmatpush1.msra.mxu0 0.0
    %1382 = vmatprep.subr.mxu0 0.0
    %1383 = vmatpush1.msra.mxu0 0.0
    %1384 = vmatprep.subr.mxu0 0.0
    %1385 = vmatpush1.msra.mxu0 0.0
    %1386 = vmatprep.subr.mxu0 0.0
    %1387 = vmatpush1.msra.mxu0 0.0
    %1388 = vmatprep.subr.mxu0 0.0
    %1389 = vmatpush1.msra.mxu0 0.0
    %1390 = vmatprep.subr.mxu0 0.0
    %1391 = vmatpush1.msra.mxu0 0.0
    %1392 = vmatprep.subr.mxu0 0.0
    %1393 = vmatpush1.msra.mxu0 0.0
    %1394 = vmatprep.subr.mxu0 0.0
    %1395 = vmatpush1.msra.mxu0 0.0
    %1396 = vmatprep.subr.mxu0 0.0
    %1397 = vmatpush1.msra.mxu0 0.0
    %1398 = vmatprep.subr.mxu0 0.0
    %1399 = vmatpush1.msra.mxu0 0.0
    %1400 = vmatprep.mubr.f32.mxu0 0.0
    %1401 = vmatmul.mubr.f32.gmra.mrb[0].mxu0 %v1313
    %v1402 = vpop.f32.mrb[0].mxu0
    %v1403 = vadd.f32 0.0, %v1402
    %v1404 = vpop.f32.mrb[0].mxu0
    %1405 = vmatprep.mubr.f32.mxu0 0.0
    %1406 = vmatmul.mubr.f32.gmra.mrb[0].mxu0 %v1316
    %v1407 = vpop.f32.mrb[0].mxu0
    %v1408 = vadd.f32 0.0, %v1407
    %v1409 = vpop.f32.mrb[0].mxu0
    %1410 = vmatprep.mubr.f32.mxu0 0.0
    %1411 = vmatmul.mubr.f32.gmra.mrb[0].mxu0 %v1319
    %v1412 = vpop.f32.mrb[0].mxu0
    %v1413 = vadd.f32 0.0, %v1412
    %v1414 = vpop.f32.mrb[0].mxu0
    %1415 = vmatprep.mubr.f32.mxu0 0.0
    %1416 = vmatmul.mubr.f32.gmra.mrb[0].mxu0 %v1322
    %v1417 = vpop.f32.mrb[0].mxu0
    %v1418 = vadd.f32 0.0, %v1417
    %v1419 = vpop.f32.mrb[0].mxu0
    %1420 = vmatprep.mubr.f32.mxu0 0.0
    %1421 = vmatmul.mubr.f32.gmra.mrb[0].mxu0 %v1325
    %v1422 = vpop.f32.mrb[0].mxu0
    %v1423 = vadd.f32 0.0, %v1422
    %v1424 = vpop.f32.mrb[0].mxu0
    %1425 = vmatprep.mubr.f32.mxu0 0.0
    %1426 = vmatmul.mubr.f32.gmra.mrb[0].mxu0 %v1328
    %v1427 = vpop.f32.mrb[0].mxu0
    %v1428 = vadd.f32 0.0, %v1427
    %v1429 = vpop.f32.mrb[0].mxu0
    %1430 = vmatprep.mubr.f32.mxu0 0.0
    %1431 = vmatmul.mubr.f32.gmra.mrb[0].mxu0 %v1331
    %v1432 = vpop.f32.mrb[0].mxu0
    %v1433 = vadd.f32 0.0, %v1432
    %v1434 = vpop.f32.mrb[0].mxu0
    %1435 = vmatprep.mubr.f32.mxu0 0.0
    %1436 = vmatmul.mubr.f32.gmra.mrb[0].mxu0 %v1334
    %v1437 = vpop.f32.mrb[0].mxu0
    %v1438 = vadd.f32 0.0, %v1437
    %v1439 = vpop.f32.mrb[0].mxu0
    %1440 = vdwg.mxu0
    %v1441 = vsub.f32 %v1423, %v1403
    %v1442 = vsub.f32 %v1428, %v1408
    %v1443 = vsub.f32 %v1433, %v1413
    %v1444 = vsub.f32 %v1438, %v1418
    %v1445 = vmul.f32 %v1441, 1.442695
    %v1446 = vpow.pop %v1445
    %v1447 = vmul.f32 %v1442, 1.442695
    %v1448 = vpow.pop %v1447
    %v1449 = vmul.f32 %v1443, 1.442695
    %v1450 = vpow.pop %v1449
    %v1451 = vmul.f32 %v1444, 1.442695
    %v1452 = vpow.pop %v1451
    %v1453 = vadd.f32 %v1446, 1.0
    %v1454 = vadd.f32 %v1448, 1.0
    %v1455 = vadd.f32 %v1450, 1.0
    %v1456 = vadd.f32 %v1452, 1.0
    %v1457 = vrcp.pop %v1453
    %v1458 = vrcp.pop %v1454
    %v1459 = vrcp.pop %v1455
    %v1460 = vrcp.pop %v1456
    %v1461 = vsub.f32 1.0, %v1457
    %v1462 = vsub.f32 1.0, %v1458
    %v1463 = vsub.f32 1.0, %v1459
    %v1464 = vsub.f32 1.0, %v1460
    %vm1465 = vcmask 31744
    %v1467 = vsel %vm1465, %v1457, 0
    %v1470 = vsel %vm1465, %v1458, 0
    %v1473 = vsel %vm1465, %v1459, 0
    %v1476 = vsel %vm1465, %v1460, 0
    %v1479 = vsel %vm1465, %v1461, 0
    %v1482 = vsel %vm1465, %v1462, 0
    %v1485 = vsel %vm1465, %v1463, 0
    %v1488 = vsel %vm1465, %v1464, 0
    %vm1490 = vcmask 1043456
    %v1492 = vsel %vm1490, %v1112, 0
    %1494 = vmatprep.subr.mxu0 0.0
    %1495 = vmatpush1.msra.mxu0 %v1492
    %1496 = vmatprep.subr.mxu0 0.0
    %1497 = vmatpush1.msra.mxu0 0.0
    %1498 = vmatprep.subr.mxu0 0.0
    %1499 = vmatpush1.msra.mxu0 0.0
    %1500 = vmatprep.subr.mxu0 0.0
    %1501 = vmatpush1.msra.mxu0 0.0
    %1502 = vmatprep.subr.mxu0 0.0
    %1503 = vmatpush1.msra.mxu0 0.0
    %1504 = vmatprep.subr.mxu0 0.0
    %1505 = vmatpush1.msra.mxu0 0.0
    %1506 = vmatprep.subr.mxu0 0.0
    %1507 = vmatpush1.msra.mxu0 0.0
    %1508 = vmatprep.subr.mxu0 0.0
    %1509 = vmatpush1.msra.mxu0 0.0
    %1510 = vmatprep.subr.mxu0 0.0
    %1511 = vmatpush1.msra.mxu0 0.0
    %1512 = vmatprep.subr.mxu0 0.0
    %1513 = vmatpush1.msra.mxu0 0.0
    %1514 = vmatprep.subr.mxu0 0.0
    %1515 = vmatpush1.msra.mxu0 0.0
    %1516 = vmatprep.subr.mxu0 0.0
    %1517 = vmatpush1.msra.mxu0 0.0
    %1518 = vmatprep.subr.mxu0 0.0
    %1519 = vmatpush1.msra.mxu0 0.0
    %1520 = vmatprep.subr.mxu0 0.0
    %1521 = vmatpush1.msra.mxu0 0.0
    %1522 = vmatprep.subr.mxu0 0.0
    %1523 = vmatpush1.msra.mxu0 0.0
    %1524 = vmatprep.subr.mxu0 0.0
    %1525 = vmatpush1.msra.mxu0 0.0
    %1526 = vmatprep.subr.mxu0 0.0
    %1527 = vmatpush1.msra.mxu0 0.0
    %1528 = vmatprep.subr.mxu0 0.0
    %1529 = vmatpush1.msra.mxu0 0.0
    %1530 = vmatprep.subr.mxu0 0.0
    %1531 = vmatpush1.msra.mxu0 0.0
    %1532 = vmatprep.subr.mxu0 0.0
    %1533 = vmatpush1.msra.mxu0 0.0
    %1534 = vmatprep.subr.mxu0 0.0
    %1535 = vmatpush1.msra.mxu0 0.0
    %1536 = vmatprep.subr.mxu0 0.0
    %1537 = vmatpush1.msra.mxu0 0.0
    %1538 = vmatprep.subr.mxu0 0.0
    %1539 = vmatpush1.msra.mxu0 0.0
    %1540 = vmatprep.subr.mxu0 0.0
    %1541 = vmatpush1.msra.mxu0 0.0
    %1542 = vmatprep.subr.mxu0 0.0
    %1543 = vmatpush1.msra.mxu0 0.0
    %1544 = vmatprep.subr.mxu0 0.0
    %1545 = vmatpush1.msra.mxu0 0.0
    %1546 = vmatprep.subr.mxu0 0.0
    %1547 = vmatpush1.msra.mxu0 0.0
    %1548 = vmatprep.subr.mxu0 0.0
    %1549 = vmatpush1.msra.mxu0 0.0
    %1550 = vmatprep.subr.mxu0 0.0
    %1551 = vmatpush1.msra.mxu0 0.0
    %1552 = vmatprep.subr.mxu0 0.0
    %1553 = vmatpush1.msra.mxu0 0.0
    %1554 = vmatprep.subr.mxu0 0.0
    %1555 = vmatpush1.msra.mxu0 0.0
    %1556 = vmatprep.subr.mxu0 0.0
    %1557 = vmatpush1.msra.mxu0 0.0
    %1558 = vmatprep.mubr.f32.mxu0 0.0
    %1559 = vmatmul.mubr.f32.gmra.mrb[0].mxu0 %v1467
    %v1560 = vpop.f32.mrb[0].mxu0
    %v1561 = vadd.f32 0.0, %v1560
    %v1562 = vpop.f32.mrb[0].mxu0
    %1563 = vmatprep.mubr.f32.mxu0 0.0
    %1564 = vmatmul.mubr.f32.gmra.mrb[0].mxu0 %v1470
    %v1565 = vpop.f32.mrb[0].mxu0
    %v1566 = vadd.f32 0.0, %v1565
    %v1567 = vpop.f32.mrb[0].mxu0
    %1568 = vmatprep.mubr.f32.mxu0 0.0
    %1569 = vmatmul.mubr.f32.gmra.mrb[0].mxu0 %v1473
    %v1570 = vpop.f32.mrb[0].mxu0
    %v1571 = vadd.f32 0.0, %v1570
    %v1572 = vpop.f32.mrb[0].mxu0
    %1573 = vmatprep.mubr.f32.mxu0 0.0
    %1574 = vmatmul.mubr.f32.gmra.mrb[0].mxu0 %v1476
    %v1575 = vpop.f32.mrb[0].mxu0
    %v1576 = vadd.f32 0.0, %v1575
    %v1577 = vpop.f32.mrb[0].mxu0
    %1578 = vmatprep.mubr.f32.mxu0 0.0
    %1579 = vmatmul.mubr.f32.gmra.mrb[0].mxu0 %v1479
    %v1580 = vpop.f32.mrb[0].mxu0
    %v1581 = vadd.f32 0.0, %v1580
    %v1582 = vpop.f32.mrb[0].mxu0
    %1583 = vmatprep.mubr.f32.mxu0 0.0
    %1584 = vmatmul.mubr.f32.gmra.mrb[0].mxu0 %v1482
    %v1585 = vpop.f32.mrb[0].mxu0
    %v1586 = vadd.f32 0.0, %v1585
    %v1587 = vpop.f32.mrb[0].mxu0
    %1588 = vmatprep.mubr.f32.mxu0 0.0
    %1589 = vmatmul.mubr.f32.gmra.mrb[0].mxu0 %v1485
    %v1590 = vpop.f32.mrb[0].mxu0
    %v1591 = vadd.f32 0.0, %v1590
    %v1592 = vpop.f32.mrb[0].mxu0
    %1593 = vmatprep.mubr.f32.mxu0 0.0
    %1594 = vmatmul.mubr.f32.gmra.mrb[0].mxu0 %v1488
    %v1595 = vpop.f32.mrb[0].mxu0
    %v1596 = vadd.f32 0.0, %v1595
    %v1597 = vpop.f32.mrb[0].mxu0
    %1598 = vdwg.mxu0
    %1599 = vrot.lane.b32.xlu0 %v1270, 64
    %v1600 = vpop.permute.xlu0 %1599
    %1601 = vrot.lane.b32.xlu0 %v1275, 64
    %v1602 = vpop.permute.xlu0 %1601
    %v1605 = vmul.f32 %v1561, %v1600
    %v1606 = vmul.f32 %v1566, %v1602
    %v1607 = vmul.f32 %v1571, %v1600
    %v1608 = vmul.f32 %v1576, %v1602
    %1609 = vrot.lane.b32.xlu0 %v1280, 64
    %v1610 = vpop.permute.xlu0 %1609
    %1611 = vrot.lane.b32.xlu0 %v1285, 64
    %v1612 = vpop.permute.xlu0 %1611
    %v1615 = vmul.f32 %v1581, %v1610
    %v1616 = vmul.f32 %v1586, %v1612
    %v1617 = vmul.f32 %v1591, %v1610
    %v1618 = vmul.f32 %v1596, %v1612
    %v1619 = vadd.f32 %v1605, %v1615
    %v1620 = vadd.f32 %v1606, %v1616
    %v1621 = vadd.f32 %v1607, %v1617
    %v1622 = vadd.f32 %v1608, %v1618
    %v1623 = vld [vmem:[#allocation2 + $0x170] sm:$0xff]
    %v1624 = vld [vmem:[#allocation2 + $0x178] sm:$0xff]
    %v1625 = vld [vmem:[#allocation2 + $0x180] sm:$0xff]
    %v1626 = vld [vmem:[#allocation2 + $0x188] sm:$0xff]
    %v1628 = vsel %vm44, %v1619, 0
    %v1631 = vsel %vm44, %v1620, 0
    %v1634 = vsel %vm44, %v1621, 0
    %v1637 = vsel %vm44, %v1622, 0
    %1639 = vmatprep.subr.mxu0 0.0
    %1640 = vmatpush1.msra.mxu0 %v1623
    %1641 = vmatprep.subr.mxu0 0.0
    %1642 = vmatpush1.msra.mxu0 %v1624
    %1643 = vmatprep.subr.mxu0 0.0
    %1644 = vmatpush1.msra.mxu0 %v1625
    %1645 = vmatprep.subr.mxu0 0.0
    %1646 = vmatpush1.msra.mxu0 %v1626
    %1647 = vmatprep.subr.mxu0 0.0
    %1648 = vmatpush1.msra.mxu0 0.0
    %1649 = vmatprep.subr.mxu0 0.0
    %1650 = vmatpush1.msra.mxu0 0.0
    %1651 = vmatprep.subr.mxu0 0.0
    %1652 = vmatpush1.msra.mxu0 0.0
    %1653 = vmatprep.subr.mxu0 0.0
    %1654 = vmatpush1.msra.mxu0 0.0
    %1655 = vmatprep.subr.mxu0 0.0
    %1656 = vmatpush1.msra.mxu0 0.0
    %1657 = vmatprep.subr.mxu0 0.0
    %1658 = vmatpush1.msra.mxu0 0.0
    %1659 = vmatprep.subr.mxu0 0.0
    %1660 = vmatpush1.msra.mxu0 0.0
    %1661 = vmatprep.subr.mxu0 0.0
    %1662 = vmatpush1.msra.mxu0 0.0
    %1663 = vmatprep.subr.mxu0 0.0
    %1664 = vmatpush1.msra.mxu0 0.0
    %1665 = vmatprep.subr.mxu0 0.0
    %1666 = vmatpush1.msra.mxu0 0.0
    %1667 = vmatprep.subr.mxu0 0.0
    %1668 = vmatpush1.msra.mxu0 0.0
    %1669 = vmatprep.subr.mxu0 0.0
    %1670 = vmatpush1.msra.mxu0 0.0
    %1671 = vmatprep.subr.mxu0 0.0
    %1672 = vmatpush1.msra.mxu0 0.0
    %1673 = vmatprep.subr.mxu0 0.0
    %1674 = vmatpush1.msra.mxu0 0.0
    %1675 = vmatprep.subr.mxu0 0.0
    %1676 = vmatpush1.msra.mxu0 0.0
    %1677 = vmatprep.subr.mxu0 0.0
    %1678 = vmatpush1.msra.mxu0 0.0
    %1679 = vmatprep.subr.mxu0 0.0
    %1680 = vmatpush1.msra.mxu0 0.0
    %1681 = vmatprep.subr.mxu0 0.0
    %1682 = vmatpush1.msra.mxu0 0.0
    %1683 = vmatprep.subr.mxu0 0.0
    %1684 = vmatpush1.msra.mxu0 0.0
    %1685 = vmatprep.subr.mxu0 0.0
    %1686 = vmatpush1.msra.mxu0 0.0
    %1687 = vmatprep.subr.mxu0 0.0
    %1688 = vmatpush1.msra.mxu0 0.0
    %1689 = vmatprep.subr.mxu0 0.0
    %1690 = vmatpush1.msra.mxu0 0.0
    %1691 = vmatprep.subr.mxu0 0.0
    %1692 = vmatpush1.msra.mxu0 0.0
    %1693 = vmatprep.subr.mxu0 0.0
    %1694 = vmatpush1.msra.mxu0 0.0
    %1695 = vmatprep.subr.mxu0 0.0
    %1696 = vmatpush1.msra.mxu0 0.0
    %1697 = vmatprep.subr.mxu0 0.0
    %1698 = vmatpush1.msra.mxu0 0.0
    %1699 = vmatprep.subr.mxu0 0.0
    %1700 = vmatpush1.msra.mxu0 0.0
    %1701 = vmatprep.subr.mxu0 0.0
    %1702 = vmatpush1.msra.mxu0 0.0
    %1703 = vmatprep.mubr.f32.mxu0 0.0
    %1704 = vmatmul.mubr.f32.gmra.mrb[0].mxu0 %v1628
    %v1705 = vpop.f32.mrb[0].mxu0
    %v1706 = vadd.f32 0.0, %v1705
    %v1707 = vpop.f32.mrb[0].mxu0
    %1708 = vmatprep.mubr.f32.mxu0 0.0
    %1709 = vmatmul.mubr.f32.gmra.mrb[0].mxu0 %v1631
    %v1710 = vpop.f32.mrb[0].mxu0
    %v1711 = vadd.f32 0.0, %v1710
    %v1712 = vpop.f32.mrb[0].mxu0
    %1713 = vmatprep.mubr.f32.mxu0 0.0
    %1714 = vmatmul.mubr.f32.gmra.mrb[0].mxu0 %v1634
    %v1715 = vpop.f32.mrb[0].mxu0
    %v1716 = vadd.f32 0.0, %v1715
    %v1717 = vpop.f32.mrb[0].mxu0
    %1718 = vmatprep.mubr.f32.mxu0 0.0
    %1719 = vmatmul.mubr.f32.gmra.mrb[0].mxu0 %v1637
    %v1720 = vpop.f32.mrb[0].mxu0
    %v1721 = vadd.f32 0.0, %v1720
    %v1722 = vpop.f32.mrb[0].mxu0
    %1723 = vdwg.mxu0
    %v1724 = vadd.f32 %v1179, %v1706
    %v1725 = vadd.f32 %v1180, %v1711
    %v1726 = vadd.f32 %v1181, %v1716
    %v1727 = vadd.f32 %v1182, %v1721
    %v1728 = vlaneseq
    %v1729 = vshrl.u32 %v1728, 7
    %v1730 = vsub.s32 3, %v1729
    %v1731 = vrot.slane %v1113, %v1730
    %v1732 = vadd.f32 %v1724, %v1731
    %v1733 = vadd.f32 %v1725, %v1731
    %v1734 = vadd.f32 %v1726, %v1731
    %v1735 = vadd.f32 %v1727, %v1731
    %v1736 = vsel %vm44, %v1732, 0.0
    %1737 = vadd.xlane.f32.xlu0 %v1736
    %v1738 = vpop.xlane.xlu0 %1737
    %v1739 = vsel %vm44, %v1733, 0.0
    %1740 = vadd.xlane.f32.xlu0 %v1739
    %v1741 = vpop.xlane.xlu0 %1740
    %v1742 = vsel %vm44, %v1734, 0.0
    %1743 = vadd.xlane.f32.xlu0 %v1742
    %v1744 = vpop.xlane.xlu0 %1743
    %v1745 = vsel %vm44, %v1735, 0.0
    %1746 = vadd.xlane.f32.xlu0 %v1745
    %v1747 = vpop.xlane.xlu0 %1746
    %v1748 = vmul.f32 %v1738, %v1126
    %v1749 = vmul.f32 %v1741, %v1126
    %v1750 = vmul.f32 %v1744, %v1126
    %v1751 = vmul.f32 %v1747, %v1126
    %v1752 = vsub.f32 %v1732, %v1748
    %v1753 = vsub.f32 %v1733, %v1749
    %v1754 = vsub.f32 %v1734, %v1750
    %v1755 = vsub.f32 %v1735, %v1751
    %v1756 = vmul.f32 %v1752, %v1752
    %v1757 = vmul.f32 %v1753, %v1753
    %v1758 = vmul.f32 %v1754, %v1754
    %v1759 = vmul.f32 %v1755, %v1755
    %v1760 = vsel %vm44, %v1756, 0.0
    %1761 = vadd.xlane.f32.xlu0 %v1760
    %v1762 = vpop.xlane.xlu0 %1761
    %v1763 = vsel %vm44, %v1757, 0.0
    %1764 = vadd.xlane.f32.xlu0 %v1763
    %v1765 = vpop.xlane.xlu0 %1764
    %v1766 = vsel %vm44, %v1758, 0.0
    %1767 = vadd.xlane.f32.xlu0 %v1766
    %v1768 = vpop.xlane.xlu0 %1767
    %v1769 = vsel %vm44, %v1759, 0.0
    %1770 = vadd.xlane.f32.xlu0 %v1769
    %v1771 = vpop.xlane.xlu0 %1770
    %v1772 = vmul.f32 %v1762, %v1126
    %v1773 = vmul.f32 %v1765, %v1126
    %v1774 = vmul.f32 %v1768, %v1126
    %v1775 = vmul.f32 %v1771, %v1126
    %v1776 = vadd.f32 %v1772, 1e-05
    %v1777 = vadd.f32 %v1773, 1e-05
    %v1778 = vadd.f32 %v1774, 1e-05
    %v1779 = vadd.f32 %v1775, 1e-05
    %v1780 = vrsqrt.pop %v1776
    %v1781 = vrsqrt.pop %v1777
    %v1782 = vrsqrt.pop %v1778
    %v1783 = vrsqrt.pop %v1779
    %v1784 = vmul.f32 %v1752, %v1780
    %v1785 = vmul.f32 %v1753, %v1781
    %v1786 = vmul.f32 %v1754, %v1782
    %v1787 = vmul.f32 %v1755, %v1783
    %v1788 = vlaneseq
    %v1789 = vshrl.u32 %v1788, 7
    %v1790 = vsub.s32 4, %v1789
    %v1791 = vrot.slane %v1113, %v1790
    %v1792 = vmul.f32 %v1784, %v1791
    %v1793 = vmul.f32 %v1785, %v1791
    %v1794 = vmul.f32 %v1786, %v1791
    %v1795 = vmul.f32 %v1787, %v1791
    %v1796 = vlaneseq
    %v1797 = vshrl.u32 %v1796, 7
    %v1798 = vsub.s32 5, %v1797
    %v1799 = vrot.slane %v1113, %v1798
    %v1800 = vadd.f32 %v1792, %v1799
    %v1801 = vadd.f32 %v1793, %v1799
    %v1802 = vadd.f32 %v1794, %v1799
    %v1803 = vadd.f32 %v1795, %v1799
    %v1804 = vld [vmem:[#allocation2 + $0x190] sm:$0xff]
    %v1805 = vld [vmem:[#allocation2 + $0x198] sm:$0xff]
    %v1806 = vld [vmem:[#allocation2 + $0x1a0] sm:$0xff]
    %v1807 = vld [vmem:[#allocation2 + $0x1a8] sm:$0xff]
    %v1808 = vlaneseq
    %v1809 = vshrl.u32 %v1808, 7
    %v1810 = vsub.s32 6, %v1809
    %v1811 = vrot.slane %v1113, %v1810
    %v1813 = vsel %vm44, %v1800, 0
    %v1816 = vsel %vm44, %v1801, 0
    %v1819 = vsel %vm44, %v1802, 0
    %v1822 = vsel %vm44, %v1803, 0
    %1824 = vmatprep.subr.mxu0 0.0
    %1825 = vmatpush1.msra.mxu0 %v1804
    %1826 = vmatprep.subr.mxu0 0.0
    %1827 = vmatpush1.msra.mxu0 %v1805
    %1828 = vmatprep.subr.mxu0 0.0
    %1829 = vmatpush1.msra.mxu0 %v1806
    %1830 = vmatprep.subr.mxu0 0.0
    %1831 = vmatpush1.msra.mxu0 %v1807
    %1832 = vmatprep.subr.mxu0 0.0
    %1833 = vmatpush1.msra.mxu0 0.0
    %1834 = vmatprep.subr.mxu0 0.0
    %1835 = vmatpush1.msra.mxu0 0.0
    %1836 = vmatprep.subr.mxu0 0.0
    %1837 = vmatpush1.msra.mxu0 0.0
    %1838 = vmatprep.subr.mxu0 0.0
    %1839 = vmatpush1.msra.mxu0 0.0
    %1840 = vmatprep.subr.mxu0 0.0
    %1841 = vmatpush1.msra.mxu0 0.0
    %1842 = vmatprep.subr.mxu0 0.0
    %1843 = vmatpush1.msra.mxu0 0.0
    %1844 = vmatprep.subr.mxu0 0.0
    %1845 = vmatpush1.msra.mxu0 0.0
    %1846 = vmatprep.subr.mxu0 0.0
    %1847 = vmatpush1.msra.mxu0 0.0
    %1848 = vmatprep.subr.mxu0 0.0
    %1849 = vmatpush1.msra.mxu0 0.0
    %1850 = vmatprep.subr.mxu0 0.0
    %1851 = vmatpush1.msra.mxu0 0.0
    %1852 = vmatprep.subr.mxu0 0.0
    %1853 = vmatpush1.msra.mxu0 0.0
    %1854 = vmatprep.subr.mxu0 0.0
    %1855 = vmatpush1.msra.mxu0 0.0
    %1856 = vmatprep.subr.mxu0 0.0
    %1857 = vmatpush1.msra.mxu0 0.0
    %1858 = vmatprep.subr.mxu0 0.0
    %1859 = vmatpush1.msra.mxu0 0.0
    %1860 = vmatprep.subr.mxu0 0.0
    %1861 = vmatpush1.msra.mxu0 0.0
    %1862 = vmatprep.subr.mxu0 0.0
    %1863 = vmatpush1.msra.mxu0 0.0
    %1864 = vmatprep.subr.mxu0 0.0
    %1865 = vmatpush1.msra.mxu0 0.0
    %1866 = vmatprep.subr.mxu0 0.0
    %1867 = vmatpush1.msra.mxu0 0.0
    %1868 = vmatprep.subr.mxu0 0.0
    %1869 = vmatpush1.msra.mxu0 0.0
    %1870 = vmatprep.subr.mxu0 0.0
    %1871 = vmatpush1.msra.mxu0 0.0
    %1872 = vmatprep.subr.mxu0 0.0
    %1873 = vmatpush1.msra.mxu0 0.0
    %1874 = vmatprep.subr.mxu0 0.0
    %1875 = vmatpush1.msra.mxu0 0.0
    %1876 = vmatprep.subr.mxu0 0.0
    %1877 = vmatpush1.msra.mxu0 0.0
    %1878 = vmatprep.subr.mxu0 0.0
    %1879 = vmatpush1.msra.mxu0 0.0
    %1880 = vmatprep.subr.mxu0 0.0
    %1881 = vmatpush1.msra.mxu0 0.0
    %1882 = vmatprep.subr.mxu0 0.0
    %1883 = vmatpush1.msra.mxu0 0.0
    %1884 = vmatprep.subr.mxu0 0.0
    %1885 = vmatpush1.msra.mxu0 0.0
    %1886 = vmatprep.subr.mxu0 0.0
    %1887 = vmatpush1.msra.mxu0 0.0
    %1888 = vmatprep.mubr.f32.mxu0 0.0
    %1889 = vmatmul.mubr.f32.gmra.mrb[0].mxu0 %v1813
    %v1890 = vpop.f32.mrb[0].mxu0
    %v1891 = vadd.f32 %v1811, %v1890
    %v1892 = vpop.f32.mrb[0].mxu0
    %1893 = vmatprep.mubr.f32.mxu0 0.0
    %1894 = vmatmul.mubr.f32.gmra.mrb[0].mxu0 %v1816
    %v1895 = vpop.f32.mrb[0].mxu0
    %v1896 = vadd.f32 %v1811, %v1895
    %v1897 = vpop.f32.mrb[0].mxu0
    %1898 = vmatprep.mubr.f32.mxu0 0.0
    %1899 = vmatmul.mubr.f32.gmra.mrb[0].mxu0 %v1819
    %v1900 = vpop.f32.mrb[0].mxu0
    %v1901 = vadd.f32 %v1811, %v1900
    %v1902 = vpop.f32.mrb[0].mxu0
    %1903 = vmatprep.mubr.f32.mxu0 0.0
    %1904 = vmatmul.mubr.f32.gmra.mrb[0].mxu0 %v1822
    %v1905 = vpop.f32.mrb[0].mxu0
    %v1906 = vadd.f32 %v1811, %v1905
    %v1907 = vpop.f32.mrb[0].mxu0
    %1908 = vdwg.mxu0
    %v1909 = vmul.f32 %v1891, 0.5
    %v1910 = vmul.f32 %v1896, 0.5
    %v1911 = vmul.f32 %v1901, 0.5
    %v1912 = vmul.f32 %v1906, 0.5
    %v1913 = vmul.f32 %v1891, 0.044715
    %v1914 = vmul.f32 %v1896, 0.044715
    %v1915 = vmul.f32 %v1901, 0.044715
    %v1916 = vmul.f32 %v1906, 0.044715
    %v1917 = vmul.f32 %v1913, %v1891
    %v1918 = vmul.f32 %v1914, %v1896
    %v1919 = vmul.f32 %v1915, %v1901
    %v1920 = vmul.f32 %v1916, %v1906
    %v1921 = vmul.f32 %v1917, %v1891
    %v1922 = vmul.f32 %v1918, %v1896
    %v1923 = vmul.f32 %v1919, %v1901
    %v1924 = vmul.f32 %v1920, %v1906
    %v1925 = vadd.f32 %v1891, %v1921
    %v1926 = vadd.f32 %v1896, %v1922
    %v1927 = vadd.f32 %v1901, %v1923
    %v1928 = vadd.f32 %v1906, %v1924
    %v1929 = vmul.f32 %v1925, 0.7978846
    %v1930 = vmul.f32 %v1926, 0.7978846
    %v1931 = vmul.f32 %v1927, 0.7978846
    %v1932 = vmul.f32 %v1928, 0.7978846
    %v1933 = vtanh.pop %v1929
    %v1934 = vtanh.pop %v1930
    %v1935 = vtanh.pop %v1931
    %v1936 = vtanh.pop %v1932
    %v1937 = vadd.f32 %v1933, 1.0
    %v1938 = vadd.f32 %v1934, 1.0
    %v1939 = vadd.f32 %v1935, 1.0
    %v1940 = vadd.f32 %v1936, 1.0
    %v1941 = vmul.f32 %v1909, %v1937
    %v1942 = vmul.f32 %v1910, %v1938
    %v1943 = vmul.f32 %v1911, %v1939
    %v1944 = vmul.f32 %v1912, %v1940
    %v1945 = vld [vmem:[#allocation2 + $0x1b0] sm:$0xff]
    %v1946 = vld [vmem:[#allocation2 + $0x1b8] sm:$0xff]
    %v1947 = vld [vmem:[#allocation2 + $0x1c0] sm:$0xff]
    %v1948 = vld [vmem:[#allocation2 + $0x1c8] sm:$0xff]
    %v1949 = vlaneseq
    %v1950 = vshrl.u32 %v1949, 7
    %v1951 = vsub.s32 7, %v1950
    %v1952 = vrot.slane %v1113, %v1951
    %v1954 = vsel %vm44, %v1941, 0
    %v1957 = vsel %vm44, %v1942, 0
    %v1960 = vsel %vm44, %v1943, 0
    %v1963 = vsel %vm44, %v1944, 0
    %1965 = vmatprep.subr.mxu0 0.0
    %1966 = vmatpush1.msra.mxu0 %v1945
    %1967 = vmatprep.subr.mxu0 0.0
    %1968 = vmatpush1.msra.mxu0 %v1946
    %1969 = vmatprep.subr.mxu0 0.0
    %1970 = vmatpush1.msra.mxu0 %v1947
    %1971 = vmatprep.subr.mxu0 0.0
    %1972 = vmatpush1.msra.mxu0 %v1948
    %1973 = vmatprep.subr.mxu0 0.0
    %1974 = vmatpush1.msra.mxu0 0.0
    %1975 = vmatprep.subr.mxu0 0.0
    %1976 = vmatpush1.msra.mxu0 0.0
    %1977 = vmatprep.subr.mxu0 0.0
    %1978 = vmatpush1.msra.mxu0 0.0
    %1979 = vmatprep.subr.mxu0 0.0
    %1980 = vmatpush1.msra.mxu0 0.0
    %1981 = vmatprep.subr.mxu0 0.0
    %1982 = vmatpush1.msra.mxu0 0.0
    %1983 = vmatprep.subr.mxu0 0.0
    %1984 = vmatpush1.msra.mxu0 0.0
    %1985 = vmatprep.subr.mxu0 0.0
    %1986 = vmatpush1.msra.mxu0 0.0
    %1987 = vmatprep.subr.mxu0 0.0
    %1988 = vmatpush1.msra.mxu0 0.0
    %1989 = vmatprep.subr.mxu0 0.0
    %1990 = vmatpush1.msra.mxu0 0.0
    %1991 = vmatprep.subr.mxu0 0.0
    %1992 = vmatpush1.msra.mxu0 0.0
    %1993 = vmatprep.subr.mxu0 0.0
    %1994 = vmatpush1.msra.mxu0 0.0
    %1995 = vmatprep.subr.mxu0 0.0
    %1996 = vmatpush1.msra.mxu0 0.0
    %1997 = vmatprep.subr.mxu0 0.0
    %1998 = vmatpush1.msra.mxu0 0.0
    %1999 = vmatprep.subr.mxu0 0.0
    %2000 = vmatpush1.msra.mxu0 0.0
    %2001 = vmatprep.subr.mxu0 0.0
    %2002 = vmatpush1.msra.mxu0 0.0
    %2003 = vmatprep.subr.mxu0 0.0
    %2004 = vmatpush1.msra.mxu0 0.0
    %2005 = vmatprep.subr.mxu0 0.0
    %2006 = vmatpush1.msra.mxu0 0.0
    %2007 = vmatprep.subr.mxu0 0.0
    %2008 = vmatpush1.msra.mxu0 0.0
    %2009 = vmatprep.subr.mxu0 0.0
    %2010 = vmatpush1.msra.mxu0 0.0
    %2011 = vmatprep.subr.mxu0 0.0
    %2012 = vmatpush1.msra.mxu0 0.0
    %2013 = vmatprep.subr.mxu0 0.0
    %2014 = vmatpush1.msra.mxu0 0.0
    %2015 = vmatprep.subr.mxu0 0.0
    %2016 = vmatpush1.msra.mxu0 0.0
    %2017 = vmatprep.subr.mxu0 0.0
    %2018 = vmatpush1.msra.mxu0 0.0
    %2019 = vmatprep.subr.mxu0 0.0
    %2020 = vmatpush1.msra.mxu0 0.0
    %2021 = vmatprep.subr.mxu0 0.0
    %2022 = vmatpush1.msra.mxu0 0.0
    %2023 = vmatprep.subr.mxu0 0.0
    %2024 = vmatpush1.msra.mxu0 0.0
    %2025 = vmatprep.subr.mxu0 0.0
    %2026 = vmatpush1.msra.mxu0 0.0
    %2027 = vmatprep.subr.mxu0 0.0
    %2028 = vmatpush1.msra.mxu0 0.0
    %2029 = vmatprep.mubr.f32.mxu0 0.0
    %2030 = vmatmul.mubr.f32.gmra.mrb[0].mxu0 %v1954
    %v2031 = vpop.f32.mrb[0].mxu0
    %v2032 = vadd.f32 %v1952, %v2031
    %v2033 = vpop.f32.mrb[0].mxu0
    %2034 = vmatprep.mubr.f32.mxu0 0.0
    %2035 = vmatmul.mubr.f32.gmra.mrb[0].mxu0 %v1957
    %v2036 = vpop.f32.mrb[0].mxu0
    %v2037 = vadd.f32 %v1952, %v2036
    %v2038 = vpop.f32.mrb[0].mxu0
    %2039 = vmatprep.mubr.f32.mxu0 0.0
    %2040 = vmatmul.mubr.f32.gmra.mrb[0].mxu0 %v1960
    %v2041 = vpop.f32.mrb[0].mxu0
    %v2042 = vadd.f32 %v1952, %v2041
    %v2043 = vpop.f32.mrb[0].mxu0
    %2044 = vmatprep.mubr.f32.mxu0 0.0
    %2045 = vmatmul.mubr.f32.gmra.mrb[0].mxu0 %v1963
    %v2046 = vpop.f32.mrb[0].mxu0
    %v2047 = vadd.f32 %v1952, %v2046
    %v2048 = vpop.f32.mrb[0].mxu0
    %2049 = vdwg.mxu0
    %v2050 = vadd.f32 %v1800, %v2032
    %v2051 = vadd.f32 %v1801, %v2037
    %v2052 = vadd.f32 %v1802, %v2042
    %v2053 = vadd.f32 %v1803, %v2047
    %v2054 = vld [vmem:[#allocation2 + $0x258] sm:$0xff]
    %v2055 = vsel %vm44, %v2050, 0.0
    %2056 = vadd.xlane.f32.xlu0 %v2055
    %v2057 = vpop.xlane.xlu0 %2056
    %v2058 = vsel %vm44, %v2051, 0.0
    %2059 = vadd.xlane.f32.xlu0 %v2058
    %v2060 = vpop.xlane.xlu0 %2059
    %v2061 = vsel %vm44, %v2052, 0.0
    %2062 = vadd.xlane.f32.xlu0 %v2061
    %v2063 = vpop.xlane.xlu0 %2062
    %v2064 = vsel %vm44, %v2053, 0.0
    %2065 = vadd.xlane.f32.xlu0 %v2064
    %v2066 = vpop.xlane.xlu0 %2065
    %v2067 = vmul.f32 %v2057, %v1126
    %v2068 = vmul.f32 %v2060, %v1126
    %v2069 = vmul.f32 %v2063, %v1126
    %v2070 = vmul.f32 %v2066, %v1126
    %v2071 = vsub.f32 %v2050, %v2067
    %v2072 = vsub.f32 %v2051, %v2068
    %v2073 = vsub.f32 %v2052, %v2069
    %v2074 = vsub.f32 %v2053, %v2070
    %v2075 = vmul.f32 %v2071, %v2071
    %v2076 = vmul.f32 %v2072, %v2072
    %v2077 = vmul.f32 %v2073, %v2073
    %v2078 = vmul.f32 %v2074, %v2074
    %v2079 = vsel %vm44, %v2075, 0.0
    %2080 = vadd.xlane.f32.xlu0 %v2079
    %v2081 = vpop.xlane.xlu0 %2080
    %v2082 = vsel %vm44, %v2076, 0.0
    %2083 = vadd.xlane.f32.xlu0 %v2082
    %v2084 = vpop.xlane.xlu0 %2083
    %v2085 = vsel %vm44, %v2077, 0.0
    %2086 = vadd.xlane.f32.xlu0 %v2085
    %v2087 = vpop.xlane.xlu0 %2086
    %v2088 = vsel %vm44, %v2078, 0.0
    %2089 = vadd.xlane.f32.xlu0 %v2088
    %v2090 = vpop.xlane.xlu0 %2089
    %v2091 = vmul.f32 %v2081, %v1126
    %v2092 = vmul.f32 %v2084, %v1126
    %v2093 = vmul.f32 %v2087, %v1126
    %v2094 = vmul.f32 %v2090, %v1126
    %v2095 = vadd.f32 %v2091, 1e-05
    %v2096 = vadd.f32 %v2092, 1e-05
    %v2097 = vadd.f32 %v2093, 1e-05
    %v2098 = vadd.f32 %v2094, 1e-05
    %v2099 = vrsqrt.pop %v2095
    %v2100 = vrsqrt.pop %v2096
    %v2101 = vrsqrt.pop %v2097
    %v2102 = vrsqrt.pop %v2098
    %v2103 = vmul.f32 %v2071, %v2099
    %v2104 = vmul.f32 %v2072, %v2100
    %v2105 = vmul.f32 %v2073, %v2101
    %v2106 = vmul.f32 %v2074, %v2102
    %v2107 = vlaneseq
    %v2108 = vshrl.u32 %v2107, 7
    %v2109 = vsub.s32 0, %v2108
    %v2110 = vrot.slane %v2054, %v2109
    %v2111 = vmul.f32 %v2103, %v2110
    %v2112 = vmul.f32 %v2104, %v2110
    %v2113 = vmul.f32 %v2105, %v2110
    %v2114 = vmul.f32 %v2106, %v2110
    %v2115 = vlaneseq
    %v2116 = vshrl.u32 %v2115, 7
    %v2117 = vsub.s32 1, %v2116
    %v2118 = vrot.slane %v2054, %v2117
    %v2119 = vadd.f32 %v2111, %v2118
    %v2120 = vadd.f32 %v2112, %v2118
    %v2121 = vadd.f32 %v2113, %v2118
    %v2122 = vadd.f32 %v2114, %v2118
    %v2123 = vld [vmem:[#allocation2 + $0x1d8] sm:$0xff]
    %v2124 = vld [vmem:[#allocation2 + $0x1e0] sm:$0xff]
    %v2125 = vld [vmem:[#allocation2 + $0x1e8] sm:$0xff]
    %v2126 = vld [vmem:[#allocation2 + $0x1f0] sm:$0xff]
    %v2127 = vlaneseq
    %v2128 = vshrl.u32 %v2127, 7
    %v2129 = vsub.s32 2, %v2128
    %v2130 = vrot.slane %v2054, %v2129
    %v2132 = vsel %vm44, %v2119, 0
    %v2135 = vsel %vm44, %v2120, 0
    %v2138 = vsel %vm44, %v2121, 0
    %v2141 = vsel %vm44, %v2122, 0
    %2143 = vmatprep.subr.mxu0 0.0
    %2144 = vmatpush1.msra.mxu0 %v2123
    %2145 = vmatprep.subr.mxu0 0.0
    %2146 = vmatpush1.msra.mxu0 %v2124
    %2147 = vmatprep.subr.mxu0 0.0
    %2148 = vmatpush1.msra.mxu0 %v2125
    %2149 = vmatprep.subr.mxu0 0.0
    %2150 = vmatpush1.msra.mxu0 %v2126
    %2151 = vmatprep.subr.mxu0 0.0
    %2152 = vmatpush1.msra.mxu0 0.0
    %2153 = vmatprep.subr.mxu0 0.0
    %2154 = vmatpush1.msra.mxu0 0.0
    %2155 = vmatprep.subr.mxu0 0.0
    %2156 = vmatpush1.msra.mxu0 0.0
    %2157 = vmatprep.subr.mxu0 0.0
    %2158 = vmatpush1.msra.mxu0 0.0
    %2159 = vmatprep.subr.mxu0 0.0
    %2160 = vmatpush1.msra.mxu0 0.0
    %2161 = vmatprep.subr.mxu0 0.0
    %2162 = vmatpush1.msra.mxu0 0.0
    %2163 = vmatprep.subr.mxu0 0.0
    %2164 = vmatpush1.msra.mxu0 0.0
    %2165 = vmatprep.subr.mxu0 0.0
    %2166 = vmatpush1.msra.mxu0 0.0
    %2167 = vmatprep.subr.mxu0 0.0
    %2168 = vmatpush1.msra.mxu0 0.0
    %2169 = vmatprep.subr.mxu0 0.0
    %2170 = vmatpush1.msra.mxu0 0.0
    %2171 = vmatprep.subr.mxu0 0.0
    %2172 = vmatpush1.msra.mxu0 0.0
    %2173 = vmatprep.subr.mxu0 0.0
    %2174 = vmatpush1.msra.mxu0 0.0
    %2175 = vmatprep.subr.mxu0 0.0
    %2176 = vmatpush1.msra.mxu0 0.0
    %2177 = vmatprep.subr.mxu0 0.0
    %2178 = vmatpush1.msra.mxu0 0.0
    %2179 = vmatprep.subr.mxu0 0.0
    %2180 = vmatpush1.msra.mxu0 0.0
    %2181 = vmatprep.subr.mxu0 0.0
    %2182 = vmatpush1.msra.mxu0 0.0
    %2183 = vmatprep.subr.mxu0 0.0
    %2184 = vmatpush1.msra.mxu0 0.0
    %2185 = vmatprep.subr.mxu0 0.0
    %2186 = vmatpush1.msra.mxu0 0.0
    %2187 = vmatprep.subr.mxu0 0.0
    %2188 = vmatpush1.msra.mxu0 0.0
    %2189 = vmatprep.subr.mxu0 0.0
    %2190 = vmatpush1.msra.mxu0 0.0
    %2191 = vmatprep.subr.mxu0 0.0
    %2192 = vmatpush1.msra.mxu0 0.0
    %2193 = vmatprep.subr.mxu0 0.0
    %2194 = vmatpush1.msra.mxu0 0.0
    %2195 = vmatprep.subr.mxu0 0.0
    %2196 = vmatpush1.msra.mxu0 0.0
    %2197 = vmatprep.subr.mxu0 0.0
    %2198 = vmatpush1.msra.mxu0 0.0
    %2199 = vmatprep.subr.mxu0 0.0
    %2200 = vmatpush1.msra.mxu0 0.0
    %2201 = vmatprep.subr.mxu0 0.0
    %2202 = vmatpush1.msra.mxu0 0.0
    %2203 = vmatprep.subr.mxu0 0.0
    %2204 = vmatpush1.msra.mxu0 0.0
    %2205 = vmatprep.subr.mxu0 0.0
    %2206 = vmatpush1.msra.mxu0 0.0
    %2207 = vmatprep.mubr.f32.mxu0 0.0
    %2208 = vmatmul.mubr.f32.gmra.mrb[0].mxu0 %v2132
    %v2209 = vpop.f32.mrb[0].mxu0
    %v2210 = vadd.f32 %v2130, %v2209
    %v2211 = vpop.f32.mrb[0].mxu0
    %2212 = vmatprep.mubr.f32.mxu0 0.0
    %2213 = vmatmul.mubr.f32.gmra.mrb[0].mxu0 %v2135
    %v2214 = vpop.f32.mrb[0].mxu0
    %v2215 = vadd.f32 %v2130, %v2214
    %v2216 = vpop.f32.mrb[0].mxu0
    %2217 = vmatprep.mubr.f32.mxu0 0.0
    %2218 = vmatmul.mubr.f32.gmra.mrb[0].mxu0 %v2138
    %v2219 = vpop.f32.mrb[0].mxu0
    %v2220 = vadd.f32 %v2130, %v2219
    %v2221 = vpop.f32.mrb[0].mxu0
    %2222 = vmatprep.mubr.f32.mxu0 0.0
    %2223 = vmatmul.mubr.f32.gmra.mrb[0].mxu0 %v2141
    %v2224 = vpop.f32.mrb[0].mxu0
    %v2225 = vadd.f32 %v2130, %v2224
    %v2226 = vpop.f32.mrb[0].mxu0
    %2227 = vdwg.mxu0
    %2230 = vrot.lane.b32.xlu0 %v2210, 96
    %v2231 = vpop.permute.xlu0 %2230
    %2232 = vrot.lane.b32.xlu0 %v2215, 96
    %v2233 = vpop.permute.xlu0 %2232
    %v2236 = vmul.f32 %v2210, %v2231
    %v2237 = vmul.f32 %v2215, %v2233
    %v2238 = vmul.f32 %v2220, %v2231
    %v2239 = vmul.f32 %v2225, %v2233
    %2242 = vrot.lane.b32.xlu0 %v2220, 96
    %v2243 = vpop.permute.xlu0 %2242
    %2244 = vrot.lane.b32.xlu0 %v2225, 96
    %v2245 = vpop.permute.xlu0 %2244
    %v2248 = vmul.f32 %v2210, %v2243
    %v2249 = vmul.f32 %v2215, %v2245
    %v2250 = vmul.f32 %v2220, %v2243
    %v2251 = vmul.f32 %v2225, %v2245
    %v2253 = vsel %vm44, %v2236, 0
    %v2256 = vsel %vm44, %v2237, 0
    %v2259 = vsel %vm44, %v2238, 0
    %v2262 = vsel %vm44, %v2239, 0
    %v2265 = vsel %vm44, %v2248, 0
    %v2268 = vsel %vm44, %v2249, 0
    %v2271 = vsel %vm44, %v2250, 0
    %v2274 = vsel %vm44, %v2251, 0
    %2276 = vmatprep.subr.mxu0 0.0
    %2277 = vmatpush1.msra.mxu0 %v1108
    %2278 = vmatprep.subr.mxu0 0.0
    %2279 = vmatpush1.msra.mxu0 %v1109
    %2280 = vmatprep.subr.mxu0 0.0
    %2281 = vmatpush1.msra.mxu0 %v1110
    %2282 = vmatprep.subr.mxu0 0.0
    %2283 = vmatpush1.msra.mxu0 %v1111
    %2284 = vmatprep.subr.mxu0 0.0
    %2285 = vmatpush1.msra.mxu0 0.0
    %2286 = vmatprep.subr.mxu0 0.0
    %2287 = vmatpush1.msra.mxu0 0.0
    %2288 = vmatprep.subr.mxu0 0.0
    %2289 = vmatpush1.msra.mxu0 0.0
    %2290 = vmatprep.subr.mxu0 0.0
    %2291 = vmatpush1.msra.mxu0 0.0
    %2292 = vmatprep.subr.mxu0 0.0
    %2293 = vmatpush1.msra.mxu0 0.0
    %2294 = vmatprep.subr.mxu0 0.0
    %2295 = vmatpush1.msra.mxu0 0.0
    %2296 = vmatprep.subr.mxu0 0.0
    %2297 = vmatpush1.msra.mxu0 0.0
    %2298 = vmatprep.subr.mxu0 0.0
    %2299 = vmatpush1.msra.mxu0 0.0
    %2300 = vmatprep.subr.mxu0 0.0
    %2301 = vmatpush1.msra.mxu0 0.0
    %2302 = vmatprep.subr.mxu0 0.0
    %2303 = vmatpush1.msra.mxu0 0.0
    %2304 = vmatprep.subr.mxu0 0.0
    %2305 = vmatpush1.msra.mxu0 0.0
    %2306 = vmatprep.subr.mxu0 0.0
    %2307 = vmatpush1.msra.mxu0 0.0
    %2308 = vmatprep.subr.mxu0 0.0
    %2309 = vmatpush1.msra.mxu0 0.0
    %2310 = vmatprep.subr.mxu0 0.0
    %2311 = vmatpush1.msra.mxu0 0.0
    %2312 = vmatprep.subr.mxu0 0.0
    %2313 = vmatpush1.msra.mxu0 0.0
    %2314 = vmatprep.subr.mxu0 0.0
    %2315 = vmatpush1.msra.mxu0 0.0
    %2316 = vmatprep.subr.mxu0 0.0
    %2317 = vmatpush1.msra.mxu0 0.0
    %2318 = vmatprep.subr.mxu0 0.0
    %2319 = vmatpush1.msra.mxu0 0.0
    %2320 = vmatprep.subr.mxu0 0.0
    %2321 = vmatpush1.msra.mxu0 0.0
    %2322 = vmatprep.subr.mxu0 0.0
    %2323 = vmatpush1.msra.mxu0 0.0
    %2324 = vmatprep.subr.mxu0 0.0
    %2325 = vmatpush1.msra.mxu0 0.0
    %2326 = vmatprep.subr.mxu0 0.0
    %2327 = vmatpush1.msra.mxu0 0.0
    %2328 = vmatprep.subr.mxu0 0.0
    %2329 = vmatpush1.msra.mxu0 0.0
    %2330 = vmatprep.subr.mxu0 0.0
    %2331 = vmatpush1.msra.mxu0 0.0
    %2332 = vmatprep.subr.mxu0 0.0
    %2333 = vmatpush1.msra.mxu0 0.0
    %2334 = vmatprep.subr.mxu0 0.0
    %2335 = vmatpush1.msra.mxu0 0.0
    %2336 = vmatprep.subr.mxu0 0.0
    %2337 = vmatpush1.msra.mxu0 0.0
    %2338 = vmatprep.subr.mxu0 0.0
    %2339 = vmatpush1.msra.mxu0 0.0
    %2340 = vmatprep.mubr.f32.mxu0 0.0
    %2341 = vmatmul.mubr.f32.gmra.mrb[0].mxu0 %v2253
    %v2342 = vpop.f32.mrb[0].mxu0
    %v2343 = vadd.f32 0.0, %v2342
    %v2344 = vpop.f32.mrb[0].mxu0
    %2345 = vmatprep.mubr.f32.mxu0 0.0
    %2346 = vmatmul.mubr.f32.gmra.mrb[0].mxu0 %v2256
    %v2347 = vpop.f32.mrb[0].mxu0
    %v2348 = vadd.f32 0.0, %v2347
    %v2349 = vpop.f32.mrb[0].mxu0
    %2350 = vmatprep.mubr.f32.mxu0 0.0
    %2351 = vmatmul.mubr.f32.gmra.mrb[0].mxu0 %v2259
    %v2352 = vpop.f32.mrb[0].mxu0
    %v2353 = vadd.f32 0.0, %v2352
    %v2354 = vpop.f32.mrb[0].mxu0
    %2355 = vmatprep.mubr.f32.mxu0 0.0
    %2356 = vmatmul.mubr.f32.gmra.mrb[0].mxu0 %v2262
    %v2357 = vpop.f32.mrb[0].mxu0
    %v2358 = vadd.f32 0.0, %v2357
    %v2359 = vpop.f32.mrb[0].mxu0
    %2360 = vmatprep.mubr.f32.mxu0 0.0
    %2361 = vmatmul.mubr.f32.gmra.mrb[0].mxu0 %v2265
    %v2362 = vpop.f32.mrb[0].mxu0
    %v2363 = vadd.f32 0.0, %v2362
    %v2364 = vpop.f32.mrb[0].mxu0
    %2365 = vmatprep.mubr.f32.mxu0 0.0
    %2366 = vmatmul.mubr.f32.gmra.mrb[0].mxu0 %v2268
    %v2367 = vpop.f32.mrb[0].mxu0
    %v2368 = vadd.f32 0.0, %v2367
    %v2369 = vpop.f32.mrb[0].mxu0
    %2370 = vmatprep.mubr.f32.mxu0 0.0
    %2371 = vmatmul.mubr.f32.gmra.mrb[0].mxu0 %v2271
    %v2372 = vpop.f32.mrb[0].mxu0
    %v2373 = vadd.f32 0.0, %v2372
    %v2374 = vpop.f32.mrb[0].mxu0
    %2375 = vmatprep.mubr.f32.mxu0 0.0
    %2376 = vmatmul.mubr.f32.gmra.mrb[0].mxu0 %v2274
    %v2377 = vpop.f32.mrb[0].mxu0
    %v2378 = vadd.f32 0.0, %v2377
    %v2379 = vpop.f32.mrb[0].mxu0
    %2380 = vdwg.mxu0
    %v2381 = vsub.f32 %v2363, %v2343
    %v2382 = vsub.f32 %v2368, %v2348
    %v2383 = vsub.f32 %v2373, %v2353
    %v2384 = vsub.f32 %v2378, %v2358
    %v2385 = vmul.f32 %v2381, 1.442695
    %v2386 = vpow.pop %v2385
    %v2387 = vmul.f32 %v2382, 1.442695
    %v2388 = vpow.pop %v2387
    %v2389 = vmul.f32 %v2383, 1.442695
    %v2390 = vpow.pop %v2389
    %v2391 = vmul.f32 %v2384, 1.442695
    %v2392 = vpow.pop %v2391
    %v2393 = vadd.f32 %v2386, 1.0
    %v2394 = vadd.f32 %v2388, 1.0
    %v2395 = vadd.f32 %v2390, 1.0
    %v2396 = vadd.f32 %v2392, 1.0
    %v2397 = vrcp.pop %v2393
    %v2398 = vrcp.pop %v2394
    %v2399 = vrcp.pop %v2395
    %v2400 = vrcp.pop %v2396
    %v2401 = vsub.f32 1.0, %v2397
    %v2402 = vsub.f32 1.0, %v2398
    %v2403 = vsub.f32 1.0, %v2399
    %v2404 = vsub.f32 1.0, %v2400
    %v2406 = vsel %vm1465, %v2397, 0
    %v2409 = vsel %vm1465, %v2398, 0
    %v2412 = vsel %vm1465, %v2399, 0
    %v2415 = vsel %vm1465, %v2400, 0
    %v2418 = vsel %vm1465, %v2401, 0
    %v2421 = vsel %vm1465, %v2402, 0
    %v2424 = vsel %vm1465, %v2403, 0
    %v2427 = vsel %vm1465, %v2404, 0
    %2429 = vmatprep.subr.mxu0 0.0
    %2430 = vmatpush1.msra.mxu0 %v1492
    %2431 = vmatprep.subr.mxu0 0.0
    %2432 = vmatpush1.msra.mxu0 0.0
    %2433 = vmatprep.subr.mxu0 0.0
    %2434 = vmatpush1.msra.mxu0 0.0
    %2435 = vmatprep.subr.mxu0 0.0
    %2436 = vmatpush1.msra.mxu0 0.0
    %2437 = vmatprep.subr.mxu0 0.0
    %2438 = vmatpush1.msra.mxu0 0.0
    %2439 = vmatprep.subr.mxu0 0.0
    %2440 = vmatpush1.msra.mxu0 0.0
    %2441 = vmatprep.subr.mxu0 0.0
    %2442 = vmatpush1.msra.mxu0 0.0
    %2443 = vmatprep.subr.mxu0 0.0
    %2444 = vmatpush1.msra.mxu0 0.0
    %2445 = vmatprep.subr.mxu0 0.0
    %2446 = vmatpush1.msra.mxu0 0.0
    %2447 = vmatprep.subr.mxu0 0.0
    %2448 = vmatpush1.msra.mxu0 0.0
    %2449 = vmatprep.subr.mxu0 0.0
    %2450 = vmatpush1.msra.mxu0 0.0
    %2451 = vmatprep.subr.mxu0 0.0
    %2452 = vmatpush1.msra.mxu0 0.0
    %2453 = vmatprep.subr.mxu0 0.0
    %2454 = vmatpush1.msra.mxu0 0.0
    %2455 = vmatprep.subr.mxu0 0.0
    %2456 = vmatpush1.msra.mxu0 0.0
    %2457 = vmatprep.subr.mxu0 0.0
    %2458 = vmatpush1.msra.mxu0 0.0
    %2459 = vmatprep.subr.mxu0 0.0
    %2460 = vmatpush1.msra.mxu0 0.0
    %2461 = vmatprep.subr.mxu0 0.0
    %2462 = vmatpush1.msra.mxu0 0.0
    %2463 = vmatprep.subr.mxu0 0.0
    %2464 = vmatpush1.msra.mxu0 0.0
    %2465 = vmatprep.subr.mxu0 0.0
    %2466 = vmatpush1.msra.mxu0 0.0
    %2467 = vmatprep.subr.mxu0 0.0
    %2468 = vmatpush1.msra.mxu0 0.0
    %2469 = vmatprep.subr.mxu0 0.0
    %2470 = vmatpush1.msra.mxu0 0.0
    %2471 = vmatprep.subr.mxu0 0.0
    %2472 = vmatpush1.msra.mxu0 0.0
    %2473 = vmatprep.subr.mxu0 0.0
    %2474 = vmatpush1.msra.mxu0 0.0
    %2475 = vmatprep.subr.mxu0 0.0
    %2476 = vmatpush1.msra.mxu0 0.0
    %2477 = vmatprep.subr.mxu0 0.0
    %2478 = vmatpush1.msra.mxu0 0.0
    %2479 = vmatprep.subr.mxu0 0.0
    %2480 = vmatpush1.msra.mxu0 0.0
    %2481 = vmatprep.subr.mxu0 0.0
    %2482 = vmatpush1.msra.mxu0 0.0
    %2483 = vmatprep.subr.mxu0 0.0
    %2484 = vmatpush1.msra.mxu0 0.0
    %2485 = vmatprep.subr.mxu0 0.0
    %2486 = vmatpush1.msra.mxu0 0.0
    %2487 = vmatprep.subr.mxu0 0.0
    %2488 = vmatpush1.msra.mxu0 0.0
    %2489 = vmatprep.subr.mxu0 0.0
    %2490 = vmatpush1.msra.mxu0 0.0
    %2491 = vmatprep.subr.mxu0 0.0
    %2492 = vmatpush1.msra.mxu0 0.0
    %2493 = vmatprep.mubr.f32.mxu0 0.0
    %2494 = vmatmul.mubr.f32.gmra.mrb[0].mxu0 %v2406
    %v2495 = vpop.f32.mrb[0].mxu0
    %v2496 = vadd.f32 0.0, %v2495
    %v2497 = vpop.f32.mrb[0].mxu0
    %2498 = vmatprep.mubr.f32.mxu0 0.0
    %2499 = vmatmul.mubr.f32.gmra.mrb[0].mxu0 %v2409
    %v2500 = vpop.f32.mrb[0].mxu0
    %v2501 = vadd.f32 0.0, %v2500
    %v2502 = vpop.f32.mrb[0].mxu0
    %2503 = vmatprep.mubr.f32.mxu0 0.0
    %2504 = vmatmul.mubr.f32.gmra.mrb[0].mxu0 %v2412
    %v2505 = vpop.f32.mrb[0].mxu0
    %v2506 = vadd.f32 0.0, %v2505
    %v2507 = vpop.f32.mrb[0].mxu0
    %2508 = vmatprep.mubr.f32.mxu0 0.0
    %2509 = vmatmul.mubr.f32.gmra.mrb[0].mxu0 %v2415
    %v2510 = vpop.f32.mrb[0].mxu0
    %v2511 = vadd.f32 0.0, %v2510
    %v2512 = vpop.f32.mrb[0].mxu0
    %2513 = vmatprep.mubr.f32.mxu0 0.0
    %2514 = vmatmul.mubr.f32.gmra.mrb[0].mxu0 %v2418
    %v2515 = vpop.f32.mrb[0].mxu0
    %v2516 = vadd.f32 0.0, %v2515
    %v2517 = vpop.f32.mrb[0].mxu0
    %2518 = vmatprep.mubr.f32.mxu0 0.0
    %2519 = vmatmul.mubr.f32.gmra.mrb[0].mxu0 %v2421
    %v2520 = vpop.f32.mrb[0].mxu0
    %v2521 = vadd.f32 0.0, %v2520
    %v2522 = vpop.f32.mrb[0].mxu0
    %2523 = vmatprep.mubr.f32.mxu0 0.0
    %2524 = vmatmul.mubr.f32.gmra.mrb[0].mxu0 %v2424
    %v2525 = vpop.f32.mrb[0].mxu0
    %v2526 = vadd.f32 0.0, %v2525
    %v2527 = vpop.f32.mrb[0].mxu0
    %2528 = vmatprep.mubr.f32.mxu0 0.0
    %2529 = vmatmul.mubr.f32.gmra.mrb[0].mxu0 %v2427
    %v2530 = vpop.f32.mrb[0].mxu0
    %v2531 = vadd.f32 0.0, %v2530
    %v2532 = vpop.f32.mrb[0].mxu0
    %2533 = vdwg.mxu0
    %2534 = vrot.lane.b32.xlu0 %v2210, 64
    %v2535 = vpop.permute.xlu0 %2534
    %2536 = vrot.lane.b32.xlu0 %v2215, 64
    %v2537 = vpop.permute.xlu0 %2536
    %v2540 = vmul.f32 %v2496, %v2535
    %v2541 = vmul.f32 %v2501, %v2537
    %v2542 = vmul.f32 %v2506, %v2535
    %v2543 = vmul.f32 %v2511, %v2537
    %2544 = vrot.lane.b32.xlu0 %v2220, 64
    %v2545 = vpop.permute.xlu0 %2544
    %2546 = vrot.lane.b32.xlu0 %v2225, 64
    %v2547 = vpop.permute.xlu0 %2546
    %v2550 = vmul.f32 %v2516, %v2545
    %v2551 = vmul.f32 %v2521, %v2547
    %v2552 = vmul.f32 %v2526, %v2545
    %v2553 = vmul.f32 %v2531, %v2547
    %v2554 = vadd.f32 %v2540, %v2550
    %v2555 = vadd.f32 %v2541, %v2551
    %v2556 = vadd.f32 %v2542, %v2552
    %v2557 = vadd.f32 %v2543, %v2553
    %v2558 = vld [vmem:[#allocation2 + $0x1f8] sm:$0xff]
    %v2559 = vld [vmem:[#allocation2 + $0x200] sm:$0xff]
    %v2560 = vld [vmem:[#allocation2 + $0x208] sm:$0xff]
    %v2561 = vld [vmem:[#allocation2 + $0x210] sm:$0xff]
    %v2563 = vsel %vm44, %v2554, 0
    %v2566 = vsel %vm44, %v2555, 0
    %v2569 = vsel %vm44, %v2556, 0
    %v2572 = vsel %vm44, %v2557, 0
    %2574 = vmatprep.subr.mxu0 0.0
    %2575 = vmatpush1.msra.mxu0 %v2558
    %2576 = vmatprep.subr.mxu0 0.0
    %2577 = vmatpush1.msra.mxu0 %v2559
    %2578 = vmatprep.subr.mxu0 0.0
    %2579 = vmatpush1.msra.mxu0 %v2560
    %2580 = vmatprep.subr.mxu0 0.0
    %2581 = vmatpush1.msra.mxu0 %v2561
    %2582 = vmatprep.subr.mxu0 0.0
    %2583 = vmatpush1.msra.mxu0 0.0
    %2584 = vmatprep.subr.mxu0 0.0
    %2585 = vmatpush1.msra.mxu0 0.0
    %2586 = vmatprep.subr.mxu0 0.0
    %2587 = vmatpush1.msra.mxu0 0.0
    %2588 = vmatprep.subr.mxu0 0.0
    %2589 = vmatpush1.msra.mxu0 0.0
    %2590 = vmatprep.subr.mxu0 0.0
    %2591 = vmatpush1.msra.mxu0 0.0
    %2592 = vmatprep.subr.mxu0 0.0
    %2593 = vmatpush1.msra.mxu0 0.0
    %2594 = vmatprep.subr.mxu0 0.0
    %2595 = vmatpush1.msra.mxu0 0.0
    %2596 = vmatprep.subr.mxu0 0.0
    %2597 = vmatpush1.msra.mxu0 0.0
    %2598 = vmatprep.subr.mxu0 0.0
    %2599 = vmatpush1.msra.mxu0 0.0
    %2600 = vmatprep.subr.mxu0 0.0
    %2601 = vmatpush1.msra.mxu0 0.0
    %2602 = vmatprep.subr.mxu0 0.0
    %2603 = vmatpush1.msra.mxu0 0.0
    %2604 = vmatprep.subr.mxu0 0.0
    %2605 = vmatpush1.msra.mxu0 0.0
    %2606 = vmatprep.subr.mxu0 0.0
    %2607 = vmatpush1.msra.mxu0 0.0
    %2608 = vmatprep.subr.mxu0 0.0
    %2609 = vmatpush1.msra.mxu0 0.0
    %2610 = vmatprep.subr.mxu0 0.0
    %2611 = vmatpush1.msra.mxu0 0.0
    %2612 = vmatprep.subr.mxu0 0.0
    %2613 = vmatpush1.msra.mxu0 0.0
    %2614 = vmatprep.subr.mxu0 0.0
    %2615 = vmatpush1.msra.mxu0 0.0
    %2616 = vmatprep.subr.mxu0 0.0
    %2617 = vmatpush1.msra.mxu0 0.0
    %2618 = vmatprep.subr.mxu0 0.0
    %2619 = vmatpush1.msra.mxu0 0.0
    %2620 = vmatprep.subr.mxu0 0.0
    %2621 = vmatpush1.msra.mxu0 0.0
    %2622 = vmatprep.subr.mxu0 0.0
    %2623 = vmatpush1.msra.mxu0 0.0
    %2624 = vmatprep.subr.mxu0 0.0
    %2625 = vmatpush1.msra.mxu0 0.0
    %2626 = vmatprep.subr.mxu0 0.0
    %2627 = vmatpush1.msra.mxu0 0.0
    %2628 = vmatprep.subr.mxu0 0.0
    %2629 = vmatpush1.msra.mxu0 0.0
    %2630 = vmatprep.subr.mxu0 0.0
    %2631 = vmatpush1.msra.mxu0 0.0
    %2632 = vmatprep.subr.mxu0 0.0
    %2633 = vmatpush1.msra.mxu0 0.0
    %2634 = vmatprep.subr.mxu0 0.0
    %2635 = vmatpush1.msra.mxu0 0.0
    %2636 = vmatprep.subr.mxu0 0.0
    %2637 = vmatpush1.msra.mxu0 0.0
    %2638 = vmatprep.mubr.f32.mxu0 0.0
    %2639 = vmatmul.mubr.f32.gmra.mrb[0].mxu0 %v2563
    %v2640 = vpop.f32.mrb[0].mxu0
    %v2641 = vadd.f32 0.0, %v2640
    %v2642 = vpop.f32.mrb[0].mxu0
    %2643 = vmatprep.mubr.f32.mxu0 0.0
    %2644 = vmatmul.mubr.f32.gmra.mrb[0].mxu0 %v2566
    %v2645 = vpop.f32.mrb[0].mxu0
    %v2646 = vadd.f32 0.0, %v2645
    %v2647 = vpop.f32.mrb[0].mxu0
    %2648 = vmatprep.mubr.f32.mxu0 0.0
    %2649 = vmatmul.mubr.f32.gmra.mrb[0].mxu0 %v2569
    %v2650 = vpop.f32.mrb[0].mxu0
    %v2651 = vadd.f32 0.0, %v2650
    %v2652 = vpop.f32.mrb[0].mxu0
    %2653 = vmatprep.mubr.f32.mxu0 0.0
    %2654 = vmatmul.mubr.f32.gmra.mrb[0].mxu0 %v2572
    %v2655 = vpop.f32.mrb[0].mxu0
    %v2656 = vadd.f32 0.0, %v2655
    %v2657 = vpop.f32.mrb[0].mxu0
    %2658 = vdwg.mxu0
    %v2659 = vadd.f32 %v2119, %v2641
    %v2660 = vadd.f32 %v2120, %v2646
    %v2661 = vadd.f32 %v2121, %v2651
    %v2662 = vadd.f32 %v2122, %v2656
    %v2663 = vlaneseq
    %v2664 = vshrl.u32 %v2663, 7
    %v2665 = vsub.s32 3, %v2664
    %v2666 = vrot.slane %v2054, %v2665
    %v2667 = vadd.f32 %v2659, %v2666
    %v2668 = vadd.f32 %v2660, %v2666
    %v2669 = vadd.f32 %v2661, %v2666
    %v2670 = vadd.f32 %v2662, %v2666
    %v2671 = vsel %vm44, %v2667, 0.0
    %2672 = vadd.xlane.f32.xlu0 %v2671
    %v2673 = vpop.xlane.xlu0 %2672
    %v2674 = vsel %vm44, %v2668, 0.0
    %2675 = vadd.xlane.f32.xlu0 %v2674
    %v2676 = vpop.xlane.xlu0 %2675
    %v2677 = vsel %vm44, %v2669, 0.0
    %2678 = vadd.xlane.f32.xlu0 %v2677
    %v2679 = vpop.xlane.xlu0 %2678
    %v2680 = vsel %vm44, %v2670, 0.0
    %2681 = vadd.xlane.f32.xlu0 %v2680
    %v2682 = vpop.xlane.xlu0 %2681
    %v2683 = vmul.f32 %v2673, %v1126
    %v2684 = vmul.f32 %v2676, %v1126
    %v2685 = vmul.f32 %v2679, %v1126
    %v2686 = vmul.f32 %v2682, %v1126
    %v2687 = vsub.f32 %v2667, %v2683
    %v2688 = vsub.f32 %v2668, %v2684
    %v2689 = vsub.f32 %v2669, %v2685
    %v2690 = vsub.f32 %v2670, %v2686
    %v2691 = vmul.f32 %v2687, %v2687
    %v2692 = vmul.f32 %v2688, %v2688
    %v2693 = vmul.f32 %v2689, %v2689
    %v2694 = vmul.f32 %v2690, %v2690
    %v2695 = vsel %vm44, %v2691, 0.0
    %2696 = vadd.xlane.f32.xlu0 %v2695
    %v2697 = vpop.xlane.xlu0 %2696
    %v2698 = vsel %vm44, %v2692, 0.0
    %2699 = vadd.xlane.f32.xlu0 %v2698
    %v2700 = vpop.xlane.xlu0 %2699
    %v2701 = vsel %vm44, %v2693, 0.0
    %2702 = vadd.xlane.f32.xlu0 %v2701
    %v2703 = vpop.xlane.xlu0 %2702
    %v2704 = vsel %vm44, %v2694, 0.0
    %2705 = vadd.xlane.f32.xlu0 %v2704
    %v2706 = vpop.xlane.xlu0 %2705
    %v2707 = vmul.f32 %v2697, %v1126
    %v2708 = vmul.f32 %v2700, %v1126
    %v2709 = vmul.f32 %v2703, %v1126
    %v2710 = vmul.f32 %v2706, %v1126
    %v2711 = vadd.f32 %v2707, 1e-05
    %v2712 = vadd.f32 %v2708, 1e-05
    %v2713 = vadd.f32 %v2709, 1e-05
    %v2714 = vadd.f32 %v2710, 1e-05
    %v2715 = vrsqrt.pop %v2711
    %v2716 = vrsqrt.pop %v2712
    %v2717 = vrsqrt.pop %v2713
    %v2718 = vrsqrt.pop %v2714
    %v2719 = vmul.f32 %v2687, %v2715
    %v2720 = vmul.f32 %v2688, %v2716
    %v2721 = vmul.f32 %v2689, %v2717
    %v2722 = vmul.f32 %v2690, %v2718
    %v2723 = vlaneseq
    %v2724 = vshrl.u32 %v2723, 7
    %v2725 = vsub.s32 4, %v2724
    %v2726 = vrot.slane %v2054, %v2725
    %v2727 = vmul.f32 %v2719, %v2726
    %v2728 = vmul.f32 %v2720, %v2726
    %v2729 = vmul.f32 %v2721, %v2726
    %v2730 = vmul.f32 %v2722, %v2726
    %v2731 = vlaneseq
    %v2732 = vshrl.u32 %v2731, 7
    %v2733 = vsub.s32 5, %v2732
    %v2734 = vrot.slane %v2054, %v2733
    %v2735 = vadd.f32 %v2727, %v2734
    %v2736 = vadd.f32 %v2728, %v2734
    %v2737 = vadd.f32 %v2729, %v2734
    %v2738 = vadd.f32 %v2730, %v2734
    %v2739 = vld [vmem:[#allocation2 + $0x218] sm:$0xff]
    %v2740 = vld [vmem:[#allocation2 + $0x220] sm:$0xff]
    %v2741 = vld [vmem:[#allocation2 + $0x228] sm:$0xff]
    %v2742 = vld [vmem:[#allocation2 + $0x230] sm:$0xff]
    %v2743 = vlaneseq
    %v2744 = vshrl.u32 %v2743, 7
    %v2745 = vsub.s32 6, %v2744
    %v2746 = vrot.slane %v2054, %v2745
    %v2748 = vsel %vm44, %v2735, 0
    %v2751 = vsel %vm44, %v2736, 0
    %v2754 = vsel %vm44, %v2737, 0
    %v2757 = vsel %vm44, %v2738, 0
    %2759 = vmatprep.subr.mxu0 0.0
    %2760 = vmatpush1.msra.mxu0 %v2739
    %2761 = vmatprep.subr.mxu0 0.0
    %2762 = vmatpush1.msra.mxu0 %v2740
    %2763 = vmatprep.subr.mxu0 0.0
    %2764 = vmatpush1.msra.mxu0 %v2741
    %2765 = vmatprep.subr.mxu0 0.0
    %2766 = vmatpush1.msra.mxu0 %v2742
    %2767 = vmatprep.subr.mxu0 0.0
    %2768 = vmatpush1.msra.mxu0 0.0
    %2769 = vmatprep.subr.mxu0 0.0
    %2770 = vmatpush1.msra.mxu0 0.0
    %2771 = vmatprep.subr.mxu0 0.0
    %2772 = vmatpush1.msra.mxu0 0.0
    %2773 = vmatprep.subr.mxu0 0.0
    %2774 = vmatpush1.msra.mxu0 0.0
    %2775 = vmatprep.subr.mxu0 0.0
    %2776 = vmatpush1.msra.mxu0 0.0
    %2777 = vmatprep.subr.mxu0 0.0
    %2778 = vmatpush1.msra.mxu0 0.0
    %2779 = vmatprep.subr.mxu0 0.0
    %2780 = vmatpush1.msra.mxu0 0.0
    %2781 = vmatprep.subr.mxu0 0.0
    %2782 = vmatpush1.msra.mxu0 0.0
    %2783 = vmatprep.subr.mxu0 0.0
    %2784 = vmatpush1.msra.mxu0 0.0
    %2785 = vmatprep.subr.mxu0 0.0
    %2786 = vmatpush1.msra.mxu0 0.0
    %2787 = vmatprep.subr.mxu0 0.0
    %2788 = vmatpush1.msra.mxu0 0.0
    %2789 = vmatprep.subr.mxu0 0.0
    %2790 = vmatpush1.msra.mxu0 0.0
    %2791 = vmatprep.subr.mxu0 0.0
    %2792 = vmatpush1.msra.mxu0 0.0
    %2793 = vmatprep.subr.mxu0 0.0
    %2794 = vmatpush1.msra.mxu0 0.0
    %2795 = vmatprep.subr.mxu0 0.0
    %2796 = vmatpush1.msra.mxu0 0.0
    %2797 = vmatprep.subr.mxu0 0.0
    %2798 = vmatpush1.msra.mxu0 0.0
    %2799 = vmatprep.subr.mxu0 0.0
    %2800 = vmatpush1.msra.mxu0 0.0
    %2801 = vmatprep.subr.mxu0 0.0
    %2802 = vmatpush1.msra.mxu0 0.0
    %2803 = vmatprep.subr.mxu0 0.0
    %2804 = vmatpush1.msra.mxu0 0.0
    %2805 = vmatprep.subr.mxu0 0.0
    %2806 = vmatpush1.msra.mxu0 0.0
    %2807 = vmatprep.subr.mxu0 0.0
    %2808 = vmatpush1.msra.mxu0 0.0
    %2809 = vmatprep.subr.mxu0 0.0
    %2810 = vmatpush1.msra.mxu0 0.0
    %2811 = vmatprep.subr.mxu0 0.0
    %2812 = vmatpush1.msra.mxu0 0.0
    %2813 = vmatprep.subr.mxu0 0.0
    %2814 = vmatpush1.msra.mxu0 0.0
    %2815 = vmatprep.subr.mxu0 0.0
    %2816 = vmatpush1.msra.mxu0 0.0
    %2817 = vmatprep.subr.mxu0 0.0
    %2818 = vmatpush1.msra.mxu0 0.0
    %2819 = vmatprep.subr.mxu0 0.0
    %2820 = vmatpush1.msra.mxu0 0.0
    %2821 = vmatprep.subr.mxu0 0.0
    %2822 = vmatpush1.msra.mxu0 0.0
    %2823 = vmatprep.mubr.f32.mxu0 0.0
    %2824 = vmatmul.mubr.f32.gmra.mrb[0].mxu0 %v2748
    %v2825 = vpop.f32.mrb[0].mxu0
    %v2826 = vadd.f32 %v2746, %v2825
    %v2827 = vpop.f32.mrb[0].mxu0
    %2828 = vmatprep.mubr.f32.mxu0 0.0
    %2829 = vmatmul.mubr.f32.gmra.mrb[0].mxu0 %v2751
    %v2830 = vpop.f32.mrb[0].mxu0
    %v2831 = vadd.f32 %v2746, %v2830
    %v2832 = vpop.f32.mrb[0].mxu0
    %2833 = vmatprep.mubr.f32.mxu0 0.0
    %2834 = vmatmul.mubr.f32.gmra.mrb[0].mxu0 %v2754
    %v2835 = vpop.f32.mrb[0].mxu0
    %v2836 = vadd.f32 %v2746, %v2835
    %v2837 = vpop.f32.mrb[0].mxu0
    %2838 = vmatprep.mubr.f32.mxu0 0.0
    %2839 = vmatmul.mubr.f32.gmra.mrb[0].mxu0 %v2757
    %v2840 = vpop.f32.mrb[0].mxu0
    %v2841 = vadd.f32 %v2746, %v2840
    %v2842 = vpop.f32.mrb[0].mxu0
    %2843 = vdwg.mxu0
    %v2844 = vmul.f32 %v2826, 0.5
    %v2845 = vmul.f32 %v2831, 0.5
    %v2846 = vmul.f32 %v2836, 0.5
    %v2847 = vmul.f32 %v2841, 0.5
    %v2848 = vmul.f32 %v2826, 0.044715
    %v2849 = vmul.f32 %v2831, 0.044715
    %v2850 = vmul.f32 %v2836, 0.044715
    %v2851 = vmul.f32 %v2841, 0.044715
    %v2852 = vmul.f32 %v2848, %v2826
    %v2853 = vmul.f32 %v2849, %v2831
    %v2854 = vmul.f32 %v2850, %v2836
    %v2855 = vmul.f32 %v2851, %v2841
    %v2856 = vmul.f32 %v2852, %v2826
    %v2857 = vmul.f32 %v2853, %v2831
    %v2858 = vmul.f32 %v2854, %v2836
    %v2859 = vmul.f32 %v2855, %v2841
    %v2860 = vadd.f32 %v2826, %v2856
    %v2861 = vadd.f32 %v2831, %v2857
    %v2862 = vadd.f32 %v2836, %v2858
    %v2863 = vadd.f32 %v2841, %v2859
    %v2864 = vmul.f32 %v2860, 0.7978846
    %v2865 = vmul.f32 %v2861, 0.7978846
    %v2866 = vmul.f32 %v2862, 0.7978846
    %v2867 = vmul.f32 %v2863, 0.7978846
    %v2868 = vtanh.pop %v2864
    %v2869 = vtanh.pop %v2865
    %v2870 = vtanh.pop %v2866
    %v2871 = vtanh.pop %v2867
    %v2872 = vadd.f32 %v2868, 1.0
    %v2873 = vadd.f32 %v2869, 1.0
    %v2874 = vadd.f32 %v2870, 1.0
    %v2875 = vadd.f32 %v2871, 1.0
    %v2876 = vmul.f32 %v2844, %v2872
    %v2877 = vmul.f32 %v2845, %v2873
    %v2878 = vmul.f32 %v2846, %v2874
    %v2879 = vmul.f32 %v2847, %v2875
    %v2880 = vld [vmem:[#allocation2 + $0x238] sm:$0xff]
    %v2881 = vld [vmem:[#allocation2 + $0x240] sm:$0xff]
    %v2882 = vld [vmem:[#allocation2 + $0x248] sm:$0xff]
    %v2883 = vld [vmem:[#allocation2 + $0x250] sm:$0xff]
    %v2884 = vlaneseq
    %v2885 = vshrl.u32 %v2884, 7
    %v2886 = vsub.s32 7, %v2885
    %v2887 = vrot.slane %v2054, %v2886
    %v2889 = vsel %vm44, %v2876, 0
    %v2892 = vsel %vm44, %v2877, 0
    %v2895 = vsel %vm44, %v2878, 0
    %v2898 = vsel %vm44, %v2879, 0
    %2900 = vmatprep.subr.mxu0 0.0
    %2901 = vmatpush1.msra.mxu0 %v2880
    %2902 = vmatprep.subr.mxu0 0.0
    %2903 = vmatpush1.msra.mxu0 %v2881
    %2904 = vmatprep.subr.mxu0 0.0
    %2905 = vmatpush1.msra.mxu0 %v2882
    %2906 = vmatprep.subr.mxu0 0.0
    %2907 = vmatpush1.msra.mxu0 %v2883
    %2908 = vmatprep.subr.mxu0 0.0
    %2909 = vmatpush1.msra.mxu0 0.0
    %2910 = vmatprep.subr.mxu0 0.0
    %2911 = vmatpush1.msra.mxu0 0.0
    %2912 = vmatprep.subr.mxu0 0.0
    %2913 = vmatpush1.msra.mxu0 0.0
    %2914 = vmatprep.subr.mxu0 0.0
    %2915 = vmatpush1.msra.mxu0 0.0
    %2916 = vmatprep.subr.mxu0 0.0
    %2917 = vmatpush1.msra.mxu0 0.0
    %2918 = vmatprep.subr.mxu0 0.0
    %2919 = vmatpush1.msra.mxu0 0.0
    %2920 = vmatprep.subr.mxu0 0.0
    %2921 = vmatpush1.msra.mxu0 0.0
    %2922 = vmatprep.subr.mxu0 0.0
    %2923 = vmatpush1.msra.mxu0 0.0
    %2924 = vmatprep.subr.mxu0 0.0
    %2925 = vmatpush1.msra.mxu0 0.0
    %2926 = vmatprep.subr.mxu0 0.0
    %2927 = vmatpush1.msra.mxu0 0.0
    %2928 = vmatprep.subr.mxu0 0.0
    %2929 = vmatpush1.msra.mxu0 0.0
    %2930 = vmatprep.subr.mxu0 0.0
    %2931 = vmatpush1.msra.mxu0 0.0
    %2932 = vmatprep.subr.mxu0 0.0
    %2933 = vmatpush1.msra.mxu0 0.0
    %2934 = vmatprep.subr.mxu0 0.0
    %2935 = vmatpush1.msra.mxu0 0.0
    %2936 = vmatprep.subr.mxu0 0.0
    %2937 = vmatpush1.msra.mxu0 0.0
    %2938 = vmatprep.subr.mxu0 0.0
    %2939 = vmatpush1.msra.mxu0 0.0
    %2940 = vmatprep.subr.mxu0 0.0
    %2941 = vmatpush1.msra.mxu0 0.0
    %2942 = vmatprep.subr.mxu0 0.0
    %2943 = vmatpush1.msra.mxu0 0.0
    %2944 = vmatprep.subr.mxu0 0.0
    %2945 = vmatpush1.msra.mxu0 0.0
    %2946 = vmatprep.subr.mxu0 0.0
    %2947 = vmatpush1.msra.mxu0 0.0
    %2948 = vmatprep.subr.mxu0 0.0
    %2949 = vmatpush1.msra.mxu0 0.0
    %2950 = vmatprep.subr.mxu0 0.0
    %2951 = vmatpush1.msra.mxu0 0.0
    %2952 = vmatprep.subr.mxu0 0.0
    %2953 = vmatpush1.msra.mxu0 0.0
    %2954 = vmatprep.subr.mxu0 0.0
    %2955 = vmatpush1.msra.mxu0 0.0
    %2956 = vmatprep.subr.mxu0 0.0
    %2957 = vmatpush1.msra.mxu0 0.0
    %2958 = vmatprep.subr.mxu0 0.0
    %2959 = vmatpush1.msra.mxu0 0.0
    %2960 = vmatprep.subr.mxu0 0.0
    %2961 = vmatpush1.msra.mxu0 0.0
    %2962 = vmatprep.subr.mxu0 0.0
    %2963 = vmatpush1.msra.mxu0 0.0
    %2964 = vmatprep.mubr.f32.mxu0 0.0
    %2965 = vmatmul.mubr.f32.gmra.mrb[0].mxu0 %v2889
    %v2966 = vpop.f32.mrb[0].mxu0
    %v2967 = vadd.f32 %v2887, %v2966
    %v2968 = vpop.f32.mrb[0].mxu0
    %2969 = vmatprep.mubr.f32.mxu0 0.0
    %2970 = vmatmul.mubr.f32.gmra.mrb[0].mxu0 %v2892
    %v2971 = vpop.f32.mrb[0].mxu0
    %v2972 = vadd.f32 %v2887, %v2971
    %v2973 = vpop.f32.mrb[0].mxu0
    %2974 = vmatprep.mubr.f32.mxu0 0.0
    %2975 = vmatmul.mubr.f32.gmra.mrb[0].mxu0 %v2895
    %v2976 = vpop.f32.mrb[0].mxu0
    %v2977 = vadd.f32 %v2887, %v2976
    %v2978 = vpop.f32.mrb[0].mxu0
    %2979 = vmatprep.mubr.f32.mxu0 0.0
    %2980 = vmatmul.mubr.f32.gmra.mrb[0].mxu0 %v2898
    %v2981 = vpop.f32.mrb[0].mxu0
    %v2982 = vadd.f32 %v2887, %v2981
    %v2983 = vpop.f32.mrb[0].mxu0
    %2984 = vdwg.mxu0
    %v2985 = vadd.f32 %v2735, %v2967
    %v2986 = vadd.f32 %v2736, %v2972
    %v2987 = vadd.f32 %v2737, %v2977
    %v2988 = vadd.f32 %v2738, %v2982
    %v2989 = vsel %vm44, %v2985, 0.0
    %2990 = vadd.xlane.f32.xlu0 %v2989
    %v2991 = vpop.xlane.xlu0 %2990
    %v2992 = vsel %vm44, %v2986, 0.0
    %2993 = vadd.xlane.f32.xlu0 %v2992
    %v2994 = vpop.xlane.xlu0 %2993
    %v2995 = vsel %vm44, %v2987, 0.0
    %2996 = vadd.xlane.f32.xlu0 %v2995
    %v2997 = vpop.xlane.xlu0 %2996
    %v2998 = vsel %vm44, %v2988, 0.0
    %2999 = vadd.xlane.f32.xlu0 %v2998
    %v3000 = vpop.xlane.xlu0 %2999
    %v3001 = vmul.f32 %v2991, %v1126
    %v3002 = vmul.f32 %v2994, %v1126
    %v3003 = vmul.f32 %v2997, %v1126
    %v3004 = vmul.f32 %v3000, %v1126
    %v3005 = vsub.f32 %v2985, %v3001
    %v3006 = vsub.f32 %v2986, %v3002
    %v3007 = vsub.f32 %v2987, %v3003
    %v3008 = vsub.f32 %v2988, %v3004
    %v3009 = vmul.f32 %v3005, %v3005
    %v3010 = vmul.f32 %v3006, %v3006
    %v3011 = vmul.f32 %v3007, %v3007
    %v3012 = vmul.f32 %v3008, %v3008
    %v3013 = vsel %vm44, %v3009, 0.0
    %3014 = vadd.xlane.f32.xlu0 %v3013
    %v3015 = vpop.xlane.xlu0 %3014
    %v3016 = vsel %vm44, %v3010, 0.0
    %3017 = vadd.xlane.f32.xlu0 %v3016
    %v3018 = vpop.xlane.xlu0 %3017
    %v3019 = vsel %vm44, %v3011, 0.0
    %3020 = vadd.xlane.f32.xlu0 %v3019
    %v3021 = vpop.xlane.xlu0 %3020
    %v3022 = vsel %vm44, %v3012, 0.0
    %3023 = vadd.xlane.f32.xlu0 %v3022
    %v3024 = vpop.xlane.xlu0 %3023
    %v3025 = vmul.f32 %v3015, %v1126
    %v3026 = vmul.f32 %v3018, %v1126
    %v3027 = vmul.f32 %v3021, %v1126
    %v3028 = vmul.f32 %v3024, %v1126
    %v3029 = vadd.f32 %v3025, 1e-05
    %v3030 = vadd.f32 %v3026, 1e-05
    %v3031 = vadd.f32 %v3027, 1e-05
    %v3032 = vadd.f32 %v3028, 1e-05
    %v3033 = vrsqrt.pop %v3029
    %v3034 = vrsqrt.pop %v3030
    %v3035 = vrsqrt.pop %v3031
    %v3036 = vrsqrt.pop %v3032
    %v3037 = vmul.f32 %v3005, %v3033
    %v3038 = vmul.f32 %v3006, %v3034
    %v3039 = vmul.f32 %v3007, %v3035
    %v3040 = vmul.f32 %v3008, %v3036
    %v3041 = vlaneseq
    %v3042 = vshrl.u32 %v3041, 7
    %v3043 = vsub.s32 2, %v3042
    %v3044 = vrot.slane %v33, %v3043
    %v3045 = vmul.f32 %v3037, %v3044
    %v3046 = vmul.f32 %v3038, %v3044
    %v3047 = vmul.f32 %v3039, %v3044
    %v3048 = vmul.f32 %v3040, %v3044
    %v3049 = vlaneseq
    %v3050 = vshrl.u32 %v3049, 7
    %v3051 = vsub.s32 3, %v3050
    %v3052 = vrot.slane %v33, %v3051
    %v3053 = vadd.f32 %v3045, %v3052
    %v3054 = vadd.f32 %v3046, %v3052
    %v3055 = vadd.f32 %v3047, %v3052
    %v3056 = vadd.f32 %v3048, %v3052
    %v3057 = vld [vmem:[#allocation2 + $0x120] sm:$0xff]
    %v3059 = vsel %vm44, %v3057, 0
    %3061 = vmatprep.subr.mxu0 0.0
    %3062 = vmatpush1.msra.mxu0 %v3053
    %3063 = vmatprep.subr.mxu0 0.0
    %3064 = vmatpush1.msra.mxu0 %v3054
    %3065 = vmatprep.subr.mxu0 0.0
    %3066 = vmatpush1.msra.mxu0 %v3055
    %3067 = vmatprep.subr.mxu0 0.0
    %3068 = vmatpush1.msra.mxu0 %v3056
    %3069 = vmatprep.subr.mxu0 0.0
    %3070 = vmatpush1.msra.mxu0 0.0
    %3071 = vmatprep.subr.mxu0 0.0
    %3072 = vmatpush1.msra.mxu0 0.0
    %3073 = vmatprep.subr.mxu0 0.0
    %3074 = vmatpush1.msra.mxu0 0.0
    %3075 = vmatprep.subr.mxu0 0.0
    %3076 = vmatpush1.msra.mxu0 0.0
    %3077 = vmatprep.subr.mxu0 0.0
    %3078 = vmatpush1.msra.mxu0 0.0
    %3079 = vmatprep.subr.mxu0 0.0
    %3080 = vmatpush1.msra.mxu0 0.0
    %3081 = vmatprep.subr.mxu0 0.0
    %3082 = vmatpush1.msra.mxu0 0.0
    %3083 = vmatprep.subr.mxu0 0.0
    %3084 = vmatpush1.msra.mxu0 0.0
    %3085 = vmatprep.subr.mxu0 0.0
    %3086 = vmatpush1.msra.mxu0 0.0
    %3087 = vmatprep.subr.mxu0 0.0
    %3088 = vmatpush1.msra.mxu0 0.0
    %3089 = vmatprep.subr.mxu0 0.0
    %3090 = vmatpush1.msra.mxu0 0.0
    %3091 = vmatprep.subr.mxu0 0.0
    %3092 = vmatpush1.msra.mxu0 0.0
    %3093 = vmatprep.subr.mxu0 0.0
    %3094 = vmatpush1.msra.mxu0 0.0
    %3095 = vmatprep.subr.mxu0 0.0
    %3096 = vmatpush1.msra.mxu0 0.0
    %3097 = vmatprep.subr.mxu0 0.0
    %3098 = vmatpush1.msra.mxu0 0.0
    %3099 = vmatprep.subr.mxu0 0.0
    %3100 = vmatpush1.msra.mxu0 0.0
    %3101 = vmatprep.subr.mxu0 0.0
    %3102 = vmatpush1.msra.mxu0 0.0
    %3103 = vmatprep.subr.mxu0 0.0
    %3104 = vmatpush1.msra.mxu0 0.0
    %3105 = vmatprep.subr.mxu0 0.0
    %3106 = vmatpush1.msra.mxu0 0.0
    %3107 = vmatprep.subr.mxu0 0.0
    %3108 = vmatpush1.msra.mxu0 0.0
    %3109 = vmatprep.subr.mxu0 0.0
    %3110 = vmatpush1.msra.mxu0 0.0
    %3111 = vmatprep.subr.mxu0 0.0
    %3112 = vmatpush1.msra.mxu0 0.0
    %3113 = vmatprep.subr.mxu0 0.0
    %3114 = vmatpush1.msra.mxu0 0.0
    %3115 = vmatprep.subr.mxu0 0.0
    %3116 = vmatpush1.msra.mxu0 0.0
    %3117 = vmatprep.subr.mxu0 0.0
    %3118 = vmatpush1.msra.mxu0 0.0
    %3119 = vmatprep.subr.mxu0 0.0
    %3120 = vmatpush1.msra.mxu0 0.0
    %3121 = vmatprep.subr.mxu0 0.0
    %3122 = vmatpush1.msra.mxu0 0.0
    %3123 = vmatprep.subr.mxu0 0.0
    %3124 = vmatpush1.msra.mxu0 0.0
    %3125 = vmatprep.mubr.f32.mxu0 0.0
    %3126 = vmatmul.mubr.f32.gmra.mrb[0].mxu0 %v3059
    %v3127 = vpop.f32.mrb[0].mxu0
    %v3128 = vadd.f32 0.0, %v3127
    %v3129 = vpop.f32.mrb[0].mxu0
    %3130 = vdwg.mxu0
    %v3131 = vld [vmem:[#allocation2 + $0x128] sm:$0xff]
    %v3132 = vld [vmem:[#allocation2 + $0x130] sm:$0xff]
    %v3133 = vld [vmem:[#allocation2 + $0x138] sm:$0xff]
    %v3134 = vld [vmem:[#allocation2 + $0x140] sm:$0xff]
    %v3135 = vld [vmem:[#allocation2 + $0x148] sm:$0x1]
    %v3136 = vlaneseq
    %v3137 = vshrl.u32 %v3136, 7
    %v3138 = vsub.s32 0, %v3137
    %v3139 = vrot.slane %v3135, %v3138
    %v3141 = vsel %vm44, %v3128, 0
    %3143 = vmatprep.subr.mxu0 0.0
    %3144 = vmatpush1.msra.mxu0 %v3131
    %3145 = vmatprep.subr.mxu0 0.0
    %3146 = vmatpush1.msra.mxu0 %v3132
    %3147 = vmatprep.subr.mxu0 0.0
    %3148 = vmatpush1.msra.mxu0 %v3133
    %3149 = vmatprep.subr.mxu0 0.0
    %3150 = vmatpush1.msra.mxu0 %v3134
    %3151 = vmatprep.subr.mxu0 0.0
    %3152 = vmatpush1.msra.mxu0 0.0
    %3153 = vmatprep.subr.mxu0 0.0
    %3154 = vmatpush1.msra.mxu0 0.0
    %3155 = vmatprep.subr.mxu0 0.0
    %3156 = vmatpush1.msra.mxu0 0.0
    %3157 = vmatprep.subr.mxu0 0.0
    %3158 = vmatpush1.msra.mxu0 0.0
    %3159 = vmatprep.subr.mxu0 0.0
    %3160 = vmatpush1.msra.mxu0 0.0
    %3161 = vmatprep.subr.mxu0 0.0
    %3162 = vmatpush1.msra.mxu0 0.0
    %3163 = vmatprep.subr.mxu0 0.0
    %3164 = vmatpush1.msra.mxu0 0.0
    %3165 = vmatprep.subr.mxu0 0.0
    %3166 = vmatpush1.msra.mxu0 0.0
    %3167 = vmatprep.subr.mxu0 0.0
    %3168 = vmatpush1.msra.mxu0 0.0
    %3169 = vmatprep.subr.mxu0 0.0
    %3170 = vmatpush1.msra.mxu0 0.0
    %3171 = vmatprep.subr.mxu0 0.0
    %3172 = vmatpush1.msra.mxu0 0.0
    %3173 = vmatprep.subr.mxu0 0.0
    %3174 = vmatpush1.msra.mxu0 0.0
    %3175 = vmatprep.subr.mxu0 0.0
    %3176 = vmatpush1.msra.mxu0 0.0
    %3177 = vmatprep.subr.mxu0 0.0
    %3178 = vmatpush1.msra.mxu0 0.0
    %3179 = vmatprep.subr.mxu0 0.0
    %3180 = vmatpush1.msra.mxu0 0.0
    %3181 = vmatprep.subr.mxu0 0.0
    %3182 = vmatpush1.msra.mxu0 0.0
    %3183 = vmatprep.subr.mxu0 0.0
    %3184 = vmatpush1.msra.mxu0 0.0
    %3185 = vmatprep.subr.mxu0 0.0
    %3186 = vmatpush1.msra.mxu0 0.0
    %3187 = vmatprep.subr.mxu0 0.0
    %3188 = vmatpush1.msra.mxu0 0.0
    %3189 = vmatprep.subr.mxu0 0.0
    %3190 = vmatpush1.msra.mxu0 0.0
    %3191 = vmatprep.subr.mxu0 0.0
    %3192 = vmatpush1.msra.mxu0 0.0
    %3193 = vmatprep.subr.mxu0 0.0
    %3194 = vmatpush1.msra.mxu0 0.0
    %3195 = vmatprep.subr.mxu0 0.0
    %3196 = vmatpush1.msra.mxu0 0.0
    %3197 = vmatprep.subr.mxu0 0.0
    %3198 = vmatpush1.msra.mxu0 0.0
    %3199 = vmatprep.subr.mxu0 0.0
    %3200 = vmatpush1.msra.mxu0 0.0
    %3201 = vmatprep.subr.mxu0 0.0
    %3202 = vmatpush1.msra.mxu0 0.0
    %3203 = vmatprep.subr.mxu0 0.0
    %3204 = vmatpush1.msra.mxu0 0.0
    %3205 = vmatprep.subr.mxu0 0.0
    %3206 = vmatpush1.msra.mxu0 0.0
    %3207 = vmatprep.mubr.f32.mxu0 0.0
    %3208 = vmatmul.mubr.f32.gmra.mrb[0].mxu0 %v3141
    %v3209 = vpop.f32.mrb[0].mxu0
    %v3210 = vadd.f32 %v3139, %v3209
    %v3211 = vpop.f32.mrb[0].mxu0
    %3212 = vdwg.mxu0
    %3213 = vst [vmem:[%s2] sm:$0xff] %v3210
    // Predicated region
    $region14: #{pallas_forward.1} parent=1 // pred_check
      _
    $region15: #{pallas_forward.1} parent=1 // pred_check_branch
      %3215 = sbr.rel (0) target = $region17
    $region16: #{pallas_forward.1} parent=1 // pred_region
      _
    $region17: #{pallas_forward.1} parent=1 // pred_fallthru
      _
    // Predicated region
    $region18: #{pallas_forward.1} parent=1 // pred_check
      _
    $region19: #{pallas_forward.1} parent=1 // pred_check_branch
      %3217 = sbr.rel (0) target = $region21
    $region20: #{pallas_forward.1} parent=1 // pred_region
      _
    $region21: #{pallas_forward.1} parent=1 // pred_fallthru
      _
    %3218 = vsyncpa [#allocation3], 1

</llo_original>
